<compile_context>
chip_gen: v6e
topology: v6e:2x2x1
jax: 0.10.0
libtpu: 0.0.40
codegen_flags: <defaults>
</compile_context>

<pallas_src>
import jax
import jax.numpy as jnp
from jax.experimental import pallas as pl
from jax.experimental.pallas import tpu as pltpu

# ----------------------------- config ---------------------------------------
B = 2          # batch
S = 8          # sequence length
D_MODEL = 32   # d_model
H = 4          # heads
D_K = 8        # per-head key dim
D_V = 8        # per-head value dim
D_FF = 64      # feed-forward hidden dim
N_LAYERS = 2
PADDING_IDX = 0.0
LN_EPS = 1e-5
NEG_INF = -1e9  # large finite negative (avoids inf - inf = NaN in softmax)

# packed-slab static offsets -------------------------------------------------
QKV_W = 3 * H * D_K          # 96: width of fused [wq|wk|wv] block
K_OFF = H * D_K              # 32: key offset inside fused qkv activations
V_OFF = 2 * H * D_K          # 64: value offset inside fused qkv activations
W1_OFF = 128                 # lane-aligned offset of w1 inside the input slab
WIN_COLS = W1_OFF + D_FF     # 192: input-side weight slab width
WOUT_ROWS = H * D_V + D_FF   # 96: [wo ; w2] stacked along sublanes
# rows of the (N, 8, 128) bias / LayerNorm slab
ROW_BQKV, ROW_BF1, ROW_BO, ROW_G1, ROW_BE1, ROW_BF2, ROW_G2, ROW_BE2 = range(8)


# ----------------------------- helpers ---------------------------------------
def _layer_norm(v, gamma, beta):
    mu = jnp.mean(v, axis=-1, keepdims=True)
    var = jnp.mean((v - mu) ** 2, axis=-1, keepdims=True)
    return (v - mu) * jax.lax.rsqrt(var + LN_EPS) * gamma + beta


# ------------------------- fused encoder kernel ------------------------------
def fused_encoder_kernel(x_ref, win_ref, wout_ref, pvec_ref, outs_ref):
    f32 = jnp.float32
    x0 = x_ref[...]                                      # (B, S, D)

    # ---- key-padding bias (mask itself is produced by the wrapper) ----
    pad = jnp.sum(x0, axis=-1) == PADDING_IDX            # (B, S) bool
    bias = jnp.where(pad, f32(NEG_INF), f32(0.0))        # (B, S)
    # attention batch axis is n = h*B + b  -> computed ONCE, reused per layer
    bias_hb = jnp.broadcast_to(bias[None, :, None, :],
                               (H, B, 1, S)).reshape(H * B, 1, S)

    scale = f32(1.0 / (D_K ** 0.5))
    out_flat = x0.reshape(B * S, D_MODEL)                # (16, 32) activation slab

    for l in range(N_LAYERS):                            # static unroll over layers
        # ---- hoisted per-layer parameter loads (static slab slices) ----
        wqkv_l = win_ref[l, :, 0:QKV_W]                  # (D, 96)  [wq|wk|wv]
        w1_l   = win_ref[l, :, W1_OFF:W1_OFF + D_FF]     # (D, 64)
        wo_l   = wout_ref[l, 0:H * D_V, :]               # (32, D)
        w2_l   = wout_ref[l, H * D_V:WOUT_ROWS, :]       # (64, D)
        bqkv_l = pvec_ref[l, ROW_BQKV:ROW_BQKV + 1, 0:QKV_W]    # (1, 96)
        bf1_l  = pvec_ref[l, ROW_BF1:ROW_BF1 + 1, 0:D_FF]       # (1, 64)
        bo_l   = pvec_ref[l, ROW_BO:ROW_BO + 1, 0:D_MODEL]      # (1, 32)
        g1_l   = pvec_ref[l, ROW_G1:ROW_G1 + 1, 0:D_MODEL]
        be1_l  = pvec_ref[l, ROW_BE1:ROW_BE1 + 1, 0:D_MODEL]
        bf2_l  = pvec_ref[l, ROW_BF2:ROW_BF2 + 1, 0:D_MODEL]
        g2_l   = pvec_ref[l, ROW_G2:ROW_G2 + 1, 0:D_MODEL]
        be2_l  = pvec_ref[l, ROW_BE2:ROW_BE2 + 1, 0:D_MODEL]

        # ---- fused QKV projection: single (16,32)@(32,96) MXU matmul ----
        qkv = jnp.dot(out_flat, wqkv_l,
                      preferred_element_type=f32) + bqkv_l       # (B*S, 96)

        # per-head views (static lane slices), batched over n = h*B + b
        q_heads, k_heads, v_heads = [], [], []
        for hh in range(H):
            q_heads.append(qkv[:, hh * D_K:(hh + 1) * D_K].reshape(B, S, D_K))
            k_heads.append(qkv[:, K_OFF + hh * D_K:K_OFF + (hh + 1) * D_K]
                           .reshape(B, S, D_K))
            v_heads.append(qkv[:, V_OFF + hh * D_V:V_OFF + (hh + 1) * D_V]
                           .reshape(B, S, D_V))
        qh = jnp.concatenate(q_heads, axis=0)            # (H*B, S, DK)
        kh = jnp.concatenate(k_heads, axis=0)            # (H*B, S, DK)
        vh = jnp.concatenate(v_heads, axis=0)            # (H*B, S, DV)

        # ---- scaled dot-product attention with key-padding bias ----
        att = jnp.einsum('nqd,nkd->nqk', qh, kh,
                         preferred_element_type=f32) * scale      # (H*B, S, S)
        att = att + bias_hb
        att = att - jnp.max(att, axis=-1, keepdims=True)
        p = jnp.exp(att)
        p = p * pl.reciprocal(jnp.sum(p, axis=-1, keepdims=True), approx=True)
        ctx = jnp.einsum('nqk,nkd->nqd', p, vh,
                         preferred_element_type=f32)              # (H*B, S, DV)

        # ---- concat heads + single output-projection matmul ----
        ctx_cat = jnp.concatenate([ctx[hh * B:(hh + 1) * B] for hh in range(H)],
                                  axis=-1)                        # (B, S, H*DV)
        ctx2 = ctx_cat.reshape(B * S, H * D_V)                    # (16, 32)
        attn = jnp.dot(ctx2, wo_l, preferred_element_type=f32) + bo_l

        # residual + LayerNorm (dropout is identity in eval)
        y = _layer_norm(out_flat + attn, g1_l, be1_l)             # (16, 32)

        # ---- position-wise feed forward ----
        h1 = jnp.maximum(
            jnp.dot(y, w1_l, preferred_element_type=f32) + bf1_l, 0.0)   # (16, 64)
        ff = jnp.dot(h1, w2_l, preferred_element_type=f32) + bf2_l       # (16, 32)
        z = _layer_norm(y + ff, g2_l, be2_l)                             # (16, 32)

        # single-shot per-layer store (no per-batch loop)
        outs_ref[l] = z
        out_flat = z


# -------------------------- parameter handling --------------------------------
def init_layer_params(key):
    ks = jax.random.split(key, 6)
    scale = 0.02

    def w(k, shape):
        return scale * jax.random.normal(k, shape, dtype=jnp.float32)

    return {
        "wq": w(ks[0], (D_MODEL, H * D_K)), "bq": jnp.zeros((H * D_K,), jnp.float32),
        "wk": w(ks[1], (D_MODEL, H * D_K)), "bk": jnp.zeros((H * D_K,), jnp.float32),
        "wv": w(ks[2], (D_MODEL, H * D_V)), "bv": jnp.zeros((H * D_V,), jnp.float32),
        "wo": w(ks[3], (H * D_V, D_MODEL)), "bo": jnp.zeros((D_MODEL,), jnp.float32),
        "g1": jnp.ones((D_MODEL,), jnp.float32), "be1": jnp.zeros((D_MODEL,), jnp.float32),
        "w1": w(ks[4], (D_MODEL, D_FF)), "bf1": jnp.zeros((D_FF,), jnp.float32),
        "w2": w(ks[5], (D_FF, D_MODEL)), "bf2": jnp.zeros((D_MODEL,), jnp.float32),
        "g2": jnp.ones((D_MODEL,), jnp.float32), "be2": jnp.zeros((D_MODEL,), jnp.float32),
    }


def pack_params(layer_params):
    """Pack the 17 per-layer tensors into 3 kernel operands (done once, in JAX)."""
    n = len(layer_params)
    win = jnp.zeros((n, D_MODEL, WIN_COLS), jnp.float32)    # [wq|wk|wv] @0, w1 @128
    wout = jnp.zeros((n, WOUT_ROWS, D_MODEL), jnp.float32)  # wo rows 0:32, w2 rows 32:96
    pvec = jnp.zeros((n, 8, 128), jnp.float32)              # biases + LayerNorm params
    for i, p in enumerate(layer_params):
        wqkv = jnp.concatenate([p["wq"], p["wk"], p["wv"]], axis=-1)   # (D, 96)
        win = win.at[i, :, 0:QKV_W].set(wqkv)
        win = win.at[i, :, W1_OFF:W1_OFF + D_FF].set(p["w1"])
        wout = wout.at[i, 0:H * D_V, :].set(p["wo"])
        wout = wout.at[i, H * D_V:WOUT_ROWS, :].set(p["w2"])
        bqkv = jnp.concatenate([p["bq"], p["bk"], p["bv"]])            # (96,)
        pvec = pvec.at[i, ROW_BQKV, 0:QKV_W].set(bqkv)
        pvec = pvec.at[i, ROW_BF1, 0:D_FF].set(p["bf1"])
        pvec = pvec.at[i, ROW_BO, 0:D_MODEL].set(p["bo"])
        pvec = pvec.at[i, ROW_G1, 0:D_MODEL].set(p["g1"])
        pvec = pvec.at[i, ROW_BE1, 0:D_MODEL].set(p["be1"])
        pvec = pvec.at[i, ROW_BF2, 0:D_MODEL].set(p["bf2"])
        pvec = pvec.at[i, ROW_G2, 0:D_MODEL].set(p["g2"])
        pvec = pvec.at[i, ROW_BE2, 0:D_MODEL].set(p["be2"])
    return win, wout, pvec


# ---------------------- MultiLevelEncoder forward ----------------------------
def multi_level_encoder(x, win, wout, pvec):
    # attention_mask = (sum(input, -1) == padding_idx).unsqueeze(1).unsqueeze(1)
    attention_mask = (jnp.sum(x, axis=-1) == PADDING_IDX)[:, None, None, :]  # (B,1,1,S)

    vmem = pltpu.MemorySpace.VMEM
    outs_flat = pl.pallas_call(
        fused_encoder_kernel,
        out_shape=jax.ShapeDtypeStruct((N_LAYERS, B * S, D_MODEL), jnp.float32),
        in_specs=[pl.BlockSpec(memory_space=vmem)] * 4,
        out_specs=pl.BlockSpec(memory_space=vmem),
    )(x, win, wout, pvec)

    # (N, B*S, D) -> (B, N, S, D)
    outs = outs_flat.reshape(N_LAYERS, B, S, D_MODEL).transpose(1, 0, 2, 3)
    return outs, attention_mask


# ---------------------------- pure-JAX reference ------------------------------
def reference_forward(x, layer_params):
    hp = jax.lax.Precision.HIGHEST
    pad = jnp.sum(x, axis=-1) == PADDING_IDX
    bias = jnp.where(pad, NEG_INF, 0.0)[:, None, None, :]             # (B,1,1,S)
    out = x
    outs = []
    for p in layer_params:
        q = jnp.einsum('bsd,df->bsf', out, p["wq"], precision=hp) + p["bq"]
        k = jnp.einsum('bsd,df->bsf', out, p["wk"], precision=hp) + p["bk"]
        v = jnp.einsum('bsd,df->bsf', out, p["wv"], precision=hp) + p["bv"]
        q = q.reshape(B, S, H, D_K).transpose(0, 2, 1, 3)
        k = k.reshape(B, S, H, D_K).transpose(0, 2, 1, 3)
        v = v.reshape(B, S, H, D_V).transpose(0, 2, 1, 3)
        att = jnp.einsum('bhqd,bhkd->bhqk', q, k, precision=hp) / jnp.sqrt(
            jnp.float32(D_K)) + bias
        att = jax.nn.softmax(att, axis=-1)
        ctx = jnp.einsum('bhqk,bhkd->bhqd', att, v, precision=hp)
        ctx = ctx.transpose(0, 2, 1, 3).reshape(B, S, H * D_V)
        mh = jnp.einsum('bsf,fd->bsd', ctx, p["wo"], precision=hp) + p["bo"]
        y = _layer_norm(out + mh, p["g1"], p["be1"])
        h1 = jax.nn.relu(jnp.einsum('bsd,df->bsf', y, p["w1"], precision=hp) + p["bf1"])
        ff = jnp.einsum('bsf,fd->bsd', h1, p["w2"], precision=hp) + p["bf2"]
        z = _layer_norm(y + ff, p["g2"], p["be2"])
        outs.append(z[:, None])
        out = z
    return jnp.concatenate(outs, axis=1), pad[:, None, None, :]


# ------------------------------- main ----------------------------------------
if __name__ == "__main__":
    key = jax.random.PRNGKey(0)
    k_in, k_p = jax.random.split(key)
    x = jax.random.normal(k_in, (B, S, D_MODEL), dtype=jnp.float32)
    # make one position an exact "pad" token so the mask path is exercised
    x = x.at[1, S - 1].set(0.0)

    layer_keys = jax.random.split(k_p, N_LAYERS)
    layer_params = [init_layer_params(lk) for lk in layer_keys]
    win, wout, pvec = pack_params(layer_params)

    outs, attention_mask = multi_level_encoder(x, win, wout, pvec)
    outs = jax.block_until_ready(outs)
    attention_mask = jax.block_until_ready(attention_mask)

    assert outs.shape == (B, N_LAYERS, S, D_MODEL)
    assert attention_mask.shape == (B, 1, 1, S)
    assert bool(jnp.all(jnp.isfinite(outs)))

    ref_outs, ref_mask = reference_forward(x, layer_params)
    assert bool(jnp.array_equal(attention_mask, ref_mask))
    assert bool(jnp.allclose(outs, ref_outs, rtol=5e-2, atol=5e-2))

    print("KERNEL_OK")
</pallas_src>

<mosaic_0001>
module attributes {stable_mosaic.version = 11 : i64} {
  func.func @fused_encoder_kernel(%arg0: memref<2x8x32xf32, #tpu.memory_space<vmem>>, %arg1: memref<2x32x192xf32, #tpu.memory_space<vmem>>, %arg2: memref<2x96x32xf32, #tpu.memory_space<vmem>>, %arg3: memref<2x8x128xf32, #tpu.memory_space<vmem>>, %arg4: memref<2x16x32xf32, #tpu.memory_space<vmem>>) attributes {dimension_semantics = [], scalar_prefetch = 0 : i64, scratch_operands = 0 : i64, tpu.core_type = #tpu.core_type<tc>} {
    %c0 = arith.constant 0 : index
    %c0_0 = arith.constant 0 : index
    %c0_1 = arith.constant 0 : index
    %0 = vector.load %arg0[%c0, %c0_0, %c0_1] : memref<2x8x32xf32, #tpu.memory_space<vmem>>, vector<2x8x32xf32>
    %cst = arith.constant dense<0.000000e+00> : vector<2x8xf32>
    %1 = vector.multi_reduction <add>, %0, %cst [2] : vector<2x8x32xf32> to vector<2x8xf32>
    %cst_2 = arith.constant 0.000000e+00 : f32
    %2 = vector.broadcast %cst_2 : f32 to vector<2x8xf32>
    %3 = arith.cmpf oeq, %1, %2 : vector<2x8xf32>
    %cst_3 = arith.constant -1.000000e+09 : f32
    %cst_4 = arith.constant 0.000000e+00 : f32
    %4 = vector.broadcast %cst_3 : f32 to vector<2x8xf32>
    %5 = vector.broadcast %cst_4 : f32 to vector<2x8xf32>
    %6 = arith.select %3, %4, %5 : vector<2x8xi1>, vector<2x8xf32>
    %7 = vector.shape_cast %6 : vector<2x8xf32> to vector<1x2x1x8xf32>
    %8 = vector.shape_cast %7 : vector<1x2x1x8xf32> to vector<1x2x1x8xf32>
    %9 = vector.broadcast %8 : vector<1x2x1x8xf32> to vector<4x2x1x8xf32>
    %10 = vector.shape_cast %9 : vector<4x2x1x8xf32> to vector<8x1x8xf32>
    %11 = vector.shape_cast %0 : vector<2x8x32xf32> to vector<16x32xf32>
    %c0_5 = arith.constant 0 : index
    %c0_6 = arith.constant 0 : index
    %c0_7 = arith.constant 0 : index
    %12 = vector.load %arg1[%c0_5, %c0_6, %c0_7] : memref<2x32x192xf32, #tpu.memory_space<vmem>>, vector<1x32x96xf32>
    %13 = vector.shape_cast %12 : vector<1x32x96xf32> to vector<32x96xf32>
    %c0_8 = arith.constant 0 : index
    %c0_9 = arith.constant 0 : index
    %c128 = arith.constant 128 : index
    %14 = vector.load %arg1[%c0_8, %c0_9, %c128] : memref<2x32x192xf32, #tpu.memory_space<vmem>>, vector<1x32x64xf32>
    %15 = vector.shape_cast %14 : vector<1x32x64xf32> to vector<32x64xf32>
    %c0_10 = arith.constant 0 : index
    %c0_11 = arith.constant 0 : index
    %c0_12 = arith.constant 0 : index
    %16 = vector.load %arg2[%c0_10, %c0_11, %c0_12] : memref<2x96x32xf32, #tpu.memory_space<vmem>>, vector<1x32x32xf32>
    %17 = vector.shape_cast %16 : vector<1x32x32xf32> to vector<32x32xf32>
    %c0_13 = arith.constant 0 : index
    %c32 = arith.constant 32 : index
    %c0_14 = arith.constant 0 : index
    %18 = vector.load %arg2[%c0_13, %c32, %c0_14] : memref<2x96x32xf32, #tpu.memory_space<vmem>>, vector<1x64x32xf32>
    %19 = vector.shape_cast %18 : vector<1x64x32xf32> to vector<64x32xf32>
    %c0_15 = arith.constant 0 : index
    %c0_16 = arith.constant 0 : index
    %c0_17 = arith.constant 0 : index
    %20 = vector.load %arg3[%c0_15, %c0_16, %c0_17] : memref<2x8x128xf32, #tpu.memory_space<vmem>>, vector<1x1x96xf32>
    %21 = vector.shape_cast %20 : vector<1x1x96xf32> to vector<1x96xf32>
    %c0_18 = arith.constant 0 : index
    %c1 = arith.constant 1 : index
    %c0_19 = arith.constant 0 : index
    %22 = vector.load %arg3[%c0_18, %c1, %c0_19] : memref<2x8x128xf32, #tpu.memory_space<vmem>>, vector<1x1x64xf32>
    %23 = vector.shape_cast %22 : vector<1x1x64xf32> to vector<1x64xf32>
    %c0_20 = arith.constant 0 : index
    %c2 = arith.constant 2 : index
    %c0_21 = arith.constant 0 : index
    %24 = vector.load %arg3[%c0_20, %c2, %c0_21] : memref<2x8x128xf32, #tpu.memory_space<vmem>>, vector<1x1x32xf32>
    %25 = vector.shape_cast %24 : vector<1x1x32xf32> to vector<1x32xf32>
    %c0_22 = arith.constant 0 : index
    %c3 = arith.constant 3 : index
    %c0_23 = arith.constant 0 : index
    %26 = vector.load %arg3[%c0_22, %c3, %c0_23] : memref<2x8x128xf32, #tpu.memory_space<vmem>>, vector<1x1x32xf32>
    %27 = vector.shape_cast %26 : vector<1x1x32xf32> to vector<1x32xf32>
    %c0_24 = arith.constant 0 : index
    %c4 = arith.constant 4 : index
    %c0_25 = arith.constant 0 : index
    %28 = vector.load %arg3[%c0_24, %c4, %c0_25] : memref<2x8x128xf32, #tpu.memory_space<vmem>>, vector<1x1x32xf32>
    %29 = vector.shape_cast %28 : vector<1x1x32xf32> to vector<1x32xf32>
    %c0_26 = arith.constant 0 : index
    %c5 = arith.constant 5 : index
    %c0_27 = arith.constant 0 : index
    %30 = vector.load %arg3[%c0_26, %c5, %c0_27] : memref<2x8x128xf32, #tpu.memory_space<vmem>>, vector<1x1x32xf32>
    %31 = vector.shape_cast %30 : vector<1x1x32xf32> to vector<1x32xf32>
    %c0_28 = arith.constant 0 : index
    %c6 = arith.constant 6 : index
    %c0_29 = arith.constant 0 : index
    %32 = vector.load %arg3[%c0_28, %c6, %c0_29] : memref<2x8x128xf32, #tpu.memory_space<vmem>>, vector<1x1x32xf32>
    %33 = vector.shape_cast %32 : vector<1x1x32xf32> to vector<1x32xf32>
    %c0_30 = arith.constant 0 : index
    %c7 = arith.constant 7 : index
    %c0_31 = arith.constant 0 : index
    %34 = vector.load %arg3[%c0_30, %c7, %c0_31] : memref<2x8x128xf32, #tpu.memory_space<vmem>>, vector<1x1x32xf32>
    %35 = vector.shape_cast %34 : vector<1x1x32xf32> to vector<1x32xf32>
    %cst_32 = arith.constant dense<0.000000e+00> : vector<16x96xf32>
    %36 = tpu.matmul %11, %13, %cst_32 {dimension_numbers = #tpu.dot_dimension_numbers<[1], [0], [0], [1], [0, 0, 1, 1], [], []>} : vector<16x32xf32>, vector<32x96xf32>, vector<16x96xf32> -> vector<16x96xf32>
    %37 = vector.broadcast %21 : vector<1x96xf32> to vector<16x96xf32>
    %38 = arith.addf %36, %37 : vector<16x96xf32>
    %39 = vector.extract_strided_slice %38 {offsets = [0, 0], sizes = [16, 8], strides = [1, 1]} : vector<16x96xf32> to vector<16x8xf32>
    %40 = vector.shape_cast %39 : vector<16x8xf32> to vector<2x8x8xf32>
    %41 = vector.extract_strided_slice %38 {offsets = [0, 32], sizes = [16, 8], strides = [1, 1]} : vector<16x96xf32> to vector<16x8xf32>
    %42 = vector.shape_cast %41 : vector<16x8xf32> to vector<2x8x8xf32>
    %43 = vector.extract_strided_slice %38 {offsets = [0, 64], sizes = [16, 8], strides = [1, 1]} : vector<16x96xf32> to vector<16x8xf32>
    %44 = vector.shape_cast %43 : vector<16x8xf32> to vector<2x8x8xf32>
    %45 = vector.extract_strided_slice %38 {offsets = [0, 8], sizes = [16, 8], strides = [1, 1]} : vector<16x96xf32> to vector<16x8xf32>
    %46 = vector.shape_cast %45 : vector<16x8xf32> to vector<2x8x8xf32>
    %47 = vector.extract_strided_slice %38 {offsets = [0, 40], sizes = [16, 8], strides = [1, 1]} : vector<16x96xf32> to vector<16x8xf32>
    %48 = vector.shape_cast %47 : vector<16x8xf32> to vector<2x8x8xf32>
    %49 = vector.extract_strided_slice %38 {offsets = [0, 72], sizes = [16, 8], strides = [1, 1]} : vector<16x96xf32> to vector<16x8xf32>
    %50 = vector.shape_cast %49 : vector<16x8xf32> to vector<2x8x8xf32>
    %51 = vector.extract_strided_slice %38 {offsets = [0, 16], sizes = [16, 8], strides = [1, 1]} : vector<16x96xf32> to vector<16x8xf32>
    %52 = vector.shape_cast %51 : vector<16x8xf32> to vector<2x8x8xf32>
    %53 = vector.extract_strided_slice %38 {offsets = [0, 48], sizes = [16, 8], strides = [1, 1]} : vector<16x96xf32> to vector<16x8xf32>
    %54 = vector.shape_cast %53 : vector<16x8xf32> to vector<2x8x8xf32>
    %55 = vector.extract_strided_slice %38 {offsets = [0, 80], sizes = [16, 8], strides = [1, 1]} : vector<16x96xf32> to vector<16x8xf32>
    %56 = vector.shape_cast %55 : vector<16x8xf32> to vector<2x8x8xf32>
    %57 = vector.extract_strided_slice %38 {offsets = [0, 24], sizes = [16, 8], strides = [1, 1]} : vector<16x96xf32> to vector<16x8xf32>
    %58 = vector.shape_cast %57 : vector<16x8xf32> to vector<2x8x8xf32>
    %59 = vector.extract_strided_slice %38 {offsets = [0, 56], sizes = [16, 8], strides = [1, 1]} : vector<16x96xf32> to vector<16x8xf32>
    %60 = vector.shape_cast %59 : vector<16x8xf32> to vector<2x8x8xf32>
    %61 = vector.extract_strided_slice %38 {offsets = [0, 88], sizes = [16, 8], strides = [1, 1]} : vector<16x96xf32> to vector<16x8xf32>
    %62 = vector.shape_cast %61 : vector<16x8xf32> to vector<2x8x8xf32>
    %63 = tpu.concatenate %40, %46, %52, %58 in 0 : vector<2x8x8xf32>, vector<2x8x8xf32>, vector<2x8x8xf32>, vector<2x8x8xf32> -> vector<8x8x8xf32>
    %64 = tpu.concatenate %42, %48, %54, %60 in 0 : vector<2x8x8xf32>, vector<2x8x8xf32>, vector<2x8x8xf32>, vector<2x8x8xf32> -> vector<8x8x8xf32>
    %65 = tpu.concatenate %44, %50, %56, %62 in 0 : vector<2x8x8xf32>, vector<2x8x8xf32>, vector<2x8x8xf32>, vector<2x8x8xf32> -> vector<8x8x8xf32>
    "tpu.trace_start"() <{level = 10 : i32, message = "nqd,nkd->nqk"}> : () -> ()
    %cst_33 = arith.constant dense<0.000000e+00> : vector<8x8x8xf32>
    %66 = tpu.matmul %63, %64, %cst_33 {dimension_numbers = #tpu.dot_dimension_numbers<[2], [2], [1], [1], [0, 0, 0, 1, 1, 1], [0], [0]>} : vector<8x8x8xf32>, vector<8x8x8xf32>, vector<8x8x8xf32> -> vector<8x8x8xf32>
    "tpu.trace_stop"() : () -> ()
    %cst_34 = arith.constant 0.353553385 : f32
    %67 = vector.broadcast %cst_34 : f32 to vector<8x8x8xf32>
    %68 = arith.mulf %66, %67 : vector<8x8x8xf32>
    %69 = vector.broadcast %10 : vector<8x1x8xf32> to vector<8x8x8xf32>
    %70 = arith.addf %68, %69 : vector<8x8x8xf32>
    %cst_35 = arith.constant dense<0xFF800000> : vector<8x8xf32>
    %71 = vector.multi_reduction <maximumf>, %70, %cst_35 [2] : vector<8x8x8xf32> to vector<8x8xf32>
    %72 = vector.shape_cast %71 : vector<8x8xf32> to vector<8x8x1xf32>
    %73 = vector.broadcast %72 : vector<8x8x1xf32> to vector<8x8x8xf32>
    %74 = arith.subf %70, %73 : vector<8x8x8xf32>
    %75 = math.exp %74 : vector<8x8x8xf32>
    %cst_36 = arith.constant dense<0.000000e+00> : vector<8x8xf32>
    %76 = vector.multi_reduction <add>, %75, %cst_36 [2] : vector<8x8x8xf32> to vector<8x8xf32>
    %77 = vector.shape_cast %76 : vector<8x8xf32> to vector<8x8x1xf32>
    %78 = tpu.reciprocal %77 {approx = true} : vector<8x8x1xf32> -> vector<8x8x1xf32>
    %79 = vector.broadcast %78 : vector<8x8x1xf32> to vector<8x8x8xf32>
    %80 = arith.mulf %75, %79 : vector<8x8x8xf32>
    "tpu.trace_start"() <{level = 10 : i32, message = "nqk,nkd->nqd"}> : () -> ()
    %cst_37 = arith.constant dense<0.000000e+00> : vector<8x8x8xf32>
    %81 = tpu.matmul %80, %65, %cst_37 {dimension_numbers = #tpu.dot_dimension_numbers<[2], [1], [1], [2], [0, 0, 0, 1, 1, 2], [0], [0]>} : vector<8x8x8xf32>, vector<8x8x8xf32>, vector<8x8x8xf32> -> vector<8x8x8xf32>
    "tpu.trace_stop"() : () -> ()
    %82 = vector.extract_strided_slice %81 {offsets = [0, 0, 0], sizes = [2, 8, 8], strides = [1, 1, 1]} : vector<8x8x8xf32> to vector<2x8x8xf32>
    %83 = vector.extract_strided_slice %81 {offsets = [2, 0, 0], sizes = [2, 8, 8], strides = [1, 1, 1]} : vector<8x8x8xf32> to vector<2x8x8xf32>
    %84 = vector.extract_strided_slice %81 {offsets = [4, 0, 0], sizes = [2, 8, 8], strides = [1, 1, 1]} : vector<8x8x8xf32> to vector<2x8x8xf32>
    %85 = vector.extract_strided_slice %81 {offsets = [6, 0, 0], sizes = [2, 8, 8], strides = [1, 1, 1]} : vector<8x8x8xf32> to vector<2x8x8xf32>
    %86 = tpu.concatenate %82, %83, %84, %85 in 2 : vector<2x8x8xf32>, vector<2x8x8xf32>, vector<2x8x8xf32>, vector<2x8x8xf32> -> vector<2x8x32xf32>
    %87 = vector.shape_cast %86 : vector<2x8x32xf32> to vector<16x32xf32>
    %cst_38 = arith.constant dense<0.000000e+00> : vector<16x32xf32>
    %88 = tpu.matmul %87, %17, %cst_38 {dimension_numbers = #tpu.dot_dimension_numbers<[1], [0], [0], [1], [0, 0, 1, 1], [], []>} : vector<16x32xf32>, vector<32x32xf32>, vector<16x32xf32> -> vector<16x32xf32>
    %89 = vector.broadcast %25 : vector<1x32xf32> to vector<16x32xf32>
    %90 = arith.addf %88, %89 : vector<16x32xf32>
    %91 = arith.addf %11, %90 : vector<16x32xf32>
    %cst_39 = arith.constant dense<0.000000e+00> : vector<16xf32>
    %92 = vector.multi_reduction <add>, %91, %cst_39 [1] : vector<16x32xf32> to vector<16xf32>
    %93 = vector.shape_cast %92 : vector<16xf32> to vector<16x1xf32>
    %cst_40 = arith.constant 3.200000e+01 : f32
    %94 = vector.broadcast %cst_40 : f32 to vector<16x1xf32>
    %95 = arith.divf %93, %94 : vector<16x1xf32>
    %96 = vector.broadcast %95 : vector<16x1xf32> to vector<16x32xf32>
    %97 = arith.subf %91, %96 : vector<16x32xf32>
    %98 = arith.mulf %97, %97 : vector<16x32xf32>
    %cst_41 = arith.constant dense<0.000000e+00> : vector<16xf32>
    %99 = vector.multi_reduction <add>, %98, %cst_41 [1] : vector<16x32xf32> to vector<16xf32>
    %100 = vector.shape_cast %99 : vector<16xf32> to vector<16x1xf32>
    %cst_42 = arith.constant 3.200000e+01 : f32
    %101 = vector.broadcast %cst_42 : f32 to vector<16x1xf32>
    %102 = arith.divf %100, %101 : vector<16x1xf32>
    %103 = vector.broadcast %95 : vector<16x1xf32> to vector<16x32xf32>
    %104 = arith.subf %91, %103 : vector<16x32xf32>
    %cst_43 = arith.constant 9.99999974E-6 : f32
    %105 = vector.broadcast %cst_43 : f32 to vector<16x1xf32>
    %106 = arith.addf %102, %105 : vector<16x1xf32>
    %107 = math.rsqrt %106 : vector<16x1xf32>
    %108 = vector.broadcast %107 : vector<16x1xf32> to vector<16x32xf32>
    %109 = arith.mulf %104, %108 : vector<16x32xf32>
    %110 = vector.broadcast %27 : vector<1x32xf32> to vector<16x32xf32>
    %111 = arith.mulf %109, %110 : vector<16x32xf32>
    %112 = vector.broadcast %29 : vector<1x32xf32> to vector<16x32xf32>
    %113 = arith.addf %111, %112 : vector<16x32xf32>
    %cst_44 = arith.constant dense<0.000000e+00> : vector<16x64xf32>
    %114 = tpu.matmul %113, %15, %cst_44 {dimension_numbers = #tpu.dot_dimension_numbers<[1], [0], [0], [1], [0, 0, 1, 1], [], []>} : vector<16x32xf32>, vector<32x64xf32>, vector<16x64xf32> -> vector<16x64xf32>
    %115 = vector.broadcast %23 : vector<1x64xf32> to vector<16x64xf32>
    %116 = arith.addf %114, %115 : vector<16x64xf32>
    %cst_45 = arith.constant 0.000000e+00 : f32
    %117 = vector.broadcast %cst_45 : f32 to vector<16x64xf32>
    %118 = arith.maximumf %116, %117 : vector<16x64xf32>
    %cst_46 = arith.constant dense<0.000000e+00> : vector<16x32xf32>
    %119 = tpu.matmul %118, %19, %cst_46 {dimension_numbers = #tpu.dot_dimension_numbers<[1], [0], [0], [1], [0, 0, 1, 1], [], []>} : vector<16x64xf32>, vector<64x32xf32>, vector<16x32xf32> -> vector<16x32xf32>
    %120 = vector.broadcast %31 : vector<1x32xf32> to vector<16x32xf32>
    %121 = arith.addf %119, %120 : vector<16x32xf32>
    %122 = arith.addf %113, %121 : vector<16x32xf32>
    %cst_47 = arith.constant dense<0.000000e+00> : vector<16xf32>
    %123 = vector.multi_reduction <add>, %122, %cst_47 [1] : vector<16x32xf32> to vector<16xf32>
    %124 = vector.shape_cast %123 : vector<16xf32> to vector<16x1xf32>
    %cst_48 = arith.constant 3.200000e+01 : f32
    %125 = vector.broadcast %cst_48 : f32 to vector<16x1xf32>
    %126 = arith.divf %124, %125 : vector<16x1xf32>
    %127 = vector.broadcast %126 : vector<16x1xf32> to vector<16x32xf32>
    %128 = arith.subf %122, %127 : vector<16x32xf32>
    %129 = arith.mulf %128, %128 : vector<16x32xf32>
    %cst_49 = arith.constant dense<0.000000e+00> : vector<16xf32>
    %130 = vector.multi_reduction <add>, %129, %cst_49 [1] : vector<16x32xf32> to vector<16xf32>
    %131 = vector.shape_cast %130 : vector<16xf32> to vector<16x1xf32>
    %cst_50 = arith.constant 3.200000e+01 : f32
    %132 = vector.broadcast %cst_50 : f32 to vector<16x1xf32>
    %133 = arith.divf %131, %132 : vector<16x1xf32>
    %134 = vector.broadcast %126 : vector<16x1xf32> to vector<16x32xf32>
    %135 = arith.subf %122, %134 : vector<16x32xf32>
    %cst_51 = arith.constant 9.99999974E-6 : f32
    %136 = vector.broadcast %cst_51 : f32 to vector<16x1xf32>
    %137 = arith.addf %133, %136 : vector<16x1xf32>
    %138 = math.rsqrt %137 : vector<16x1xf32>
    %139 = vector.broadcast %138 : vector<16x1xf32> to vector<16x32xf32>
    %140 = arith.mulf %135, %139 : vector<16x32xf32>
    %141 = vector.broadcast %33 : vector<1x32xf32> to vector<16x32xf32>
    %142 = arith.mulf %140, %141 : vector<16x32xf32>
    %143 = vector.broadcast %35 : vector<1x32xf32> to vector<16x32xf32>
    %144 = arith.addf %142, %143 : vector<16x32xf32>
    %c0_52 = arith.constant 0 : index
    %c0_53 = arith.constant 0 : index
    %c0_54 = arith.constant 0 : index
    %145 = vector.load %arg4[%c0_52, %c0_53, %c0_54] : memref<2x16x32xf32, #tpu.memory_space<vmem>>, vector<1x16x32xf32>
    %146 = vector.shape_cast %145 : vector<1x16x32xf32> to vector<16x32xf32>
    %147 = vector.shape_cast %144 : vector<16x32xf32> to vector<1x16x32xf32>
    tpu.vector_store %arg4[%c0_52, %c0_53, %c0_54], %147 {strides = array<i32>} : memref<2x16x32xf32, #tpu.memory_space<vmem>>, vector<1x16x32xf32>,
    %c1_55 = arith.constant 1 : index
    %c0_56 = arith.constant 0 : index
    %c0_57 = arith.constant 0 : index
    %148 = vector.load %arg1[%c1_55, %c0_56, %c0_57] : memref<2x32x192xf32, #tpu.memory_space<vmem>>, vector<1x32x96xf32>
    %149 = vector.shape_cast %148 : vector<1x32x96xf32> to vector<32x96xf32>
    %c1_58 = arith.constant 1 : index
    %c0_59 = arith.constant 0 : index
    %c128_60 = arith.constant 128 : index
    %150 = vector.load %arg1[%c1_58, %c0_59, %c128_60] : memref<2x32x192xf32, #tpu.memory_space<vmem>>, vector<1x32x64xf32>
    %151 = vector.shape_cast %150 : vector<1x32x64xf32> to vector<32x64xf32>
    %c1_61 = arith.constant 1 : index
    %c0_62 = arith.constant 0 : index
    %c0_63 = arith.constant 0 : index
    %152 = vector.load %arg2[%c1_61, %c0_62, %c0_63] : memref<2x96x32xf32, #tpu.memory_space<vmem>>, vector<1x32x32xf32>
    %153 = vector.shape_cast %152 : vector<1x32x32xf32> to vector<32x32xf32>
    %c1_64 = arith.constant 1 : index
    %c32_65 = arith.constant 32 : index
    %c0_66 = arith.constant 0 : index
    %154 = vector.load %arg2[%c1_64, %c32_65, %c0_66] : memref<2x96x32xf32, #tpu.memory_space<vmem>>, vector<1x64x32xf32>
    %155 = vector.shape_cast %154 : vector<1x64x32xf32> to vector<64x32xf32>
    %c1_67 = arith.constant 1 : index
    %c0_68 = arith.constant 0 : index
    %c0_69 = arith.constant 0 : index
    %156 = vector.load %arg3[%c1_67, %c0_68, %c0_69] : memref<2x8x128xf32, #tpu.memory_space<vmem>>, vector<1x1x96xf32>
    %157 = vector.shape_cast %156 : vector<1x1x96xf32> to vector<1x96xf32>
    %c1_70 = arith.constant 1 : index
    %c1_71 = arith.constant 1 : index
    %c0_72 = arith.constant 0 : index
    %158 = vector.load %arg3[%c1_70, %c1_71, %c0_72] : memref<2x8x128xf32, #tpu.memory_space<vmem>>, vector<1x1x64xf32>
    %159 = vector.shape_cast %158 : vector<1x1x64xf32> to vector<1x64xf32>
    %c1_73 = arith.constant 1 : index
    %c2_74 = arith.constant 2 : index
    %c0_75 = arith.constant 0 : index
    %160 = vector.load %arg3[%c1_73, %c2_74, %c0_75] : memref<2x8x128xf32, #tpu.memory_space<vmem>>, vector<1x1x32xf32>
    %161 = vector.shape_cast %160 : vector<1x1x32xf32> to vector<1x32xf32>
    %c1_76 = arith.constant 1 : index
    %c3_77 = arith.constant 3 : index
    %c0_78 = arith.constant 0 : index
    %162 = vector.load %arg3[%c1_76, %c3_77, %c0_78] : memref<2x8x128xf32, #tpu.memory_space<vmem>>, vector<1x1x32xf32>
    %163 = vector.shape_cast %162 : vector<1x1x32xf32> to vector<1x32xf32>
    %c1_79 = arith.constant 1 : index
    %c4_80 = arith.constant 4 : index
    %c0_81 = arith.constant 0 : index
    %164 = vector.load %arg3[%c1_79, %c4_80, %c0_81] : memref<2x8x128xf32, #tpu.memory_space<vmem>>, vector<1x1x32xf32>
    %165 = vector.shape_cast %164 : vector<1x1x32xf32> to vector<1x32xf32>
    %c1_82 = arith.constant 1 : index
    %c5_83 = arith.constant 5 : index
    %c0_84 = arith.constant 0 : index
    %166 = vector.load %arg3[%c1_82, %c5_83, %c0_84] : memref<2x8x128xf32, #tpu.memory_space<vmem>>, vector<1x1x32xf32>
    %167 = vector.shape_cast %166 : vector<1x1x32xf32> to vector<1x32xf32>
    %c1_85 = arith.constant 1 : index
    %c6_86 = arith.constant 6 : index
    %c0_87 = arith.constant 0 : index
    %168 = vector.load %arg3[%c1_85, %c6_86, %c0_87] : memref<2x8x128xf32, #tpu.memory_space<vmem>>, vector<1x1x32xf32>
    %169 = vector.shape_cast %168 : vector<1x1x32xf32> to vector<1x32xf32>
    %c1_88 = arith.constant 1 : index
    %c7_89 = arith.constant 7 : index
    %c0_90 = arith.constant 0 : index
    %170 = vector.load %arg3[%c1_88, %c7_89, %c0_90] : memref<2x8x128xf32, #tpu.memory_space<vmem>>, vector<1x1x32xf32>
    %171 = vector.shape_cast %170 : vector<1x1x32xf32> to vector<1x32xf32>
    %cst_91 = arith.constant dense<0.000000e+00> : vector<16x96xf32>
    %172 = tpu.matmul %144, %149, %cst_91 {dimension_numbers = #tpu.dot_dimension_numbers<[1], [0], [0], [1], [0, 0, 1, 1], [], []>} : vector<16x32xf32>, vector<32x96xf32>, vector<16x96xf32> -> vector<16x96xf32>
    %173 = vector.broadcast %157 : vector<1x96xf32> to vector<16x96xf32>
    %174 = arith.addf %172, %173 : vector<16x96xf32>
    %175 = vector.extract_strided_slice %174 {offsets = [0, 0], sizes = [16, 8], strides = [1, 1]} : vector<16x96xf32> to vector<16x8xf32>
    %176 = vector.shape_cast %175 : vector<16x8xf32> to vector<2x8x8xf32>
    %177 = vector.extract_strided_slice %174 {offsets = [0, 32], sizes = [16, 8], strides = [1, 1]} : vector<16x96xf32> to vector<16x8xf32>
    %178 = vector.shape_cast %177 : vector<16x8xf32> to vector<2x8x8xf32>
    %179 = vector.extract_strided_slice %174 {offsets = [0, 64], sizes = [16, 8], strides = [1, 1]} : vector<16x96xf32> to vector<16x8xf32>
    %180 = vector.shape_cast %179 : vector<16x8xf32> to vector<2x8x8xf32>
    %181 = vector.extract_strided_slice %174 {offsets = [0, 8], sizes = [16, 8], strides = [1, 1]} : vector<16x96xf32> to vector<16x8xf32>
    %182 = vector.shape_cast %181 : vector<16x8xf32> to vector<2x8x8xf32>
    %183 = vector.extract_strided_slice %174 {offsets = [0, 40], sizes = [16, 8], strides = [1, 1]} : vector<16x96xf32> to vector<16x8xf32>
    %184 = vector.shape_cast %183 : vector<16x8xf32> to vector<2x8x8xf32>
    %185 = vector.extract_strided_slice %174 {offsets = [0, 72], sizes = [16, 8], strides = [1, 1]} : vector<16x96xf32> to vector<16x8xf32>
    %186 = vector.shape_cast %185 : vector<16x8xf32> to vector<2x8x8xf32>
    %187 = vector.extract_strided_slice %174 {offsets = [0, 16], sizes = [16, 8], strides = [1, 1]} : vector<16x96xf32> to vector<16x8xf32>
    %188 = vector.shape_cast %187 : vector<16x8xf32> to vector<2x8x8xf32>
    %189 = vector.extract_strided_slice %174 {offsets = [0, 48], sizes = [16, 8], strides = [1, 1]} : vector<16x96xf32> to vector<16x8xf32>
    %190 = vector.shape_cast %189 : vector<16x8xf32> to vector<2x8x8xf32>
    %191 = vector.extract_strided_slice %174 {offsets = [0, 80], sizes = [16, 8], strides = [1, 1]} : vector<16x96xf32> to vector<16x8xf32>
    %192 = vector.shape_cast %191 : vector<16x8xf32> to vector<2x8x8xf32>
    %193 = vector.extract_strided_slice %174 {offsets = [0, 24], sizes = [16, 8], strides = [1, 1]} : vector<16x96xf32> to vector<16x8xf32>
    %194 = vector.shape_cast %193 : vector<16x8xf32> to vector<2x8x8xf32>
    %195 = vector.extract_strided_slice %174 {offsets = [0, 56], sizes = [16, 8], strides = [1, 1]} : vector<16x96xf32> to vector<16x8xf32>
    %196 = vector.shape_cast %195 : vector<16x8xf32> to vector<2x8x8xf32>
    %197 = vector.extract_strided_slice %174 {offsets = [0, 88], sizes = [16, 8], strides = [1, 1]} : vector<16x96xf32> to vector<16x8xf32>
    %198 = vector.shape_cast %197 : vector<16x8xf32> to vector<2x8x8xf32>
    %199 = tpu.concatenate %176, %182, %188, %194 in 0 : vector<2x8x8xf32>, vector<2x8x8xf32>, vector<2x8x8xf32>, vector<2x8x8xf32> -> vector<8x8x8xf32>
    %200 = tpu.concatenate %178, %184, %190, %196 in 0 : vector<2x8x8xf32>, vector<2x8x8xf32>, vector<2x8x8xf32>, vector<2x8x8xf32> -> vector<8x8x8xf32>
    %201 = tpu.concatenate %180, %186, %192, %198 in 0 : vector<2x8x8xf32>, vector<2x8x8xf32>, vector<2x8x8xf32>, vector<2x8x8xf32> -> vector<8x8x8xf32>
    "tpu.trace_start"() <{level = 10 : i32, message = "nqd,nkd->nqk"}> : () -> ()
    %cst_92 = arith.constant dense<0.000000e+00> : vector<8x8x8xf32>
    %202 = tpu.matmul %199, %200, %cst_92 {dimension_numbers = #tpu.dot_dimension_numbers<[2], [2], [1], [1], [0, 0, 0, 1, 1, 1], [0], [0]>} : vector<8x8x8xf32>, vector<8x8x8xf32>, vector<8x8x8xf32> -> vector<8x8x8xf32>
    "tpu.trace_stop"() : () -> ()
    %cst_93 = arith.constant 0.353553385 : f32
    %203 = vector.broadcast %cst_93 : f32 to vector<8x8x8xf32>
    %204 = arith.mulf %202, %203 : vector<8x8x8xf32>
    %205 = vector.broadcast %10 : vector<8x1x8xf32> to vector<8x8x8xf32>
    %206 = arith.addf %204, %205 : vector<8x8x8xf32>
    %cst_94 = arith.constant dense<0xFF800000> : vector<8x8xf32>
    %207 = vector.multi_reduction <maximumf>, %206, %cst_94 [2] : vector<8x8x8xf32> to vector<8x8xf32>
    %208 = vector.shape_cast %207 : vector<8x8xf32> to vector<8x8x1xf32>
    %209 = vector.broadcast %208 : vector<8x8x1xf32> to vector<8x8x8xf32>
    %210 = arith.subf %206, %209 : vector<8x8x8xf32>
    %211 = math.exp %210 : vector<8x8x8xf32>
    %cst_95 = arith.constant dense<0.000000e+00> : vector<8x8xf32>
    %212 = vector.multi_reduction <add>, %211, %cst_95 [2] : vector<8x8x8xf32> to vector<8x8xf32>
    %213 = vector.shape_cast %212 : vector<8x8xf32> to vector<8x8x1xf32>
    %214 = tpu.reciprocal %213 {approx = true} : vector<8x8x1xf32> -> vector<8x8x1xf32>
    %215 = vector.broadcast %214 : vector<8x8x1xf32> to vector<8x8x8xf32>
    %216 = arith.mulf %211, %215 : vector<8x8x8xf32>
    "tpu.trace_start"() <{level = 10 : i32, message = "nqk,nkd->nqd"}> : () -> ()
    %cst_96 = arith.constant dense<0.000000e+00> : vector<8x8x8xf32>
    %217 = tpu.matmul %216, %201, %cst_96 {dimension_numbers = #tpu.dot_dimension_numbers<[2], [1], [1], [2], [0, 0, 0, 1, 1, 2], [0], [0]>} : vector<8x8x8xf32>, vector<8x8x8xf32>, vector<8x8x8xf32> -> vector<8x8x8xf32>
    "tpu.trace_stop"() : () -> ()
    %218 = vector.extract_strided_slice %217 {offsets = [0, 0, 0], sizes = [2, 8, 8], strides = [1, 1, 1]} : vector<8x8x8xf32> to vector<2x8x8xf32>
    %219 = vector.extract_strided_slice %217 {offsets = [2, 0, 0], sizes = [2, 8, 8], strides = [1, 1, 1]} : vector<8x8x8xf32> to vector<2x8x8xf32>
    %220 = vector.extract_strided_slice %217 {offsets = [4, 0, 0], sizes = [2, 8, 8], strides = [1, 1, 1]} : vector<8x8x8xf32> to vector<2x8x8xf32>
    %221 = vector.extract_strided_slice %217 {offsets = [6, 0, 0], sizes = [2, 8, 8], strides = [1, 1, 1]} : vector<8x8x8xf32> to vector<2x8x8xf32>
    %222 = tpu.concatenate %218, %219, %220, %221 in 2 : vector<2x8x8xf32>, vector<2x8x8xf32>, vector<2x8x8xf32>, vector<2x8x8xf32> -> vector<2x8x32xf32>
    %223 = vector.shape_cast %222 : vector<2x8x32xf32> to vector<16x32xf32>
    %cst_97 = arith.constant dense<0.000000e+00> : vector<16x32xf32>
    %224 = tpu.matmul %223, %153, %cst_97 {dimension_numbers = #tpu.dot_dimension_numbers<[1], [0], [0], [1], [0, 0, 1, 1], [], []>} : vector<16x32xf32>, vector<32x32xf32>, vector<16x32xf32> -> vector<16x32xf32>
    %225 = vector.broadcast %161 : vector<1x32xf32> to vector<16x32xf32>
    %226 = arith.addf %224, %225 : vector<16x32xf32>
    %227 = arith.addf %144, %226 : vector<16x32xf32>
    %cst_98 = arith.constant dense<0.000000e+00> : vector<16xf32>
    %228 = vector.multi_reduction <add>, %227, %cst_98 [1] : vector<16x32xf32> to vector<16xf32>
    %229 = vector.shape_cast %228 : vector<16xf32> to vector<16x1xf32>
    %cst_99 = arith.constant 3.200000e+01 : f32
    %230 = vector.broadcast %cst_99 : f32 to vector<16x1xf32>
    %231 = arith.divf %229, %230 : vector<16x1xf32>
    %232 = vector.broadcast %231 : vector<16x1xf32> to vector<16x32xf32>
    %233 = arith.subf %227, %232 : vector<16x32xf32>
    %234 = arith.mulf %233, %233 : vector<16x32xf32>
    %cst_100 = arith.constant dense<0.000000e+00> : vector<16xf32>
    %235 = vector.multi_reduction <add>, %234, %cst_100 [1] : vector<16x32xf32> to vector<16xf32>
    %236 = vector.shape_cast %235 : vector<16xf32> to vector<16x1xf32>
    %cst_101 = arith.constant 3.200000e+01 : f32
    %237 = vector.broadcast %cst_101 : f32 to vector<16x1xf32>
    %238 = arith.divf %236, %237 : vector<16x1xf32>
    %239 = vector.broadcast %231 : vector<16x1xf32> to vector<16x32xf32>
    %240 = arith.subf %227, %239 : vector<16x32xf32>
    %cst_102 = arith.constant 9.99999974E-6 : f32
    %241 = vector.broadcast %cst_102 : f32 to vector<16x1xf32>
    %242 = arith.addf %238, %241 : vector<16x1xf32>
    %243 = math.rsqrt %242 : vector<16x1xf32>
    %244 = vector.broadcast %243 : vector<16x1xf32> to vector<16x32xf32>
    %245 = arith.mulf %240, %244 : vector<16x32xf32>
    %246 = vector.broadcast %163 : vector<1x32xf32> to vector<16x32xf32>
    %247 = arith.mulf %245, %246 : vector<16x32xf32>
    %248 = vector.broadcast %165 : vector<1x32xf32> to vector<16x32xf32>
    %249 = arith.addf %247, %248 : vector<16x32xf32>
    %cst_103 = arith.constant dense<0.000000e+00> : vector<16x64xf32>
    %250 = tpu.matmul %249, %151, %cst_103 {dimension_numbers = #tpu.dot_dimension_numbers<[1], [0], [0], [1], [0, 0, 1, 1], [], []>} : vector<16x32xf32>, vector<32x64xf32>, vector<16x64xf32> -> vector<16x64xf32>
    %251 = vector.broadcast %159 : vector<1x64xf32> to vector<16x64xf32>
    %252 = arith.addf %250, %251 : vector<16x64xf32>
    %cst_104 = arith.constant 0.000000e+00 : f32
    %253 = vector.broadcast %cst_104 : f32 to vector<16x64xf32>
    %254 = arith.maximumf %252, %253 : vector<16x64xf32>
    %cst_105 = arith.constant dense<0.000000e+00> : vector<16x32xf32>
    %255 = tpu.matmul %254, %155, %cst_105 {dimension_numbers = #tpu.dot_dimension_numbers<[1], [0], [0], [1], [0, 0, 1, 1], [], []>} : vector<16x64xf32>, vector<64x32xf32>, vector<16x32xf32> -> vector<16x32xf32>
    %256 = vector.broadcast %167 : vector<1x32xf32> to vector<16x32xf32>
    %257 = arith.addf %255, %256 : vector<16x32xf32>
    %258 = arith.addf %249, %257 : vector<16x32xf32>
    %cst_106 = arith.constant dense<0.000000e+00> : vector<16xf32>
    %259 = vector.multi_reduction <add>, %258, %cst_106 [1] : vector<16x32xf32> to vector<16xf32>
    %260 = vector.shape_cast %259 : vector<16xf32> to vector<16x1xf32>
    %cst_107 = arith.constant 3.200000e+01 : f32
    %261 = vector.broadcast %cst_107 : f32 to vector<16x1xf32>
    %262 = arith.divf %260, %261 : vector<16x1xf32>
    %263 = vector.broadcast %262 : vector<16x1xf32> to vector<16x32xf32>
    %264 = arith.subf %258, %263 : vector<16x32xf32>
    %265 = arith.mulf %264, %264 : vector<16x32xf32>
    %cst_108 = arith.constant dense<0.000000e+00> : vector<16xf32>
    %266 = vector.multi_reduction <add>, %265, %cst_108 [1] : vector<16x32xf32> to vector<16xf32>
    %267 = vector.shape_cast %266 : vector<16xf32> to vector<16x1xf32>
    %cst_109 = arith.constant 3.200000e+01 : f32
    %268 = vector.broadcast %cst_109 : f32 to vector<16x1xf32>
    %269 = arith.divf %267, %268 : vector<16x1xf32>
    %270 = vector.broadcast %262 : vector<16x1xf32> to vector<16x32xf32>
    %271 = arith.subf %258, %270 : vector<16x32xf32>
    %cst_110 = arith.constant 9.99999974E-6 : f32
    %272 = vector.broadcast %cst_110 : f32 to vector<16x1xf32>
    %273 = arith.addf %269, %272 : vector<16x1xf32>
    %274 = math.rsqrt %273 : vector<16x1xf32>
    %275 = vector.broadcast %274 : vector<16x1xf32> to vector<16x32xf32>
    %276 = arith.mulf %271, %275 : vector<16x32xf32>
    %277 = vector.broadcast %169 : vector<1x32xf32> to vector<16x32xf32>
    %278 = arith.mulf %276, %277 : vector<16x32xf32>
    %279 = vector.broadcast %171 : vector<1x32xf32> to vector<16x32xf32>
    %280 = arith.addf %278, %279 : vector<16x32xf32>
    %c1_111 = arith.constant 1 : index
    %c0_112 = arith.constant 0 : index
    %c0_113 = arith.constant 0 : index
    %281 = vector.load %arg4[%c1_111, %c0_112, %c0_113] : memref<2x16x32xf32, #tpu.memory_space<vmem>>, vector<1x16x32xf32>
    %282 = vector.shape_cast %281 : vector<1x16x32xf32> to vector<16x32xf32>
    %283 = vector.shape_cast %280 : vector<16x32xf32> to vector<1x16x32xf32>
    tpu.vector_store %arg4[%c1_111, %c0_112, %c0_113], %283 {strides = array<i32>} : memref<2x16x32xf32, #tpu.memory_space<vmem>>, vector<1x16x32xf32>,
    return
  }
}

</mosaic_0001>

<llo_original>
// kernel: tpu_custom_call.1
$region0: #{tpu_custom_call.1}
  #allocation0 [shape = 'u32[]', space=smem, size = 0x4, offset = 0x4, fixed_abs, tag = 'smem constant byte address 0x4 - core index']
  #allocation1 [shape = 'u32[144,128]{1,0:T(1,128)}', space=vmem, size = 0x12000, scoped, tag = 'internal scratch']
  %s0 = inlined_call_operand.vmem [shape: f32[2,8,32], index: 0, kind: input, shape index: {}]
  %s1 = inlined_call_operand.vmem [shape: f32[2,32,192], index: 1, kind: input, shape index: {}]
  %s2 = inlined_call_operand.vmem [shape: f32[2,96,32], index: 2, kind: input, shape index: {}]
  %s3 = inlined_call_operand.vmem [shape: f32[2,8,128], index: 3, kind: input, shape index: {}]
  %s4 = inlined_call_operand.hbm [shape: f32[2,16,32], index: 4, kind: output, shape index: {}]
  %s5 = sld [smem:[#allocation0]]
  $region26: #{tpu_custom_call.1} parent=0
    _
  %s7 = ssub.s32 1, %s5
  %s8 = scalar_select 0, %s7, %s5
  $region1: #{tpu_custom_call.1} parent=0
    #allocation2 [shape = 'u8[16384]{0}', space=vmem, size = 0x4000, scoped, tag = 'output window, operand 0, single buffered']
    #allocation3 [shape = 's32[1]{0}', space=sflag, size = 0x4, scoped, tag = 'scoped memory for tpu_custom_call.1']
    %9 = vsyncpa [#allocation3], 0
    // Predicated region
    $region2: #{tpu_custom_call.1} parent=1 // pred_check
      _
    $region3: #{tpu_custom_call.1} parent=1 // pred_check_branch
      %11 = sbr.rel (0) target = $region5
    $region4: #{tpu_custom_call.1} parent=1 // pred_region
      _
    $region5: #{tpu_custom_call.1} parent=1 // pred_fallthru
      _
    // Predicated region
    $region6: #{tpu_custom_call.1} parent=1 // pred_check
      _
    $region7: #{tpu_custom_call.1} parent=1 // pred_check_branch
      %13 = sbr.rel (0) target = $region9
    $region8: #{tpu_custom_call.1} parent=1 // pred_region
      _
    $region9: #{tpu_custom_call.1} parent=1 // pred_fallthru
      _
    // Predicated region
    $region10: #{tpu_custom_call.1} parent=1 // pred_check
      _
    $region11: #{tpu_custom_call.1} parent=1 // pred_check_branch
      %15 = sbr.rel (0) target = $region13
    $region12: #{tpu_custom_call.1} parent=1 // pred_region
      _
    $region13: #{tpu_custom_call.1} parent=1 // pred_fallthru
      _
    // Predicated region
    $region14: #{tpu_custom_call.1} parent=1 // pred_check
      _
    $region15: #{tpu_custom_call.1} parent=1 // pred_check_branch
      %17 = sbr.rel (0) target = $region17
    $region16: #{tpu_custom_call.1} parent=1 // pred_region
      _
    $region17: #{tpu_custom_call.1} parent=1 // pred_fallthru
      _
    %v18 = vld [vmem:[%s0] sm:$0xff]
    %v19 = vld [vmem:[%s0 + $0x8] sm:$0xff]
    %vm20 = vcmask 261120
    %v21 = vsel %vm20, %v18, 0.0
    %22 = vadd.xlane.f32.xlu0 %v21
    %v23 = vpop.xlane.xlu0 %22
    %v24 = vsel %vm20, %v19, 0.0
    %25 = vadd.xlane.f32.xlu0 %v24
    %v26 = vpop.xlane.xlu0 %25
    %vm27 = vcmp.eq.f32.partialorder %v23, 0.0
    %vm28 = vcmp.eq.f32.partialorder %v26, 0.0
    %v29 = vsel %vm27, -1e+09, 0.0
    %v30 = vsel %vm28, -1e+09, 0.0
    %v31 = vld [vmem:[%s1] sm:$0xff]
    %v32 = vld [vmem:[%s1 + $0x10] sm:$0xff]
    %v33 = vld [vmem:[%s1 + $0x20] sm:$0xff]
    %v34 = vld [vmem:[%s1 + $0x30] sm:$0xff]
    %v35 = vld [vmem:[%s1 + $0x8] sm:$0xff]
    %v36 = vld [vmem:[%s1 + $0x18] sm:$0xff]
    %v37 = vld [vmem:[%s1 + $0x28] sm:$0xff]
    %v38 = vld [vmem:[%s1 + $0x38] sm:$0xff]
    %v39 = vld [vmem:[%s2] sm:$0xff]
    %v40 = vld [vmem:[%s2 + $0x8] sm:$0xff]
    %v41 = vld [vmem:[%s2 + $0x10] sm:$0xff]
    %v42 = vld [vmem:[%s2 + $0x18] sm:$0xff]
    %v43 = vld [vmem:[%s2 + $0x20] sm:$0xff]
    %v44 = vld [vmem:[%s2 + $0x28] sm:$0xff]
    %v45 = vld [vmem:[%s2 + $0x30] sm:$0xff]
    %v46 = vld [vmem:[%s2 + $0x38] sm:$0xff]
    %v47 = vld [vmem:[%s2 + $0x40] sm:$0xff]
    %v48 = vld [vmem:[%s2 + $0x48] sm:$0xff]
    %v49 = vld [vmem:[%s2 + $0x50] sm:$0xff]
    %v50 = vld [vmem:[%s2 + $0x58] sm:$0xff]
    %v51 = vld [vmem:[%s3] sm:$0x1]
    %v52 = vld [vmem:[%s3 + $0x1] sm:$0x1]
    %v53 = vld [vmem:[%s3 + $0x2] sm:$0x1]
    %v54 = vld [vmem:[%s3 + $0x3] sm:$0x1]
    %v55 = vld [vmem:[%s3 + $0x4] sm:$0x1]
    %v56 = vld [vmem:[%s3 + $0x5] sm:$0x1]
    %v57 = vld [vmem:[%s3 + $0x6] sm:$0x1]
    %v58 = vld [vmem:[%s3 + $0x7] sm:$0x1]
    %v59 = vlaneseq
    %v60 = vshrl.u32 %v59, 7
    %v61 = vsub.s32 0, %v60
    %v62 = vrot.slane %v51, %v61
    %v64 = vsel %vm20, %v18, 0
    %v67 = vsel %vm20, %v19, 0
    %69 = vmatprep.subr.mxu0 0.0
    %70 = vmatpush1.msra.mxu0 0.0
    %71 = vmatprep.subr.mxu0 0.0
    %72 = vmatpush1.msra.mxu0 0.0
    %73 = vmatprep.subr.mxu0 0.0
    %74 = vmatpush1.msra.mxu0 0.0
    %75 = vmatprep.subr.mxu0 0.0
    %76 = vmatpush1.msra.mxu0 0.0
    %77 = vmatprep.subr.mxu0 0.0
    %78 = vmatpush1.msra.mxu0 0.0
    %79 = vmatprep.subr.mxu0 0.0
    %80 = vmatpush1.msra.mxu0 0.0
    %81 = vmatprep.subr.mxu0 0.0
    %82 = vmatpush1.msra.mxu0 0.0
    %83 = vmatprep.subr.mxu0 0.0
    %84 = vmatpush1.msra.mxu0 0.0
    %85 = vmatprep.subr.mxu0 0.0
    %86 = vmatpush1.msra.mxu0 0.0
    %87 = vmatprep.subr.mxu0 0.0
    %88 = vmatpush1.msra.mxu0 0.0
    %89 = vmatprep.subr.mxu0 0.0
    %90 = vmatpush1.msra.mxu0 0.0
    %91 = vmatprep.subr.mxu0 0.0
    %92 = vmatpush1.msra.mxu0 0.0
    %93 = vmatprep.subr.mxu0 0.0
    %94 = vmatpush1.msra.mxu0 %v34
    %95 = vmatprep.subr.mxu0 0.0
    %96 = vmatpush1.msra.mxu0 %v33
    %97 = vmatprep.subr.mxu0 0.0
    %98 = vmatpush1.msra.mxu0 %v32
    %99 = vmatprep.subr.mxu0 0.0
    %100 = vmatpush1.msra.mxu0 %v31
    %101 = vmatprep.subr.mxu0 0.0
    %102 = vmatpush2.msra.mxu0 0.0
    %103 = vmatprep.subr.mxu0 0.0
    %104 = vmatpush2.msra.mxu0 0.0
    %105 = vmatprep.subr.mxu0 0.0
    %106 = vmatpush2.msra.mxu0 0.0
    %107 = vmatprep.subr.mxu0 0.0
    %108 = vmatpush2.msra.mxu0 0.0
    %109 = vmatprep.subr.mxu0 0.0
    %110 = vmatpush2.msra.mxu0 0.0
    %111 = vmatprep.subr.mxu0 0.0
    %112 = vmatpush2.msra.mxu0 0.0
    %113 = vmatprep.subr.mxu0 0.0
    %114 = vmatpush2.msra.mxu0 0.0
    %115 = vmatprep.subr.mxu0 0.0
    %116 = vmatpush2.msra.mxu0 0.0
    %117 = vmatprep.subr.mxu0 0.0
    %118 = vmatpush2.msra.mxu0 0.0
    %119 = vmatprep.subr.mxu0 0.0
    %120 = vmatpush2.msra.mxu0 0.0
    %121 = vmatprep.subr.mxu0 0.0
    %122 = vmatpush2.msra.mxu0 0.0
    %123 = vmatprep.subr.mxu0 0.0
    %124 = vmatpush2.msra.mxu0 0.0
    %125 = vmatprep.subr.mxu0 0.0
    %126 = vmatpush2.msra.mxu0 0.0
    %127 = vmatprep.subr.mxu0 0.0
    %128 = vmatpush2.msra.mxu0 0.0
    %129 = vmatprep.subr.mxu0 0.0
    %130 = vmatpush2.msra.mxu0 0.0
    %131 = vmatprep.subr.mxu0 0.0
    %132 = vmatpush2.msra.mxu0 0.0
    %133 = vmatprep.mubr.f32.mxu0 0.0
    %134 = vmatmul.mubr.f32.gmra.mxu0 %v64
    %v135 = vpop.f32.mrf.mxu0
    %v136 = vadd.f32 %v62, %v135
    %v137 = vpop.f32.mrf.mxu0
    %138 = vmatprep.mubr.f32.mxu0 0.0
    %139 = vmatmul.mubr.f32.gmra.mxu0 %v67
    %v140 = vpop.f32.mrf.mxu0
    %v141 = vadd.f32 %v62, %v140
    %v142 = vpop.f32.mrf.mxu0
    %143 = vdwg.mxu0
    %146 = vrot.lane.b32.xlu0 %v136, 120
    %v147 = vpop.permute.xlu0 %146
    %148 = vrot.lane.b32.xlu0 %v141, 120
    %v149 = vpop.permute.xlu0 %148
    %150 = vrot.lane.b32.xlu0 %v136, 112
    %v151 = vpop.permute.xlu0 %150
    %152 = vrot.lane.b32.xlu0 %v141, 112
    %v153 = vpop.permute.xlu0 %152
    %154 = vrot.lane.b32.xlu0 %v136, 104
    %v155 = vpop.permute.xlu0 %154
    %156 = vrot.lane.b32.xlu0 %v141, 104
    %v157 = vpop.permute.xlu0 %156
    %158 = vrot.lane.b32.xlu0 %v136, 96
    %v159 = vpop.permute.xlu0 %158
    %vm160 = vcmask 64512
    %v161 = vsel %vm160, %v136, 0
    %v163 = vsel %vm160, %v159, 0
    %165 = vmatprep.subr.mxu0 0.0
    %166 = vmatpush1.xpose.msra.mxu0 0.0
    %167 = vmatprep.subr.mxu0 0.0
    %168 = vmatpush1.xpose.msra.mxu0 0.0
    %169 = vmatprep.subr.mxu0 0.0
    %170 = vmatpush1.xpose.msra.mxu0 0.0
    %171 = vmatprep.subr.mxu0 0.0
    %172 = vmatpush1.xpose.msra.mxu0 0.0
    %173 = vmatprep.subr.mxu0 0.0
    %174 = vmatpush1.xpose.msra.mxu0 0.0
    %175 = vmatprep.subr.mxu0 0.0
    %176 = vmatpush1.xpose.msra.mxu0 0.0
    %177 = vmatprep.subr.mxu0 0.0
    %178 = vmatpush1.xpose.msra.mxu0 0.0
    %179 = vmatprep.subr.mxu0 0.0
    %180 = vmatpush1.xpose.msra.mxu0 0.0
    %181 = vmatprep.subr.mxu0 0.0
    %182 = vmatpush1.xpose.msra.mxu0 0.0
    %183 = vmatprep.subr.mxu0 0.0
    %184 = vmatpush1.xpose.msra.mxu0 0.0
    %185 = vmatprep.subr.mxu0 0.0
    %186 = vmatpush1.xpose.msra.mxu0 0.0
    %187 = vmatprep.subr.mxu0 0.0
    %188 = vmatpush1.xpose.msra.mxu0 0.0
    %189 = vmatprep.subr.mxu0 0.0
    %190 = vmatpush1.xpose.msra.mxu0 0.0
    %191 = vmatprep.subr.mxu0 0.0
    %192 = vmatpush1.xpose.msra.mxu0 0.0
    %193 = vmatprep.subr.mxu0 0.0
    %194 = vmatpush1.xpose.msra.mxu0 0.0
    %195 = vmatprep.subr.mxu0 0.0
    %196 = vmatpush1.xpose.msra.mxu0 %v163
    %197 = vmatprep.subr.mxu0 0.0
    %198 = vmatpush2.xpose.msra.mxu0 0.0
    %199 = vmatprep.subr.mxu0 0.0
    %200 = vmatpush2.xpose.msra.mxu0 0.0
    %201 = vmatprep.subr.mxu0 0.0
    %202 = vmatpush2.xpose.msra.mxu0 0.0
    %203 = vmatprep.subr.mxu0 0.0
    %204 = vmatpush2.xpose.msra.mxu0 0.0
    %205 = vmatprep.subr.mxu0 0.0
    %206 = vmatpush2.xpose.msra.mxu0 0.0
    %207 = vmatprep.subr.mxu0 0.0
    %208 = vmatpush2.xpose.msra.mxu0 0.0
    %209 = vmatprep.subr.mxu0 0.0
    %210 = vmatpush2.xpose.msra.mxu0 0.0
    %211 = vmatprep.subr.mxu0 0.0
    %212 = vmatpush2.xpose.msra.mxu0 0.0
    %213 = vmatprep.subr.mxu0 0.0
    %214 = vmatpush2.xpose.msra.mxu0 0.0
    %215 = vmatprep.subr.mxu0 0.0
    %216 = vmatpush2.xpose.msra.mxu0 0.0
    %217 = vmatprep.subr.mxu0 0.0
    %218 = vmatpush2.xpose.msra.mxu0 0.0
    %219 = vmatprep.subr.mxu0 0.0
    %220 = vmatpush2.xpose.msra.mxu0 0.0
    %221 = vmatprep.subr.mxu0 0.0
    %222 = vmatpush2.xpose.msra.mxu0 0.0
    %223 = vmatprep.subr.mxu0 0.0
    %224 = vmatpush2.xpose.msra.mxu0 0.0
    %225 = vmatprep.subr.mxu0 0.0
    %226 = vmatpush2.xpose.msra.mxu0 0.0
    %227 = vmatprep.subr.mxu0 0.0
    %228 = vmatpush2.xpose.msra.mxu0 0.0
    %229 = vmatprep.mubr.f32.mxu0 0.0
    %230 = vmatmul.mubr.f32.gmra.mxu0 %v161
    %v231 = vpop.f32.mrf.mxu0
    %v232 = vadd.f32 0.0, %v231
    %v233 = vpop.f32.mrf.mxu0
    %234 = vdwg.mxu0
    %235 = vrot.lane.b32.xlu0 %v141, 96
    %v236 = vpop.permute.xlu0 %235
    %v237 = vsel %vm160, %v141, 0
    %v239 = vsel %vm160, %v236, 0
    %241 = vmatprep.subr.mxu0 0.0
    %242 = vmatpush1.xpose.msra.mxu0 0.0
    %243 = vmatprep.subr.mxu0 0.0
    %244 = vmatpush1.xpose.msra.mxu0 0.0
    %245 = vmatprep.subr.mxu0 0.0
    %246 = vmatpush1.xpose.msra.mxu0 0.0
    %247 = vmatprep.subr.mxu0 0.0
    %248 = vmatpush1.xpose.msra.mxu0 0.0
    %249 = vmatprep.subr.mxu0 0.0
    %250 = vmatpush1.xpose.msra.mxu0 0.0
    %251 = vmatprep.subr.mxu0 0.0
    %252 = vmatpush1.xpose.msra.mxu0 0.0
    %253 = vmatprep.subr.mxu0 0.0
    %254 = vmatpush1.xpose.msra.mxu0 0.0
    %255 = vmatprep.subr.mxu0 0.0
    %256 = vmatpush1.xpose.msra.mxu0 0.0
    %257 = vmatprep.subr.mxu0 0.0
    %258 = vmatpush1.xpose.msra.mxu0 0.0
    %259 = vmatprep.subr.mxu0 0.0
    %260 = vmatpush1.xpose.msra.mxu0 0.0
    %261 = vmatprep.subr.mxu0 0.0
    %262 = vmatpush1.xpose.msra.mxu0 0.0
    %263 = vmatprep.subr.mxu0 0.0
    %264 = vmatpush1.xpose.msra.mxu0 0.0
    %265 = vmatprep.subr.mxu0 0.0
    %266 = vmatpush1.xpose.msra.mxu0 0.0
    %267 = vmatprep.subr.mxu0 0.0
    %268 = vmatpush1.xpose.msra.mxu0 0.0
    %269 = vmatprep.subr.mxu0 0.0
    %270 = vmatpush1.xpose.msra.mxu0 0.0
    %271 = vmatprep.subr.mxu0 0.0
    %272 = vmatpush1.xpose.msra.mxu0 %v239
    %273 = vmatprep.subr.mxu0 0.0
    %274 = vmatpush2.xpose.msra.mxu0 0.0
    %275 = vmatprep.subr.mxu0 0.0
    %276 = vmatpush2.xpose.msra.mxu0 0.0
    %277 = vmatprep.subr.mxu0 0.0
    %278 = vmatpush2.xpose.msra.mxu0 0.0
    %279 = vmatprep.subr.mxu0 0.0
    %280 = vmatpush2.xpose.msra.mxu0 0.0
    %281 = vmatprep.subr.mxu0 0.0
    %282 = vmatpush2.xpose.msra.mxu0 0.0
    %283 = vmatprep.subr.mxu0 0.0
    %284 = vmatpush2.xpose.msra.mxu0 0.0
    %285 = vmatprep.subr.mxu0 0.0
    %286 = vmatpush2.xpose.msra.mxu0 0.0
    %287 = vmatprep.subr.mxu0 0.0
    %288 = vmatpush2.xpose.msra.mxu0 0.0
    %289 = vmatprep.subr.mxu0 0.0
    %290 = vmatpush2.xpose.msra.mxu0 0.0
    %291 = vmatprep.subr.mxu0 0.0
    %292 = vmatpush2.xpose.msra.mxu0 0.0
    %293 = vmatprep.subr.mxu0 0.0
    %294 = vmatpush2.xpose.msra.mxu0 0.0
    %295 = vmatprep.subr.mxu0 0.0
    %296 = vmatpush2.xpose.msra.mxu0 0.0
    %297 = vmatprep.subr.mxu0 0.0
    %298 = vmatpush2.xpose.msra.mxu0 0.0
    %299 = vmatprep.subr.mxu0 0.0
    %300 = vmatpush2.xpose.msra.mxu0 0.0
    %301 = vmatprep.subr.mxu0 0.0
    %302 = vmatpush2.xpose.msra.mxu0 0.0
    %303 = vmatprep.subr.mxu0 0.0
    %304 = vmatpush2.xpose.msra.mxu0 0.0
    %305 = vmatprep.mubr.f32.mxu0 0.0
    %306 = vmatmul.mubr.f32.gmra.mxu0 %v237
    %v307 = vpop.f32.mrf.mxu0
    %v308 = vadd.f32 0.0, %v307
    %v309 = vpop.f32.mrf.mxu0
    %310 = vdwg.mxu0
    %311 = vrot.lane.b32.xlu0 %v147, 96
    %v312 = vpop.permute.xlu0 %311
    %v313 = vsel %vm160, %v147, 0
    %v315 = vsel %vm160, %v312, 0
    %317 = vmatprep.subr.mxu0 0.0
    %318 = vmatpush1.xpose.msra.mxu0 0.0
    %319 = vmatprep.subr.mxu0 0.0
    %320 = vmatpush1.xpose.msra.mxu0 0.0
    %321 = vmatprep.subr.mxu0 0.0
    %322 = vmatpush1.xpose.msra.mxu0 0.0
    %323 = vmatprep.subr.mxu0 0.0
    %324 = vmatpush1.xpose.msra.mxu0 0.0
    %325 = vmatprep.subr.mxu0 0.0
    %326 = vmatpush1.xpose.msra.mxu0 0.0
    %327 = vmatprep.subr.mxu0 0.0
    %328 = vmatpush1.xpose.msra.mxu0 0.0
    %329 = vmatprep.subr.mxu0 0.0
    %330 = vmatpush1.xpose.msra.mxu0 0.0
    %331 = vmatprep.subr.mxu0 0.0
    %332 = vmatpush1.xpose.msra.mxu0 0.0
    %333 = vmatprep.subr.mxu0 0.0
    %334 = vmatpush1.xpose.msra.mxu0 0.0
    %335 = vmatprep.subr.mxu0 0.0
    %336 = vmatpush1.xpose.msra.mxu0 0.0
    %337 = vmatprep.subr.mxu0 0.0
    %338 = vmatpush1.xpose.msra.mxu0 0.0
    %339 = vmatprep.subr.mxu0 0.0
    %340 = vmatpush1.xpose.msra.mxu0 0.0
    %341 = vmatprep.subr.mxu0 0.0
    %342 = vmatpush1.xpose.msra.mxu0 0.0
    %343 = vmatprep.subr.mxu0 0.0
    %344 = vmatpush1.xpose.msra.mxu0 0.0
    %345 = vmatprep.subr.mxu0 0.0
    %346 = vmatpush1.xpose.msra.mxu0 0.0
    %347 = vmatprep.subr.mxu0 0.0
    %348 = vmatpush1.xpose.msra.mxu0 %v315
    %349 = vmatprep.subr.mxu0 0.0
    %350 = vmatpush2.xpose.msra.mxu0 0.0
    %351 = vmatprep.subr.mxu0 0.0
    %352 = vmatpush2.xpose.msra.mxu0 0.0
    %353 = vmatprep.subr.mxu0 0.0
    %354 = vmatpush2.xpose.msra.mxu0 0.0
    %355 = vmatprep.subr.mxu0 0.0
    %356 = vmatpush2.xpose.msra.mxu0 0.0
    %357 = vmatprep.subr.mxu0 0.0
    %358 = vmatpush2.xpose.msra.mxu0 0.0
    %359 = vmatprep.subr.mxu0 0.0
    %360 = vmatpush2.xpose.msra.mxu0 0.0
    %361 = vmatprep.subr.mxu0 0.0
    %362 = vmatpush2.xpose.msra.mxu0 0.0
    %363 = vmatprep.subr.mxu0 0.0
    %364 = vmatpush2.xpose.msra.mxu0 0.0
    %365 = vmatprep.subr.mxu0 0.0
    %366 = vmatpush2.xpose.msra.mxu0 0.0
    %367 = vmatprep.subr.mxu0 0.0
    %368 = vmatpush2.xpose.msra.mxu0 0.0
    %369 = vmatprep.subr.mxu0 0.0
    %370 = vmatpush2.xpose.msra.mxu0 0.0
    %371 = vmatprep.subr.mxu0 0.0
    %372 = vmatpush2.xpose.msra.mxu0 0.0
    %373 = vmatprep.subr.mxu0 0.0
    %374 = vmatpush2.xpose.msra.mxu0 0.0
    %375 = vmatprep.subr.mxu0 0.0
    %376 = vmatpush2.xpose.msra.mxu0 0.0
    %377 = vmatprep.subr.mxu0 0.0
    %378 = vmatpush2.xpose.msra.mxu0 0.0
    %379 = vmatprep.subr.mxu0 0.0
    %380 = vmatpush2.xpose.msra.mxu0 0.0
    %381 = vmatprep.mubr.f32.mxu0 0.0
    %382 = vmatmul.mubr.f32.gmra.mxu0 %v313
    %v383 = vpop.f32.mrf.mxu0
    %v384 = vadd.f32 0.0, %v383
    %v385 = vpop.f32.mrf.mxu0
    %386 = vdwg.mxu0
    %387 = vrot.lane.b32.xlu0 %v149, 96
    %v388 = vpop.permute.xlu0 %387
    %v389 = vsel %vm160, %v149, 0
    %v391 = vsel %vm160, %v388, 0
    %393 = vmatprep.subr.mxu0 0.0
    %394 = vmatpush1.xpose.msra.mxu0 0.0
    %395 = vmatprep.subr.mxu0 0.0
    %396 = vmatpush1.xpose.msra.mxu0 0.0
    %397 = vmatprep.subr.mxu0 0.0
    %398 = vmatpush1.xpose.msra.mxu0 0.0
    %399 = vmatprep.subr.mxu0 0.0
    %400 = vmatpush1.xpose.msra.mxu0 0.0
    %401 = vmatprep.subr.mxu0 0.0
    %402 = vmatpush1.xpose.msra.mxu0 0.0
    %403 = vmatprep.subr.mxu0 0.0
    %404 = vmatpush1.xpose.msra.mxu0 0.0
    %405 = vmatprep.subr.mxu0 0.0
    %406 = vmatpush1.xpose.msra.mxu0 0.0
    %407 = vmatprep.subr.mxu0 0.0
    %408 = vmatpush1.xpose.msra.mxu0 0.0
    %409 = vmatprep.subr.mxu0 0.0
    %410 = vmatpush1.xpose.msra.mxu0 0.0
    %411 = vmatprep.subr.mxu0 0.0
    %412 = vmatpush1.xpose.msra.mxu0 0.0
    %413 = vmatprep.subr.mxu0 0.0
    %414 = vmatpush1.xpose.msra.mxu0 0.0
    %415 = vmatprep.subr.mxu0 0.0
    %416 = vmatpush1.xpose.msra.mxu0 0.0
    %417 = vmatprep.subr.mxu0 0.0
    %418 = vmatpush1.xpose.msra.mxu0 0.0
    %419 = vmatprep.subr.mxu0 0.0
    %420 = vmatpush1.xpose.msra.mxu0 0.0
    %421 = vmatprep.subr.mxu0 0.0
    %422 = vmatpush1.xpose.msra.mxu0 0.0
    %423 = vmatprep.subr.mxu0 0.0
    %424 = vmatpush1.xpose.msra.mxu0 %v391
    %425 = vmatprep.subr.mxu0 0.0
    %426 = vmatpush2.xpose.msra.mxu0 0.0
    %427 = vmatprep.subr.mxu0 0.0
    %428 = vmatpush2.xpose.msra.mxu0 0.0
    %429 = vmatprep.subr.mxu0 0.0
    %430 = vmatpush2.xpose.msra.mxu0 0.0
    %431 = vmatprep.subr.mxu0 0.0
    %432 = vmatpush2.xpose.msra.mxu0 0.0
    %433 = vmatprep.subr.mxu0 0.0
    %434 = vmatpush2.xpose.msra.mxu0 0.0
    %435 = vmatprep.subr.mxu0 0.0
    %436 = vmatpush2.xpose.msra.mxu0 0.0
    %437 = vmatprep.subr.mxu0 0.0
    %438 = vmatpush2.xpose.msra.mxu0 0.0
    %439 = vmatprep.subr.mxu0 0.0
    %440 = vmatpush2.xpose.msra.mxu0 0.0
    %441 = vmatprep.subr.mxu0 0.0
    %442 = vmatpush2.xpose.msra.mxu0 0.0
    %443 = vmatprep.subr.mxu0 0.0
    %444 = vmatpush2.xpose.msra.mxu0 0.0
    %445 = vmatprep.subr.mxu0 0.0
    %446 = vmatpush2.xpose.msra.mxu0 0.0
    %447 = vmatprep.subr.mxu0 0.0
    %448 = vmatpush2.xpose.msra.mxu0 0.0
    %449 = vmatprep.subr.mxu0 0.0
    %450 = vmatpush2.xpose.msra.mxu0 0.0
    %451 = vmatprep.subr.mxu0 0.0
    %452 = vmatpush2.xpose.msra.mxu0 0.0
    %453 = vmatprep.subr.mxu0 0.0
    %454 = vmatpush2.xpose.msra.mxu0 0.0
    %455 = vmatprep.subr.mxu0 0.0
    %456 = vmatpush2.xpose.msra.mxu0 0.0
    %457 = vmatprep.mubr.f32.mxu0 0.0
    %458 = vmatmul.mubr.f32.gmra.mxu0 %v389
    %v459 = vpop.f32.mrf.mxu0
    %v460 = vadd.f32 0.0, %v459
    %v461 = vpop.f32.mrf.mxu0
    %462 = vdwg.mxu0
    %463 = vrot.lane.b32.xlu0 %v151, 96
    %v464 = vpop.permute.xlu0 %463
    %v465 = vsel %vm160, %v151, 0
    %v467 = vsel %vm160, %v464, 0
    %469 = vmatprep.subr.mxu0 0.0
    %470 = vmatpush1.xpose.msra.mxu0 0.0
    %471 = vmatprep.subr.mxu0 0.0
    %472 = vmatpush1.xpose.msra.mxu0 0.0
    %473 = vmatprep.subr.mxu0 0.0
    %474 = vmatpush1.xpose.msra.mxu0 0.0
    %475 = vmatprep.subr.mxu0 0.0
    %476 = vmatpush1.xpose.msra.mxu0 0.0
    %477 = vmatprep.subr.mxu0 0.0
    %478 = vmatpush1.xpose.msra.mxu0 0.0
    %479 = vmatprep.subr.mxu0 0.0
    %480 = vmatpush1.xpose.msra.mxu0 0.0
    %481 = vmatprep.subr.mxu0 0.0
    %482 = vmatpush1.xpose.msra.mxu0 0.0
    %483 = vmatprep.subr.mxu0 0.0
    %484 = vmatpush1.xpose.msra.mxu0 0.0
    %485 = vmatprep.subr.mxu0 0.0
    %486 = vmatpush1.xpose.msra.mxu0 0.0
    %487 = vmatprep.subr.mxu0 0.0
    %488 = vmatpush1.xpose.msra.mxu0 0.0
    %489 = vmatprep.subr.mxu0 0.0
    %490 = vmatpush1.xpose.msra.mxu0 0.0
    %491 = vmatprep.subr.mxu0 0.0
    %492 = vmatpush1.xpose.msra.mxu0 0.0
    %493 = vmatprep.subr.mxu0 0.0
    %494 = vmatpush1.xpose.msra.mxu0 0.0
    %495 = vmatprep.subr.mxu0 0.0
    %496 = vmatpush1.xpose.msra.mxu0 0.0
    %497 = vmatprep.subr.mxu0 0.0
    %498 = vmatpush1.xpose.msra.mxu0 0.0
    %499 = vmatprep.subr.mxu0 0.0
    %500 = vmatpush1.xpose.msra.mxu0 %v467
    %501 = vmatprep.subr.mxu0 0.0
    %502 = vmatpush2.xpose.msra.mxu0 0.0
    %503 = vmatprep.subr.mxu0 0.0
    %504 = vmatpush2.xpose.msra.mxu0 0.0
    %505 = vmatprep.subr.mxu0 0.0
    %506 = vmatpush2.xpose.msra.mxu0 0.0
    %507 = vmatprep.subr.mxu0 0.0
    %508 = vmatpush2.xpose.msra.mxu0 0.0
    %509 = vmatprep.subr.mxu0 0.0
    %510 = vmatpush2.xpose.msra.mxu0 0.0
    %511 = vmatprep.subr.mxu0 0.0
    %512 = vmatpush2.xpose.msra.mxu0 0.0
    %513 = vmatprep.subr.mxu0 0.0
    %514 = vmatpush2.xpose.msra.mxu0 0.0
    %515 = vmatprep.subr.mxu0 0.0
    %516 = vmatpush2.xpose.msra.mxu0 0.0
    %517 = vmatprep.subr.mxu0 0.0
    %518 = vmatpush2.xpose.msra.mxu0 0.0
    %519 = vmatprep.subr.mxu0 0.0
    %520 = vmatpush2.xpose.msra.mxu0 0.0
    %521 = vmatprep.subr.mxu0 0.0
    %522 = vmatpush2.xpose.msra.mxu0 0.0
    %523 = vmatprep.subr.mxu0 0.0
    %524 = vmatpush2.xpose.msra.mxu0 0.0
    %525 = vmatprep.subr.mxu0 0.0
    %526 = vmatpush2.xpose.msra.mxu0 0.0
    %527 = vmatprep.subr.mxu0 0.0
    %528 = vmatpush2.xpose.msra.mxu0 0.0
    %529 = vmatprep.subr.mxu0 0.0
    %530 = vmatpush2.xpose.msra.mxu0 0.0
    %531 = vmatprep.subr.mxu0 0.0
    %532 = vmatpush2.xpose.msra.mxu0 0.0
    %533 = vmatprep.mubr.f32.mxu0 0.0
    %534 = vmatmul.mubr.f32.gmra.mxu0 %v465
    %v535 = vpop.f32.mrf.mxu0
    %v536 = vadd.f32 0.0, %v535
    %v537 = vpop.f32.mrf.mxu0
    %538 = vdwg.mxu0
    %539 = vrot.lane.b32.xlu0 %v153, 96
    %v540 = vpop.permute.xlu0 %539
    %v541 = vsel %vm160, %v153, 0
    %v543 = vsel %vm160, %v540, 0
    %545 = vmatprep.subr.mxu0 0.0
    %546 = vmatpush1.xpose.msra.mxu0 0.0
    %547 = vmatprep.subr.mxu0 0.0
    %548 = vmatpush1.xpose.msra.mxu0 0.0
    %549 = vmatprep.subr.mxu0 0.0
    %550 = vmatpush1.xpose.msra.mxu0 0.0
    %551 = vmatprep.subr.mxu0 0.0
    %552 = vmatpush1.xpose.msra.mxu0 0.0
    %553 = vmatprep.subr.mxu0 0.0
    %554 = vmatpush1.xpose.msra.mxu0 0.0
    %555 = vmatprep.subr.mxu0 0.0
    %556 = vmatpush1.xpose.msra.mxu0 0.0
    %557 = vmatprep.subr.mxu0 0.0
    %558 = vmatpush1.xpose.msra.mxu0 0.0
    %559 = vmatprep.subr.mxu0 0.0
    %560 = vmatpush1.xpose.msra.mxu0 0.0
    %561 = vmatprep.subr.mxu0 0.0
    %562 = vmatpush1.xpose.msra.mxu0 0.0
    %563 = vmatprep.subr.mxu0 0.0
    %564 = vmatpush1.xpose.msra.mxu0 0.0
    %565 = vmatprep.subr.mxu0 0.0
    %566 = vmatpush1.xpose.msra.mxu0 0.0
    %567 = vmatprep.subr.mxu0 0.0
    %568 = vmatpush1.xpose.msra.mxu0 0.0
    %569 = vmatprep.subr.mxu0 0.0
    %570 = vmatpush1.xpose.msra.mxu0 0.0
    %571 = vmatprep.subr.mxu0 0.0
    %572 = vmatpush1.xpose.msra.mxu0 0.0
    %573 = vmatprep.subr.mxu0 0.0
    %574 = vmatpush1.xpose.msra.mxu0 0.0
    %575 = vmatprep.subr.mxu0 0.0
    %576 = vmatpush1.xpose.msra.mxu0 %v543
    %577 = vmatprep.subr.mxu0 0.0
    %578 = vmatpush2.xpose.msra.mxu0 0.0
    %579 = vmatprep.subr.mxu0 0.0
    %580 = vmatpush2.xpose.msra.mxu0 0.0
    %581 = vmatprep.subr.mxu0 0.0
    %582 = vmatpush2.xpose.msra.mxu0 0.0
    %583 = vmatprep.subr.mxu0 0.0
    %584 = vmatpush2.xpose.msra.mxu0 0.0
    %585 = vmatprep.subr.mxu0 0.0
    %586 = vmatpush2.xpose.msra.mxu0 0.0
    %587 = vmatprep.subr.mxu0 0.0
    %588 = vmatpush2.xpose.msra.mxu0 0.0
    %589 = vmatprep.subr.mxu0 0.0
    %590 = vmatpush2.xpose.msra.mxu0 0.0
    %591 = vmatprep.subr.mxu0 0.0
    %592 = vmatpush2.xpose.msra.mxu0 0.0
    %593 = vmatprep.subr.mxu0 0.0
    %594 = vmatpush2.xpose.msra.mxu0 0.0
    %595 = vmatprep.subr.mxu0 0.0
    %596 = vmatpush2.xpose.msra.mxu0 0.0
    %597 = vmatprep.subr.mxu0 0.0
    %598 = vmatpush2.xpose.msra.mxu0 0.0
    %599 = vmatprep.subr.mxu0 0.0
    %600 = vmatpush2.xpose.msra.mxu0 0.0
    %601 = vmatprep.subr.mxu0 0.0
    %602 = vmatpush2.xpose.msra.mxu0 0.0
    %603 = vmatprep.subr.mxu0 0.0
    %604 = vmatpush2.xpose.msra.mxu0 0.0
    %605 = vmatprep.subr.mxu0 0.0
    %606 = vmatpush2.xpose.msra.mxu0 0.0
    %607 = vmatprep.subr.mxu0 0.0
    %608 = vmatpush2.xpose.msra.mxu0 0.0
    %609 = vmatprep.mubr.f32.mxu0 0.0
    %610 = vmatmul.mubr.f32.gmra.mxu0 %v541
    %v611 = vpop.f32.mrf.mxu0
    %v612 = vadd.f32 0.0, %v611
    %v613 = vpop.f32.mrf.mxu0
    %614 = vdwg.mxu0
    %615 = vrot.lane.b32.xlu0 %v155, 96
    %v616 = vpop.permute.xlu0 %615
    %v617 = vsel %vm160, %v155, 0
    %v619 = vsel %vm160, %v616, 0
    %621 = vmatprep.subr.mxu0 0.0
    %622 = vmatpush1.xpose.msra.mxu0 0.0
    %623 = vmatprep.subr.mxu0 0.0
    %624 = vmatpush1.xpose.msra.mxu0 0.0
    %625 = vmatprep.subr.mxu0 0.0
    %626 = vmatpush1.xpose.msra.mxu0 0.0
    %627 = vmatprep.subr.mxu0 0.0
    %628 = vmatpush1.xpose.msra.mxu0 0.0
    %629 = vmatprep.subr.mxu0 0.0
    %630 = vmatpush1.xpose.msra.mxu0 0.0
    %631 = vmatprep.subr.mxu0 0.0
    %632 = vmatpush1.xpose.msra.mxu0 0.0
    %633 = vmatprep.subr.mxu0 0.0
    %634 = vmatpush1.xpose.msra.mxu0 0.0
    %635 = vmatprep.subr.mxu0 0.0
    %636 = vmatpush1.xpose.msra.mxu0 0.0
    %637 = vmatprep.subr.mxu0 0.0
    %638 = vmatpush1.xpose.msra.mxu0 0.0
    %639 = vmatprep.subr.mxu0 0.0
    %640 = vmatpush1.xpose.msra.mxu0 0.0
    %641 = vmatprep.subr.mxu0 0.0
    %642 = vmatpush1.xpose.msra.mxu0 0.0
    %643 = vmatprep.subr.mxu0 0.0
    %644 = vmatpush1.xpose.msra.mxu0 0.0
    %645 = vmatprep.subr.mxu0 0.0
    %646 = vmatpush1.xpose.msra.mxu0 0.0
    %647 = vmatprep.subr.mxu0 0.0
    %648 = vmatpush1.xpose.msra.mxu0 0.0
    %649 = vmatprep.subr.mxu0 0.0
    %650 = vmatpush1.xpose.msra.mxu0 0.0
    %651 = vmatprep.subr.mxu0 0.0
    %652 = vmatpush1.xpose.msra.mxu0 %v619
    %653 = vmatprep.subr.mxu0 0.0
    %654 = vmatpush2.xpose.msra.mxu0 0.0
    %655 = vmatprep.subr.mxu0 0.0
    %656 = vmatpush2.xpose.msra.mxu0 0.0
    %657 = vmatprep.subr.mxu0 0.0
    %658 = vmatpush2.xpose.msra.mxu0 0.0
    %659 = vmatprep.subr.mxu0 0.0
    %660 = vmatpush2.xpose.msra.mxu0 0.0
    %661 = vmatprep.subr.mxu0 0.0
    %662 = vmatpush2.xpose.msra.mxu0 0.0
    %663 = vmatprep.subr.mxu0 0.0
    %664 = vmatpush2.xpose.msra.mxu0 0.0
    %665 = vmatprep.subr.mxu0 0.0
    %666 = vmatpush2.xpose.msra.mxu0 0.0
    %667 = vmatprep.subr.mxu0 0.0
    %668 = vmatpush2.xpose.msra.mxu0 0.0
    %669 = vmatprep.subr.mxu0 0.0
    %670 = vmatpush2.xpose.msra.mxu0 0.0
    %671 = vmatprep.subr.mxu0 0.0
    %672 = vmatpush2.xpose.msra.mxu0 0.0
    %673 = vmatprep.subr.mxu0 0.0
    %674 = vmatpush2.xpose.msra.mxu0 0.0
    %675 = vmatprep.subr.mxu0 0.0
    %676 = vmatpush2.xpose.msra.mxu0 0.0
    %677 = vmatprep.subr.mxu0 0.0
    %678 = vmatpush2.xpose.msra.mxu0 0.0
    %679 = vmatprep.subr.mxu0 0.0
    %680 = vmatpush2.xpose.msra.mxu0 0.0
    %681 = vmatprep.subr.mxu0 0.0
    %682 = vmatpush2.xpose.msra.mxu0 0.0
    %683 = vmatprep.subr.mxu0 0.0
    %684 = vmatpush2.xpose.msra.mxu0 0.0
    %685 = vmatprep.mubr.f32.mxu0 0.0
    %686 = vmatmul.mubr.f32.gmra.mxu0 %v617
    %v687 = vpop.f32.mrf.mxu0
    %v688 = vadd.f32 0.0, %v687
    %v689 = vpop.f32.mrf.mxu0
    %690 = vdwg.mxu0
    %691 = vrot.lane.b32.xlu0 %v157, 96
    %v692 = vpop.permute.xlu0 %691
    %v693 = vsel %vm160, %v157, 0
    %v695 = vsel %vm160, %v692, 0
    %697 = vmatprep.subr.mxu0 0.0
    %698 = vmatpush1.xpose.msra.mxu0 0.0
    %699 = vmatprep.subr.mxu0 0.0
    %700 = vmatpush1.xpose.msra.mxu0 0.0
    %701 = vmatprep.subr.mxu0 0.0
    %702 = vmatpush1.xpose.msra.mxu0 0.0
    %703 = vmatprep.subr.mxu0 0.0
    %704 = vmatpush1.xpose.msra.mxu0 0.0
    %705 = vmatprep.subr.mxu0 0.0
    %706 = vmatpush1.xpose.msra.mxu0 0.0
    %707 = vmatprep.subr.mxu0 0.0
    %708 = vmatpush1.xpose.msra.mxu0 0.0
    %709 = vmatprep.subr.mxu0 0.0
    %710 = vmatpush1.xpose.msra.mxu0 0.0
    %711 = vmatprep.subr.mxu0 0.0
    %712 = vmatpush1.xpose.msra.mxu0 0.0
    %713 = vmatprep.subr.mxu0 0.0
    %714 = vmatpush1.xpose.msra.mxu0 0.0
    %715 = vmatprep.subr.mxu0 0.0
    %716 = vmatpush1.xpose.msra.mxu0 0.0
    %717 = vmatprep.subr.mxu0 0.0
    %718 = vmatpush1.xpose.msra.mxu0 0.0
    %719 = vmatprep.subr.mxu0 0.0
    %720 = vmatpush1.xpose.msra.mxu0 0.0
    %721 = vmatprep.subr.mxu0 0.0
    %722 = vmatpush1.xpose.msra.mxu0 0.0
    %723 = vmatprep.subr.mxu0 0.0
    %724 = vmatpush1.xpose.msra.mxu0 0.0
    %725 = vmatprep.subr.mxu0 0.0
    %726 = vmatpush1.xpose.msra.mxu0 0.0
    %727 = vmatprep.subr.mxu0 0.0
    %728 = vmatpush1.xpose.msra.mxu0 %v695
    %729 = vmatprep.subr.mxu0 0.0
    %730 = vmatpush2.xpose.msra.mxu0 0.0
    %731 = vmatprep.subr.mxu0 0.0
    %732 = vmatpush2.xpose.msra.mxu0 0.0
    %733 = vmatprep.subr.mxu0 0.0
    %734 = vmatpush2.xpose.msra.mxu0 0.0
    %735 = vmatprep.subr.mxu0 0.0
    %736 = vmatpush2.xpose.msra.mxu0 0.0
    %737 = vmatprep.subr.mxu0 0.0
    %738 = vmatpush2.xpose.msra.mxu0 0.0
    %739 = vmatprep.subr.mxu0 0.0
    %740 = vmatpush2.xpose.msra.mxu0 0.0
    %741 = vmatprep.subr.mxu0 0.0
    %742 = vmatpush2.xpose.msra.mxu0 0.0
    %743 = vmatprep.subr.mxu0 0.0
    %744 = vmatpush2.xpose.msra.mxu0 0.0
    %745 = vmatprep.subr.mxu0 0.0
    %746 = vmatpush2.xpose.msra.mxu0 0.0
    %747 = vmatprep.subr.mxu0 0.0
    %748 = vmatpush2.xpose.msra.mxu0 0.0
    %749 = vmatprep.subr.mxu0 0.0
    %750 = vmatpush2.xpose.msra.mxu0 0.0
    %751 = vmatprep.subr.mxu0 0.0
    %752 = vmatpush2.xpose.msra.mxu0 0.0
    %753 = vmatprep.subr.mxu0 0.0
    %754 = vmatpush2.xpose.msra.mxu0 0.0
    %755 = vmatprep.subr.mxu0 0.0
    %756 = vmatpush2.xpose.msra.mxu0 0.0
    %757 = vmatprep.subr.mxu0 0.0
    %758 = vmatpush2.xpose.msra.mxu0 0.0
    %759 = vmatprep.subr.mxu0 0.0
    %760 = vmatpush2.xpose.msra.mxu0 0.0
    %761 = vmatprep.mubr.f32.mxu0 0.0
    %762 = vmatmul.mubr.f32.gmra.mxu0 %v693
    %v763 = vpop.f32.mrf.mxu0
    %v764 = vadd.f32 0.0, %v763
    %v765 = vpop.f32.mrf.mxu0
    %766 = vdwg.mxu0
    %v767 = vmul.f32 %v232, 0.35355338
    %v768 = vmul.f32 %v308, 0.35355338
    %v769 = vmul.f32 %v384, 0.35355338
    %v770 = vmul.f32 %v460, 0.35355338
    %v771 = vmul.f32 %v536, 0.35355338
    %v772 = vmul.f32 %v612, 0.35355338
    %v773 = vmul.f32 %v688, 0.35355338
    %v774 = vmul.f32 %v764, 0.35355338
    %v777 = vlaneseq
    %v778 = vand.u32 %v777, 127
    %v779 = vlaneseq
    %v780 = vshrl.u32 %v779, 7
    %v781 = vsub.s32 %v778, %v780
    %v782 = vrot.slane %v29, %v781
    %v783 = vlaneseq
    %v784 = vshrl.u32 %v783, 7
    %v785 = vsub.s32 %v778, %v784
    %v786 = vrot.slane %v30, %v785
    %vm787 = vcmask 1042434
    %v788 = vsel %vm787, %v782, %v782
    %vm789 = vcmask 1043459
    %v790 = vsel %vm789, %v782, %v788
    %vm791 = vcmask 1044484
    %v792 = vsel %vm791, %v782, %v790
    %vm793 = vcmask 1045509
    %v794 = vsel %vm793, %v782, %v792
    %vm795 = vcmask 1046534
    %v796 = vsel %vm795, %v782, %v794
    %vm797 = vcmask 1047559
    %v798 = vsel %vm797, %v782, %v796
    %v799 = vsel %vm787, %v786, %v786
    %v800 = vsel %vm789, %v786, %v799
    %v801 = vsel %vm791, %v786, %v800
    %v802 = vsel %vm793, %v786, %v801
    %v803 = vsel %vm795, %v786, %v802
    %v804 = vsel %vm797, %v786, %v803
    %v807 = vadd.f32 %v767, %v798
    %v808 = vadd.f32 %v768, %v804
    %v809 = vadd.f32 %v769, %v798
    %v810 = vadd.f32 %v770, %v804
    %v811 = vadd.f32 %v771, %v798
    %v812 = vadd.f32 %v772, %v804
    %v813 = vadd.f32 %v773, %v798
    %v814 = vadd.f32 %v774, %v804
    %v815 = vsel %vm160, %v807, -inf
    %816 = vmax.xlane.f32.xlu0 %v815
    %v817 = vpop.xlane.xlu0 %816
    %v818 = vsel %vm160, %v808, -inf
    %819 = vmax.xlane.f32.xlu0 %v818
    %v820 = vpop.xlane.xlu0 %819
    %v821 = vsel %vm160, %v809, -inf
    %822 = vmax.xlane.f32.xlu0 %v821
    %v823 = vpop.xlane.xlu0 %822
    %v824 = vsel %vm160, %v810, -inf
    %825 = vmax.xlane.f32.xlu0 %v824
    %v826 = vpop.xlane.xlu0 %825
    %v827 = vsel %vm160, %v811, -inf
    %828 = vmax.xlane.f32.xlu0 %v827
    %v829 = vpop.xlane.xlu0 %828
    %v830 = vsel %vm160, %v812, -inf
    %831 = vmax.xlane.f32.xlu0 %v830
    %v832 = vpop.xlane.xlu0 %831
    %v833 = vsel %vm160, %v813, -inf
    %834 = vmax.xlane.f32.xlu0 %v833
    %v835 = vpop.xlane.xlu0 %834
    %v836 = vsel %vm160, %v814, -inf
    %837 = vmax.xlane.f32.xlu0 %v836
    %v838 = vpop.xlane.xlu0 %837
    %v839 = vsub.f32 %v807, %v817
    %v840 = vsub.f32 %v808, %v820
    %v841 = vsub.f32 %v809, %v823
    %v842 = vsub.f32 %v810, %v826
    %v843 = vsub.f32 %v811, %v829
    %v844 = vsub.f32 %v812, %v832
    %v845 = vsub.f32 %v813, %v835
    %v846 = vsub.f32 %v814, %v838
    %v847 = vmul.f32 %v839, 1.442695
    %v848 = vpow.pop %v847
    %v849 = vmul.f32 %v840, 1.442695
    %v850 = vpow.pop %v849
    %v851 = vmul.f32 %v841, 1.442695
    %v852 = vpow.pop %v851
    %v853 = vmul.f32 %v842, 1.442695
    %v854 = vpow.pop %v853
    %v855 = vmul.f32 %v843, 1.442695
    %v856 = vpow.pop %v855
    %v857 = vmul.f32 %v844, 1.442695
    %v858 = vpow.pop %v857
    %v859 = vmul.f32 %v845, 1.442695
    %v860 = vpow.pop %v859
    %v861 = vmul.f32 %v846, 1.442695
    %v862 = vpow.pop %v861
    %v863 = vsel %vm160, %v848, 0.0
    %864 = vadd.xlane.f32.xlu0 %v863
    %v865 = vpop.xlane.xlu0 %864
    %v866 = vsel %vm160, %v850, 0.0
    %867 = vadd.xlane.f32.xlu0 %v866
    %v868 = vpop.xlane.xlu0 %867
    %v869 = vsel %vm160, %v852, 0.0
    %870 = vadd.xlane.f32.xlu0 %v869
    %v871 = vpop.xlane.xlu0 %870
    %v872 = vsel %vm160, %v854, 0.0
    %873 = vadd.xlane.f32.xlu0 %v872
    %v874 = vpop.xlane.xlu0 %873
    %v875 = vsel %vm160, %v856, 0.0
    %876 = vadd.xlane.f32.xlu0 %v875
    %v877 = vpop.xlane.xlu0 %876
    %v878 = vsel %vm160, %v858, 0.0
    %879 = vadd.xlane.f32.xlu0 %v878
    %v880 = vpop.xlane.xlu0 %879
    %v881 = vsel %vm160, %v860, 0.0
    %882 = vadd.xlane.f32.xlu0 %v881
    %v883 = vpop.xlane.xlu0 %882
    %v884 = vsel %vm160, %v862, 0.0
    %885 = vadd.xlane.f32.xlu0 %v884
    %v886 = vpop.xlane.xlu0 %885
    %v887 = vrcp.pop %v865
    %v888 = vrcp.pop %v868
    %v889 = vrcp.pop %v871
    %v890 = vrcp.pop %v874
    %v891 = vrcp.pop %v877
    %v892 = vrcp.pop %v880
    %v893 = vrcp.pop %v883
    %v894 = vrcp.pop %v886
    %v895 = vmul.f32 %v848, %v887
    %v896 = vmul.f32 %v850, %v888
    %v897 = vmul.f32 %v852, %v889
    %v898 = vmul.f32 %v854, %v890
    %v899 = vmul.f32 %v856, %v891
    %v900 = vmul.f32 %v858, %v892
    %v901 = vmul.f32 %v860, %v893
    %v902 = vmul.f32 %v862, %v894
    %903 = vrot.lane.b32.xlu0 %v136, 64
    %v904 = vpop.permute.xlu0 %903
    %v907 = vsel %vm160, %v895, 0
    %909 = vmatprep.subr.mxu0 0.0
    %910 = vmatpush1.msra.mxu0 0.0
    %911 = vmatprep.subr.mxu0 0.0
    %912 = vmatpush1.msra.mxu0 0.0
    %913 = vmatprep.subr.mxu0 0.0
    %914 = vmatpush1.msra.mxu0 0.0
    %915 = vmatprep.subr.mxu0 0.0
    %916 = vmatpush1.msra.mxu0 0.0
    %917 = vmatprep.subr.mxu0 0.0
    %918 = vmatpush1.msra.mxu0 0.0
    %919 = vmatprep.subr.mxu0 0.0
    %920 = vmatpush1.msra.mxu0 0.0
    %921 = vmatprep.subr.mxu0 0.0
    %922 = vmatpush1.msra.mxu0 0.0
    %923 = vmatprep.subr.mxu0 0.0
    %924 = vmatpush1.msra.mxu0 0.0
    %925 = vmatprep.subr.mxu0 0.0
    %926 = vmatpush1.msra.mxu0 0.0
    %927 = vmatprep.subr.mxu0 0.0
    %928 = vmatpush1.msra.mxu0 0.0
    %929 = vmatprep.subr.mxu0 0.0
    %930 = vmatpush1.msra.mxu0 0.0
    %931 = vmatprep.subr.mxu0 0.0
    %932 = vmatpush1.msra.mxu0 0.0
    %933 = vmatprep.subr.mxu0 0.0
    %934 = vmatpush1.msra.mxu0 0.0
    %935 = vmatprep.subr.mxu0 0.0
    %936 = vmatpush1.msra.mxu0 0.0
    %937 = vmatprep.subr.mxu0 0.0
    %938 = vmatpush1.msra.mxu0 0.0
    %939 = vmatprep.subr.mxu0 0.0
    %940 = vmatpush1.msra.mxu0 %v904
    %941 = vmatprep.subr.mxu0 0.0
    %942 = vmatpush2.msra.mxu0 0.0
    %943 = vmatprep.subr.mxu0 0.0
    %944 = vmatpush2.msra.mxu0 0.0
    %945 = vmatprep.subr.mxu0 0.0
    %946 = vmatpush2.msra.mxu0 0.0
    %947 = vmatprep.subr.mxu0 0.0
    %948 = vmatpush2.msra.mxu0 0.0
    %949 = vmatprep.subr.mxu0 0.0
    %950 = vmatpush2.msra.mxu0 0.0
    %951 = vmatprep.subr.mxu0 0.0
    %952 = vmatpush2.msra.mxu0 0.0
    %953 = vmatprep.subr.mxu0 0.0
    %954 = vmatpush2.msra.mxu0 0.0
    %955 = vmatprep.subr.mxu0 0.0
    %956 = vmatpush2.msra.mxu0 0.0
    %957 = vmatprep.subr.mxu0 0.0
    %958 = vmatpush2.msra.mxu0 0.0
    %959 = vmatprep.subr.mxu0 0.0
    %960 = vmatpush2.msra.mxu0 0.0
    %961 = vmatprep.subr.mxu0 0.0
    %962 = vmatpush2.msra.mxu0 0.0
    %963 = vmatprep.subr.mxu0 0.0
    %964 = vmatpush2.msra.mxu0 0.0
    %965 = vmatprep.subr.mxu0 0.0
    %966 = vmatpush2.msra.mxu0 0.0
    %967 = vmatprep.subr.mxu0 0.0
    %968 = vmatpush2.msra.mxu0 0.0
    %969 = vmatprep.subr.mxu0 0.0
    %970 = vmatpush2.msra.mxu0 0.0
    %971 = vmatprep.subr.mxu0 0.0
    %972 = vmatpush2.msra.mxu0 0.0
    %973 = vmatprep.mubr.f32.mxu0 0.0
    %974 = vmatmul.mubr.f32.gmra.mxu0 %v907
    %v975 = vpop.f32.mrf.mxu0
    %v976 = vadd.f32 0.0, %v975
    %v977 = vpop.f32.mrf.mxu0
    %978 = vdwg.mxu0
    %979 = vrot.lane.b32.xlu0 %v141, 64
    %v980 = vpop.permute.xlu0 %979
    %v983 = vsel %vm160, %v896, 0
    %985 = vmatprep.subr.mxu0 0.0
    %986 = vmatpush1.msra.mxu0 0.0
    %987 = vmatprep.subr.mxu0 0.0
    %988 = vmatpush1.msra.mxu0 0.0
    %989 = vmatprep.subr.mxu0 0.0
    %990 = vmatpush1.msra.mxu0 0.0
    %991 = vmatprep.subr.mxu0 0.0
    %992 = vmatpush1.msra.mxu0 0.0
    %993 = vmatprep.subr.mxu0 0.0
    %994 = vmatpush1.msra.mxu0 0.0
    %995 = vmatprep.subr.mxu0 0.0
    %996 = vmatpush1.msra.mxu0 0.0
    %997 = vmatprep.subr.mxu0 0.0
    %998 = vmatpush1.msra.mxu0 0.0
    %999 = vmatprep.subr.mxu0 0.0
    %1000 = vmatpush1.msra.mxu0 0.0
    %1001 = vmatprep.subr.mxu0 0.0
    %1002 = vmatpush1.msra.mxu0 0.0
    %1003 = vmatprep.subr.mxu0 0.0
    %1004 = vmatpush1.msra.mxu0 0.0
    %1005 = vmatprep.subr.mxu0 0.0
    %1006 = vmatpush1.msra.mxu0 0.0
    %1007 = vmatprep.subr.mxu0 0.0
    %1008 = vmatpush1.msra.mxu0 0.0
    %1009 = vmatprep.subr.mxu0 0.0
    %1010 = vmatpush1.msra.mxu0 0.0
    %1011 = vmatprep.subr.mxu0 0.0
    %1012 = vmatpush1.msra.mxu0 0.0
    %1013 = vmatprep.subr.mxu0 0.0
    %1014 = vmatpush1.msra.mxu0 0.0
    %1015 = vmatprep.subr.mxu0 0.0
    %1016 = vmatpush1.msra.mxu0 %v980
    %1017 = vmatprep.subr.mxu0 0.0
    %1018 = vmatpush2.msra.mxu0 0.0
    %1019 = vmatprep.subr.mxu0 0.0
    %1020 = vmatpush2.msra.mxu0 0.0
    %1021 = vmatprep.subr.mxu0 0.0
    %1022 = vmatpush2.msra.mxu0 0.0
    %1023 = vmatprep.subr.mxu0 0.0
    %1024 = vmatpush2.msra.mxu0 0.0
    %1025 = vmatprep.subr.mxu0 0.0
    %1026 = vmatpush2.msra.mxu0 0.0
    %1027 = vmatprep.subr.mxu0 0.0
    %1028 = vmatpush2.msra.mxu0 0.0
    %1029 = vmatprep.subr.mxu0 0.0
    %1030 = vmatpush2.msra.mxu0 0.0
    %1031 = vmatprep.subr.mxu0 0.0
    %1032 = vmatpush2.msra.mxu0 0.0
    %1033 = vmatprep.subr.mxu0 0.0
    %1034 = vmatpush2.msra.mxu0 0.0
    %1035 = vmatprep.subr.mxu0 0.0
    %1036 = vmatpush2.msra.mxu0 0.0
    %1037 = vmatprep.subr.mxu0 0.0
    %1038 = vmatpush2.msra.mxu0 0.0
    %1039 = vmatprep.subr.mxu0 0.0
    %1040 = vmatpush2.msra.mxu0 0.0
    %1041 = vmatprep.subr.mxu0 0.0
    %1042 = vmatpush2.msra.mxu0 0.0
    %1043 = vmatprep.subr.mxu0 0.0
    %1044 = vmatpush2.msra.mxu0 0.0
    %1045 = vmatprep.subr.mxu0 0.0
    %1046 = vmatpush2.msra.mxu0 0.0
    %1047 = vmatprep.subr.mxu0 0.0
    %1048 = vmatpush2.msra.mxu0 0.0
    %1049 = vmatprep.mubr.f32.mxu0 0.0
    %1050 = vmatmul.mubr.f32.gmra.mxu0 %v983
    %v1051 = vpop.f32.mrf.mxu0
    %v1052 = vadd.f32 0.0, %v1051
    %v1053 = vpop.f32.mrf.mxu0
    %1054 = vdwg.mxu0
    %1055 = vrot.lane.b32.xlu0 %v147, 64
    %v1056 = vpop.permute.xlu0 %1055
    %v1059 = vsel %vm160, %v897, 0
    %1061 = vmatprep.subr.mxu0 0.0
    %1062 = vmatpush1.msra.mxu0 0.0
    %1063 = vmatprep.subr.mxu0 0.0
    %1064 = vmatpush1.msra.mxu0 0.0
    %1065 = vmatprep.subr.mxu0 0.0
    %1066 = vmatpush1.msra.mxu0 0.0
    %1067 = vmatprep.subr.mxu0 0.0
    %1068 = vmatpush1.msra.mxu0 0.0
    %1069 = vmatprep.subr.mxu0 0.0
    %1070 = vmatpush1.msra.mxu0 0.0
    %1071 = vmatprep.subr.mxu0 0.0
    %1072 = vmatpush1.msra.mxu0 0.0
    %1073 = vmatprep.subr.mxu0 0.0
    %1074 = vmatpush1.msra.mxu0 0.0
    %1075 = vmatprep.subr.mxu0 0.0
    %1076 = vmatpush1.msra.mxu0 0.0
    %1077 = vmatprep.subr.mxu0 0.0
    %1078 = vmatpush1.msra.mxu0 0.0
    %1079 = vmatprep.subr.mxu0 0.0
    %1080 = vmatpush1.msra.mxu0 0.0
    %1081 = vmatprep.subr.mxu0 0.0
    %1082 = vmatpush1.msra.mxu0 0.0
    %1083 = vmatprep.subr.mxu0 0.0
    %1084 = vmatpush1.msra.mxu0 0.0
    %1085 = vmatprep.subr.mxu0 0.0
    %1086 = vmatpush1.msra.mxu0 0.0
    %1087 = vmatprep.subr.mxu0 0.0
    %1088 = vmatpush1.msra.mxu0 0.0
    %1089 = vmatprep.subr.mxu0 0.0
    %1090 = vmatpush1.msra.mxu0 0.0
    %1091 = vmatprep.subr.mxu0 0.0
    %1092 = vmatpush1.msra.mxu0 %v1056
    %1093 = vmatprep.subr.mxu0 0.0
    %1094 = vmatpush2.msra.mxu0 0.0
    %1095 = vmatprep.subr.mxu0 0.0
    %1096 = vmatpush2.msra.mxu0 0.0
    %1097 = vmatprep.subr.mxu0 0.0
    %1098 = vmatpush2.msra.mxu0 0.0
    %1099 = vmatprep.subr.mxu0 0.0
    %1100 = vmatpush2.msra.mxu0 0.0
    %1101 = vmatprep.subr.mxu0 0.0
    %1102 = vmatpush2.msra.mxu0 0.0
    %1103 = vmatprep.subr.mxu0 0.0
    %1104 = vmatpush2.msra.mxu0 0.0
    %1105 = vmatprep.subr.mxu0 0.0
    %1106 = vmatpush2.msra.mxu0 0.0
    %1107 = vmatprep.subr.mxu0 0.0
    %1108 = vmatpush2.msra.mxu0 0.0
    %1109 = vmatprep.subr.mxu0 0.0
    %1110 = vmatpush2.msra.mxu0 0.0
    %1111 = vmatprep.subr.mxu0 0.0
    %1112 = vmatpush2.msra.mxu0 0.0
    %1113 = vmatprep.subr.mxu0 0.0
    %1114 = vmatpush2.msra.mxu0 0.0
    %1115 = vmatprep.subr.mxu0 0.0
    %1116 = vmatpush2.msra.mxu0 0.0
    %1117 = vmatprep.subr.mxu0 0.0
    %1118 = vmatpush2.msra.mxu0 0.0
    %1119 = vmatprep.subr.mxu0 0.0
    %1120 = vmatpush2.msra.mxu0 0.0
    %1121 = vmatprep.subr.mxu0 0.0
    %1122 = vmatpush2.msra.mxu0 0.0
    %1123 = vmatprep.subr.mxu0 0.0
    %1124 = vmatpush2.msra.mxu0 0.0
    %1125 = vmatprep.mubr.f32.mxu0 0.0
    %1126 = vmatmul.mubr.f32.gmra.mxu0 %v1059
    %v1127 = vpop.f32.mrf.mxu0
    %v1128 = vadd.f32 0.0, %v1127
    %v1129 = vpop.f32.mrf.mxu0
    %1130 = vdwg.mxu0
    %1131 = vrot.lane.b32.xlu0 %v149, 64
    %v1132 = vpop.permute.xlu0 %1131
    %v1135 = vsel %vm160, %v898, 0
    %1137 = vmatprep.subr.mxu0 0.0
    %1138 = vmatpush1.msra.mxu0 0.0
    %1139 = vmatprep.subr.mxu0 0.0
    %1140 = vmatpush1.msra.mxu0 0.0
    %1141 = vmatprep.subr.mxu0 0.0
    %1142 = vmatpush1.msra.mxu0 0.0
    %1143 = vmatprep.subr.mxu0 0.0
    %1144 = vmatpush1.msra.mxu0 0.0
    %1145 = vmatprep.subr.mxu0 0.0
    %1146 = vmatpush1.msra.mxu0 0.0
    %1147 = vmatprep.subr.mxu0 0.0
    %1148 = vmatpush1.msra.mxu0 0.0
    %1149 = vmatprep.subr.mxu0 0.0
    %1150 = vmatpush1.msra.mxu0 0.0
    %1151 = vmatprep.subr.mxu0 0.0
    %1152 = vmatpush1.msra.mxu0 0.0
    %1153 = vmatprep.subr.mxu0 0.0
    %1154 = vmatpush1.msra.mxu0 0.0
    %1155 = vmatprep.subr.mxu0 0.0
    %1156 = vmatpush1.msra.mxu0 0.0
    %1157 = vmatprep.subr.mxu0 0.0
    %1158 = vmatpush1.msra.mxu0 0.0
    %1159 = vmatprep.subr.mxu0 0.0
    %1160 = vmatpush1.msra.mxu0 0.0
    %1161 = vmatprep.subr.mxu0 0.0
    %1162 = vmatpush1.msra.mxu0 0.0
    %1163 = vmatprep.subr.mxu0 0.0
    %1164 = vmatpush1.msra.mxu0 0.0
    %1165 = vmatprep.subr.mxu0 0.0
    %1166 = vmatpush1.msra.mxu0 0.0
    %1167 = vmatprep.subr.mxu0 0.0
    %1168 = vmatpush1.msra.mxu0 %v1132
    %1169 = vmatprep.subr.mxu0 0.0
    %1170 = vmatpush2.msra.mxu0 0.0
    %1171 = vmatprep.subr.mxu0 0.0
    %1172 = vmatpush2.msra.mxu0 0.0
    %1173 = vmatprep.subr.mxu0 0.0
    %1174 = vmatpush2.msra.mxu0 0.0
    %1175 = vmatprep.subr.mxu0 0.0
    %1176 = vmatpush2.msra.mxu0 0.0
    %1177 = vmatprep.subr.mxu0 0.0
    %1178 = vmatpush2.msra.mxu0 0.0
    %1179 = vmatprep.subr.mxu0 0.0
    %1180 = vmatpush2.msra.mxu0 0.0
    %1181 = vmatprep.subr.mxu0 0.0
    %1182 = vmatpush2.msra.mxu0 0.0
    %1183 = vmatprep.subr.mxu0 0.0
    %1184 = vmatpush2.msra.mxu0 0.0
    %1185 = vmatprep.subr.mxu0 0.0
    %1186 = vmatpush2.msra.mxu0 0.0
    %1187 = vmatprep.subr.mxu0 0.0
    %1188 = vmatpush2.msra.mxu0 0.0
    %1189 = vmatprep.subr.mxu0 0.0
    %1190 = vmatpush2.msra.mxu0 0.0
    %1191 = vmatprep.subr.mxu0 0.0
    %1192 = vmatpush2.msra.mxu0 0.0
    %1193 = vmatprep.subr.mxu0 0.0
    %1194 = vmatpush2.msra.mxu0 0.0
    %1195 = vmatprep.subr.mxu0 0.0
    %1196 = vmatpush2.msra.mxu0 0.0
    %1197 = vmatprep.subr.mxu0 0.0
    %1198 = vmatpush2.msra.mxu0 0.0
    %1199 = vmatprep.subr.mxu0 0.0
    %1200 = vmatpush2.msra.mxu0 0.0
    %1201 = vmatprep.mubr.f32.mxu0 0.0
    %1202 = vmatmul.mubr.f32.gmra.mxu0 %v1135
    %v1203 = vpop.f32.mrf.mxu0
    %v1204 = vadd.f32 0.0, %v1203
    %v1205 = vpop.f32.mrf.mxu0
    %1206 = vdwg.mxu0
    %1207 = vrot.lane.b32.xlu0 %v151, 64
    %v1208 = vpop.permute.xlu0 %1207
    %v1211 = vsel %vm160, %v899, 0
    %1213 = vmatprep.subr.mxu0 0.0
    %1214 = vmatpush1.msra.mxu0 0.0
    %1215 = vmatprep.subr.mxu0 0.0
    %1216 = vmatpush1.msra.mxu0 0.0
    %1217 = vmatprep.subr.mxu0 0.0
    %1218 = vmatpush1.msra.mxu0 0.0
    %1219 = vmatprep.subr.mxu0 0.0
    %1220 = vmatpush1.msra.mxu0 0.0
    %1221 = vmatprep.subr.mxu0 0.0
    %1222 = vmatpush1.msra.mxu0 0.0
    %1223 = vmatprep.subr.mxu0 0.0
    %1224 = vmatpush1.msra.mxu0 0.0
    %1225 = vmatprep.subr.mxu0 0.0
    %1226 = vmatpush1.msra.mxu0 0.0
    %1227 = vmatprep.subr.mxu0 0.0
    %1228 = vmatpush1.msra.mxu0 0.0
    %1229 = vmatprep.subr.mxu0 0.0
    %1230 = vmatpush1.msra.mxu0 0.0
    %1231 = vmatprep.subr.mxu0 0.0
    %1232 = vmatpush1.msra.mxu0 0.0
    %1233 = vmatprep.subr.mxu0 0.0
    %1234 = vmatpush1.msra.mxu0 0.0
    %1235 = vmatprep.subr.mxu0 0.0
    %1236 = vmatpush1.msra.mxu0 0.0
    %1237 = vmatprep.subr.mxu0 0.0
    %1238 = vmatpush1.msra.mxu0 0.0
    %1239 = vmatprep.subr.mxu0 0.0
    %1240 = vmatpush1.msra.mxu0 0.0
    %1241 = vmatprep.subr.mxu0 0.0
    %1242 = vmatpush1.msra.mxu0 0.0
    %1243 = vmatprep.subr.mxu0 0.0
    %1244 = vmatpush1.msra.mxu0 %v1208
    %1245 = vmatprep.subr.mxu0 0.0
    %1246 = vmatpush2.msra.mxu0 0.0
    %1247 = vmatprep.subr.mxu0 0.0
    %1248 = vmatpush2.msra.mxu0 0.0
    %1249 = vmatprep.subr.mxu0 0.0
    %1250 = vmatpush2.msra.mxu0 0.0
    %1251 = vmatprep.subr.mxu0 0.0
    %1252 = vmatpush2.msra.mxu0 0.0
    %1253 = vmatprep.subr.mxu0 0.0
    %1254 = vmatpush2.msra.mxu0 0.0
    %1255 = vmatprep.subr.mxu0 0.0
    %1256 = vmatpush2.msra.mxu0 0.0
    %1257 = vmatprep.subr.mxu0 0.0
    %1258 = vmatpush2.msra.mxu0 0.0
    %1259 = vmatprep.subr.mxu0 0.0
    %1260 = vmatpush2.msra.mxu0 0.0
    %1261 = vmatprep.subr.mxu0 0.0
    %1262 = vmatpush2.msra.mxu0 0.0
    %1263 = vmatprep.subr.mxu0 0.0
    %1264 = vmatpush2.msra.mxu0 0.0
    %1265 = vmatprep.subr.mxu0 0.0
    %1266 = vmatpush2.msra.mxu0 0.0
    %1267 = vmatprep.subr.mxu0 0.0
    %1268 = vmatpush2.msra.mxu0 0.0
    %1269 = vmatprep.subr.mxu0 0.0
    %1270 = vmatpush2.msra.mxu0 0.0
    %1271 = vmatprep.subr.mxu0 0.0
    %1272 = vmatpush2.msra.mxu0 0.0
    %1273 = vmatprep.subr.mxu0 0.0
    %1274 = vmatpush2.msra.mxu0 0.0
    %1275 = vmatprep.subr.mxu0 0.0
    %1276 = vmatpush2.msra.mxu0 0.0
    %1277 = vmatprep.mubr.f32.mxu0 0.0
    %1278 = vmatmul.mubr.f32.gmra.mxu0 %v1211
    %v1279 = vpop.f32.mrf.mxu0
    %v1280 = vadd.f32 0.0, %v1279
    %v1281 = vpop.f32.mrf.mxu0
    %1282 = vdwg.mxu0
    %1283 = vrot.lane.b32.xlu0 %v153, 64
    %v1284 = vpop.permute.xlu0 %1283
    %v1287 = vsel %vm160, %v900, 0
    %1289 = vmatprep.subr.mxu0 0.0
    %1290 = vmatpush1.msra.mxu0 0.0
    %1291 = vmatprep.subr.mxu0 0.0
    %1292 = vmatpush1.msra.mxu0 0.0
    %1293 = vmatprep.subr.mxu0 0.0
    %1294 = vmatpush1.msra.mxu0 0.0
    %1295 = vmatprep.subr.mxu0 0.0
    %1296 = vmatpush1.msra.mxu0 0.0
    %1297 = vmatprep.subr.mxu0 0.0
    %1298 = vmatpush1.msra.mxu0 0.0
    %1299 = vmatprep.subr.mxu0 0.0
    %1300 = vmatpush1.msra.mxu0 0.0
    %1301 = vmatprep.subr.mxu0 0.0
    %1302 = vmatpush1.msra.mxu0 0.0
    %1303 = vmatprep.subr.mxu0 0.0
    %1304 = vmatpush1.msra.mxu0 0.0
    %1305 = vmatprep.subr.mxu0 0.0
    %1306 = vmatpush1.msra.mxu0 0.0
    %1307 = vmatprep.subr.mxu0 0.0
    %1308 = vmatpush1.msra.mxu0 0.0
    %1309 = vmatprep.subr.mxu0 0.0
    %1310 = vmatpush1.msra.mxu0 0.0
    %1311 = vmatprep.subr.mxu0 0.0
    %1312 = vmatpush1.msra.mxu0 0.0
    %1313 = vmatprep.subr.mxu0 0.0
    %1314 = vmatpush1.msra.mxu0 0.0
    %1315 = vmatprep.subr.mxu0 0.0
    %1316 = vmatpush1.msra.mxu0 0.0
    %1317 = vmatprep.subr.mxu0 0.0
    %1318 = vmatpush1.msra.mxu0 0.0
    %1319 = vmatprep.subr.mxu0 0.0
    %1320 = vmatpush1.msra.mxu0 %v1284
    %1321 = vmatprep.subr.mxu0 0.0
    %1322 = vmatpush2.msra.mxu0 0.0
    %1323 = vmatprep.subr.mxu0 0.0
    %1324 = vmatpush2.msra.mxu0 0.0
    %1325 = vmatprep.subr.mxu0 0.0
    %1326 = vmatpush2.msra.mxu0 0.0
    %1327 = vmatprep.subr.mxu0 0.0
    %1328 = vmatpush2.msra.mxu0 0.0
    %1329 = vmatprep.subr.mxu0 0.0
    %1330 = vmatpush2.msra.mxu0 0.0
    %1331 = vmatprep.subr.mxu0 0.0
    %1332 = vmatpush2.msra.mxu0 0.0
    %1333 = vmatprep.subr.mxu0 0.0
    %1334 = vmatpush2.msra.mxu0 0.0
    %1335 = vmatprep.subr.mxu0 0.0
    %1336 = vmatpush2.msra.mxu0 0.0
    %1337 = vmatprep.subr.mxu0 0.0
    %1338 = vmatpush2.msra.mxu0 0.0
    %1339 = vmatprep.subr.mxu0 0.0
    %1340 = vmatpush2.msra.mxu0 0.0
    %1341 = vmatprep.subr.mxu0 0.0
    %1342 = vmatpush2.msra.mxu0 0.0
    %1343 = vmatprep.subr.mxu0 0.0
    %1344 = vmatpush2.msra.mxu0 0.0
    %1345 = vmatprep.subr.mxu0 0.0
    %1346 = vmatpush2.msra.mxu0 0.0
    %1347 = vmatprep.subr.mxu0 0.0
    %1348 = vmatpush2.msra.mxu0 0.0
    %1349 = vmatprep.subr.mxu0 0.0
    %1350 = vmatpush2.msra.mxu0 0.0
    %1351 = vmatprep.subr.mxu0 0.0
    %1352 = vmatpush2.msra.mxu0 0.0
    %1353 = vmatprep.mubr.f32.mxu0 0.0
    %1354 = vmatmul.mubr.f32.gmra.mxu0 %v1287
    %v1355 = vpop.f32.mrf.mxu0
    %v1356 = vadd.f32 0.0, %v1355
    %v1357 = vpop.f32.mrf.mxu0
    %1358 = vdwg.mxu0
    %1359 = vrot.lane.b32.xlu0 %v155, 64
    %v1360 = vpop.permute.xlu0 %1359
    %v1363 = vsel %vm160, %v901, 0
    %1365 = vmatprep.subr.mxu0 0.0
    %1366 = vmatpush1.msra.mxu0 0.0
    %1367 = vmatprep.subr.mxu0 0.0
    %1368 = vmatpush1.msra.mxu0 0.0
    %1369 = vmatprep.subr.mxu0 0.0
    %1370 = vmatpush1.msra.mxu0 0.0
    %1371 = vmatprep.subr.mxu0 0.0
    %1372 = vmatpush1.msra.mxu0 0.0
    %1373 = vmatprep.subr.mxu0 0.0
    %1374 = vmatpush1.msra.mxu0 0.0
    %1375 = vmatprep.subr.mxu0 0.0
    %1376 = vmatpush1.msra.mxu0 0.0
    %1377 = vmatprep.subr.mxu0 0.0
    %1378 = vmatpush1.msra.mxu0 0.0
    %1379 = vmatprep.subr.mxu0 0.0
    %1380 = vmatpush1.msra.mxu0 0.0
    %1381 = vmatprep.subr.mxu0 0.0
    %1382 = vmatpush1.msra.mxu0 0.0
    %1383 = vmatprep.subr.mxu0 0.0
    %1384 = vmatpush1.msra.mxu0 0.0
    %1385 = vmatprep.subr.mxu0 0.0
    %1386 = vmatpush1.msra.mxu0 0.0
    %1387 = vmatprep.subr.mxu0 0.0
    %1388 = vmatpush1.msra.mxu0 0.0
    %1389 = vmatprep.subr.mxu0 0.0
    %1390 = vmatpush1.msra.mxu0 0.0
    %1391 = vmatprep.subr.mxu0 0.0
    %1392 = vmatpush1.msra.mxu0 0.0
    %1393 = vmatprep.subr.mxu0 0.0
    %1394 = vmatpush1.msra.mxu0 0.0
    %1395 = vmatprep.subr.mxu0 0.0
    %1396 = vmatpush1.msra.mxu0 %v1360
    %1397 = vmatprep.subr.mxu0 0.0
    %1398 = vmatpush2.msra.mxu0 0.0
    %1399 = vmatprep.subr.mxu0 0.0
    %1400 = vmatpush2.msra.mxu0 0.0
    %1401 = vmatprep.subr.mxu0 0.0
    %1402 = vmatpush2.msra.mxu0 0.0
    %1403 = vmatprep.subr.mxu0 0.0
    %1404 = vmatpush2.msra.mxu0 0.0
    %1405 = vmatprep.subr.mxu0 0.0
    %1406 = vmatpush2.msra.mxu0 0.0
    %1407 = vmatprep.subr.mxu0 0.0
    %1408 = vmatpush2.msra.mxu0 0.0
    %1409 = vmatprep.subr.mxu0 0.0
    %1410 = vmatpush2.msra.mxu0 0.0
    %1411 = vmatprep.subr.mxu0 0.0
    %1412 = vmatpush2.msra.mxu0 0.0
    %1413 = vmatprep.subr.mxu0 0.0
    %1414 = vmatpush2.msra.mxu0 0.0
    %1415 = vmatprep.subr.mxu0 0.0
    %1416 = vmatpush2.msra.mxu0 0.0
    %1417 = vmatprep.subr.mxu0 0.0
    %1418 = vmatpush2.msra.mxu0 0.0
    %1419 = vmatprep.subr.mxu0 0.0
    %1420 = vmatpush2.msra.mxu0 0.0
    %1421 = vmatprep.subr.mxu0 0.0
    %1422 = vmatpush2.msra.mxu0 0.0
    %1423 = vmatprep.subr.mxu0 0.0
    %1424 = vmatpush2.msra.mxu0 0.0
    %1425 = vmatprep.subr.mxu0 0.0
    %1426 = vmatpush2.msra.mxu0 0.0
    %1427 = vmatprep.subr.mxu0 0.0
    %1428 = vmatpush2.msra.mxu0 0.0
    %1429 = vmatprep.mubr.f32.mxu0 0.0
    %1430 = vmatmul.mubr.f32.gmra.mxu0 %v1363
    %v1431 = vpop.f32.mrf.mxu0
    %v1432 = vadd.f32 0.0, %v1431
    %v1433 = vpop.f32.mrf.mxu0
    %1434 = vdwg.mxu0
    %1435 = vrot.lane.b32.xlu0 %v157, 64
    %v1436 = vpop.permute.xlu0 %1435
    %v1439 = vsel %vm160, %v902, 0
    %1441 = vmatprep.subr.mxu0 0.0
    %1442 = vmatpush1.msra.mxu0 0.0
    %1443 = vmatprep.subr.mxu0 0.0
    %1444 = vmatpush1.msra.mxu0 0.0
    %1445 = vmatprep.subr.mxu0 0.0
    %1446 = vmatpush1.msra.mxu0 0.0
    %1447 = vmatprep.subr.mxu0 0.0
    %1448 = vmatpush1.msra.mxu0 0.0
    %1449 = vmatprep.subr.mxu0 0.0
    %1450 = vmatpush1.msra.mxu0 0.0
    %1451 = vmatprep.subr.mxu0 0.0
    %1452 = vmatpush1.msra.mxu0 0.0
    %1453 = vmatprep.subr.mxu0 0.0
    %1454 = vmatpush1.msra.mxu0 0.0
    %1455 = vmatprep.subr.mxu0 0.0
    %1456 = vmatpush1.msra.mxu0 0.0
    %1457 = vmatprep.subr.mxu0 0.0
    %1458 = vmatpush1.msra.mxu0 0.0
    %1459 = vmatprep.subr.mxu0 0.0
    %1460 = vmatpush1.msra.mxu0 0.0
    %1461 = vmatprep.subr.mxu0 0.0
    %1462 = vmatpush1.msra.mxu0 0.0
    %1463 = vmatprep.subr.mxu0 0.0
    %1464 = vmatpush1.msra.mxu0 0.0
    %1465 = vmatprep.subr.mxu0 0.0
    %1466 = vmatpush1.msra.mxu0 0.0
    %1467 = vmatprep.subr.mxu0 0.0
    %1468 = vmatpush1.msra.mxu0 0.0
    %1469 = vmatprep.subr.mxu0 0.0
    %1470 = vmatpush1.msra.mxu0 0.0
    %1471 = vmatprep.subr.mxu0 0.0
    %1472 = vmatpush1.msra.mxu0 %v1436
    %1473 = vmatprep.subr.mxu0 0.0
    %1474 = vmatpush2.msra.mxu0 0.0
    %1475 = vmatprep.subr.mxu0 0.0
    %1476 = vmatpush2.msra.mxu0 0.0
    %1477 = vmatprep.subr.mxu0 0.0
    %1478 = vmatpush2.msra.mxu0 0.0
    %1479 = vmatprep.subr.mxu0 0.0
    %1480 = vmatpush2.msra.mxu0 0.0
    %1481 = vmatprep.subr.mxu0 0.0
    %1482 = vmatpush2.msra.mxu0 0.0
    %1483 = vmatprep.subr.mxu0 0.0
    %1484 = vmatpush2.msra.mxu0 0.0
    %1485 = vmatprep.subr.mxu0 0.0
    %1486 = vmatpush2.msra.mxu0 0.0
    %1487 = vmatprep.subr.mxu0 0.0
    %1488 = vmatpush2.msra.mxu0 0.0
    %1489 = vmatprep.subr.mxu0 0.0
    %1490 = vmatpush2.msra.mxu0 0.0
    %1491 = vmatprep.subr.mxu0 0.0
    %1492 = vmatpush2.msra.mxu0 0.0
    %1493 = vmatprep.subr.mxu0 0.0
    %1494 = vmatpush2.msra.mxu0 0.0
    %1495 = vmatprep.subr.mxu0 0.0
    %1496 = vmatpush2.msra.mxu0 0.0
    %1497 = vmatprep.subr.mxu0 0.0
    %1498 = vmatpush2.msra.mxu0 0.0
    %1499 = vmatprep.subr.mxu0 0.0
    %1500 = vmatpush2.msra.mxu0 0.0
    %1501 = vmatprep.subr.mxu0 0.0
    %1502 = vmatpush2.msra.mxu0 0.0
    %1503 = vmatprep.subr.mxu0 0.0
    %1504 = vmatpush2.msra.mxu0 0.0
    %1505 = vmatprep.mubr.f32.mxu0 0.0
    %1506 = vmatmul.mubr.f32.gmra.mxu0 %v1439
    %v1507 = vpop.f32.mrf.mxu0
    %v1508 = vadd.f32 0.0, %v1507
    %v1509 = vpop.f32.mrf.mxu0
    %1510 = vdwg.mxu0
    %1513 = vrot.lane.b32.xlu0 %v1128, 8
    %v1514 = vpop.permute.xlu0 %1513
    %1515 = vrot.lane.b32.xlu0 %v1204, 8
    %v1516 = vpop.permute.xlu0 %1515
    %1521 = vrot.lane.b32.xlu0 %v1280, 16
    %v1522 = vpop.permute.xlu0 %1521
    %1523 = vrot.lane.b32.xlu0 %v1356, 16
    %v1524 = vpop.permute.xlu0 %1523
    %1529 = vrot.lane.b32.xlu0 %v1432, 24
    %v1530 = vpop.permute.xlu0 %1529
    %1531 = vrot.lane.b32.xlu0 %v1508, 24
    %v1532 = vpop.permute.xlu0 %1531
    %v1535 = vsel %vm160, %v976, %v1514
    %v1536 = vsel %vm160, %v1052, %v1516
    %vm1537 = vcmask 130048
    %v1538 = vsel %vm1537, %v1535, %v1522
    %v1539 = vsel %vm1537, %v1536, %v1524
    %vm1540 = vcmask 195584
    %v1541 = vsel %vm1540, %v1538, %v1530
    %v1542 = vsel %vm1540, %v1539, %v1532
    %v1543 = vlaneseq
    %v1544 = vshrl.u32 %v1543, 7
    %v1545 = vsub.s32 0, %v1544
    %v1546 = vrot.slane %v53, %v1545
    %v1548 = vsel %vm20, %v1541, 0
    %v1551 = vsel %vm20, %v1542, 0
    %1553 = vmatprep.subr.mxu0 0.0
    %1554 = vmatpush1.msra.mxu0 0.0
    %1555 = vmatprep.subr.mxu0 0.0
    %1556 = vmatpush1.msra.mxu0 0.0
    %1557 = vmatprep.subr.mxu0 0.0
    %1558 = vmatpush1.msra.mxu0 0.0
    %1559 = vmatprep.subr.mxu0 0.0
    %1560 = vmatpush1.msra.mxu0 0.0
    %1561 = vmatprep.subr.mxu0 0.0
    %1562 = vmatpush1.msra.mxu0 0.0
    %1563 = vmatprep.subr.mxu0 0.0
    %1564 = vmatpush1.msra.mxu0 0.0
    %1565 = vmatprep.subr.mxu0 0.0
    %1566 = vmatpush1.msra.mxu0 0.0
    %1567 = vmatprep.subr.mxu0 0.0
    %1568 = vmatpush1.msra.mxu0 0.0
    %1569 = vmatprep.subr.mxu0 0.0
    %1570 = vmatpush1.msra.mxu0 0.0
    %1571 = vmatprep.subr.mxu0 0.0
    %1572 = vmatpush1.msra.mxu0 0.0
    %1573 = vmatprep.subr.mxu0 0.0
    %1574 = vmatpush1.msra.mxu0 0.0
    %1575 = vmatprep.subr.mxu0 0.0
    %1576 = vmatpush1.msra.mxu0 0.0
    %1577 = vmatprep.subr.mxu0 0.0
    %1578 = vmatpush1.msra.mxu0 %v42
    %1579 = vmatprep.subr.mxu0 0.0
    %1580 = vmatpush1.msra.mxu0 %v41
    %1581 = vmatprep.subr.mxu0 0.0
    %1582 = vmatpush1.msra.mxu0 %v40
    %1583 = vmatprep.subr.mxu0 0.0
    %1584 = vmatpush1.msra.mxu0 %v39
    %1585 = vmatprep.subr.mxu0 0.0
    %1586 = vmatpush2.msra.mxu0 0.0
    %1587 = vmatprep.subr.mxu0 0.0
    %1588 = vmatpush2.msra.mxu0 0.0
    %1589 = vmatprep.subr.mxu0 0.0
    %1590 = vmatpush2.msra.mxu0 0.0
    %1591 = vmatprep.subr.mxu0 0.0
    %1592 = vmatpush2.msra.mxu0 0.0
    %1593 = vmatprep.subr.mxu0 0.0
    %1594 = vmatpush2.msra.mxu0 0.0
    %1595 = vmatprep.subr.mxu0 0.0
    %1596 = vmatpush2.msra.mxu0 0.0
    %1597 = vmatprep.subr.mxu0 0.0
    %1598 = vmatpush2.msra.mxu0 0.0
    %1599 = vmatprep.subr.mxu0 0.0
    %1600 = vmatpush2.msra.mxu0 0.0
    %1601 = vmatprep.subr.mxu0 0.0
    %1602 = vmatpush2.msra.mxu0 0.0
    %1603 = vmatprep.subr.mxu0 0.0
    %1604 = vmatpush2.msra.mxu0 0.0
    %1605 = vmatprep.subr.mxu0 0.0
    %1606 = vmatpush2.msra.mxu0 0.0
    %1607 = vmatprep.subr.mxu0 0.0
    %1608 = vmatpush2.msra.mxu0 0.0
    %1609 = vmatprep.subr.mxu0 0.0
    %1610 = vmatpush2.msra.mxu0 0.0
    %1611 = vmatprep.subr.mxu0 0.0
    %1612 = vmatpush2.msra.mxu0 0.0
    %1613 = vmatprep.subr.mxu0 0.0
    %1614 = vmatpush2.msra.mxu0 0.0
    %1615 = vmatprep.subr.mxu0 0.0
    %1616 = vmatpush2.msra.mxu0 0.0
    %1617 = vmatprep.mubr.f32.mxu0 0.0
    %1618 = vmatmul.mubr.f32.gmra.mxu0 %v1548
    %v1619 = vpop.f32.mrf.mxu0
    %v1620 = vadd.f32 %v1546, %v1619
    %v1621 = vpop.f32.mrf.mxu0
    %1622 = vmatprep.mubr.f32.mxu0 0.0
    %1623 = vmatmul.mubr.f32.gmra.mxu0 %v1551
    %v1624 = vpop.f32.mrf.mxu0
    %v1625 = vadd.f32 %v1546, %v1624
    %v1626 = vpop.f32.mrf.mxu0
    %1627 = vdwg.mxu0
    %v1628 = vadd.f32 %v18, %v1620
    %v1629 = vadd.f32 %v19, %v1625
    %v1630 = vsel %vm20, %v1628, 0.0
    %1631 = vadd.xlane.f32.xlu0 %v1630
    %v1632 = vpop.xlane.xlu0 %1631
    %v1633 = vsel %vm20, %v1629, 0.0
    %1634 = vadd.xlane.f32.xlu0 %v1633
    %v1635 = vpop.xlane.xlu0 %1634
    %v1636 = vrcp.pop 32.0
    %v1637 = vmul.f32 %v1632, %v1636
    %v1638 = vmul.f32 %v1635, %v1636
    %v1639 = vsub.f32 %v1628, %v1637
    %v1640 = vsub.f32 %v1629, %v1638
    %v1641 = vmul.f32 %v1639, %v1639
    %v1642 = vmul.f32 %v1640, %v1640
    %v1643 = vsel %vm20, %v1641, 0.0
    %1644 = vadd.xlane.f32.xlu0 %v1643
    %v1645 = vpop.xlane.xlu0 %1644
    %v1646 = vsel %vm20, %v1642, 0.0
    %1647 = vadd.xlane.f32.xlu0 %v1646
    %v1648 = vpop.xlane.xlu0 %1647
    %v1649 = vmul.f32 %v1645, %v1636
    %v1650 = vmul.f32 %v1648, %v1636
    %v1651 = vadd.f32 %v1649, 1e-05
    %v1652 = vadd.f32 %v1650, 1e-05
    %v1653 = vrsqrt.pop %v1651
    %v1654 = vrsqrt.pop %v1652
    %v1655 = vmul.f32 %v1639, %v1653
    %v1656 = vmul.f32 %v1640, %v1654
    %v1657 = vlaneseq
    %v1658 = vshrl.u32 %v1657, 7
    %v1659 = vsub.s32 0, %v1658
    %v1660 = vrot.slane %v54, %v1659
    %v1661 = vmul.f32 %v1655, %v1660
    %v1662 = vmul.f32 %v1656, %v1660
    %v1663 = vlaneseq
    %v1664 = vshrl.u32 %v1663, 7
    %v1665 = vsub.s32 0, %v1664
    %v1666 = vrot.slane %v55, %v1665
    %v1667 = vadd.f32 %v1661, %v1666
    %v1668 = vadd.f32 %v1662, %v1666
    %v1669 = vlaneseq
    %v1670 = vshrl.u32 %v1669, 7
    %v1671 = vsub.s32 0, %v1670
    %v1672 = vrot.slane %v52, %v1671
    %v1674 = vsel %vm20, %v1667, 0
    %v1677 = vsel %vm20, %v1668, 0
    %1679 = vmatprep.subr.mxu0 0.0
    %1680 = vmatpush1.msra.mxu0 0.0
    %1681 = vmatprep.subr.mxu0 0.0
    %1682 = vmatpush1.msra.mxu0 0.0
    %1683 = vmatprep.subr.mxu0 0.0
    %1684 = vmatpush1.msra.mxu0 0.0
    %1685 = vmatprep.subr.mxu0 0.0
    %1686 = vmatpush1.msra.mxu0 0.0
    %1687 = vmatprep.subr.mxu0 0.0
    %1688 = vmatpush1.msra.mxu0 0.0
    %1689 = vmatprep.subr.mxu0 0.0
    %1690 = vmatpush1.msra.mxu0 0.0
    %1691 = vmatprep.subr.mxu0 0.0
    %1692 = vmatpush1.msra.mxu0 0.0
    %1693 = vmatprep.subr.mxu0 0.0
    %1694 = vmatpush1.msra.mxu0 0.0
    %1695 = vmatprep.subr.mxu0 0.0
    %1696 = vmatpush1.msra.mxu0 0.0
    %1697 = vmatprep.subr.mxu0 0.0
    %1698 = vmatpush1.msra.mxu0 0.0
    %1699 = vmatprep.subr.mxu0 0.0
    %1700 = vmatpush1.msra.mxu0 0.0
    %1701 = vmatprep.subr.mxu0 0.0
    %1702 = vmatpush1.msra.mxu0 0.0
    %1703 = vmatprep.subr.mxu0 0.0
    %1704 = vmatpush1.msra.mxu0 %v38
    %1705 = vmatprep.subr.mxu0 0.0
    %1706 = vmatpush1.msra.mxu0 %v37
    %1707 = vmatprep.subr.mxu0 0.0
    %1708 = vmatpush1.msra.mxu0 %v36
    %1709 = vmatprep.subr.mxu0 0.0
    %1710 = vmatpush1.msra.mxu0 %v35
    %1711 = vmatprep.subr.mxu0 0.0
    %1712 = vmatpush2.msra.mxu0 0.0
    %1713 = vmatprep.subr.mxu0 0.0
    %1714 = vmatpush2.msra.mxu0 0.0
    %1715 = vmatprep.subr.mxu0 0.0
    %1716 = vmatpush2.msra.mxu0 0.0
    %1717 = vmatprep.subr.mxu0 0.0
    %1718 = vmatpush2.msra.mxu0 0.0
    %1719 = vmatprep.subr.mxu0 0.0
    %1720 = vmatpush2.msra.mxu0 0.0
    %1721 = vmatprep.subr.mxu0 0.0
    %1722 = vmatpush2.msra.mxu0 0.0
    %1723 = vmatprep.subr.mxu0 0.0
    %1724 = vmatpush2.msra.mxu0 0.0
    %1725 = vmatprep.subr.mxu0 0.0
    %1726 = vmatpush2.msra.mxu0 0.0
    %1727 = vmatprep.subr.mxu0 0.0
    %1728 = vmatpush2.msra.mxu0 0.0
    %1729 = vmatprep.subr.mxu0 0.0
    %1730 = vmatpush2.msra.mxu0 0.0
    %1731 = vmatprep.subr.mxu0 0.0
    %1732 = vmatpush2.msra.mxu0 0.0
    %1733 = vmatprep.subr.mxu0 0.0
    %1734 = vmatpush2.msra.mxu0 0.0
    %1735 = vmatprep.subr.mxu0 0.0
    %1736 = vmatpush2.msra.mxu0 0.0
    %1737 = vmatprep.subr.mxu0 0.0
    %1738 = vmatpush2.msra.mxu0 0.0
    %1739 = vmatprep.subr.mxu0 0.0
    %1740 = vmatpush2.msra.mxu0 0.0
    %1741 = vmatprep.subr.mxu0 0.0
    %1742 = vmatpush2.msra.mxu0 0.0
    %1743 = vmatprep.mubr.f32.mxu0 0.0
    %1744 = vmatmul.mubr.f32.gmra.mxu0 %v1674
    %v1745 = vpop.f32.mrf.mxu0
    %v1746 = vadd.f32 %v1672, %v1745
    %v1747 = vpop.f32.mrf.mxu0
    %1748 = vmatprep.mubr.f32.mxu0 0.0
    %1749 = vmatmul.mubr.f32.gmra.mxu0 %v1677
    %v1750 = vpop.f32.mrf.mxu0
    %v1751 = vadd.f32 %v1672, %v1750
    %v1752 = vpop.f32.mrf.mxu0
    %1753 = vdwg.mxu0
    %v1754 = vmax.f32 %v1746, 0.0
    %v1755 = vmax.f32 %v1751, 0.0
    %v1756 = vlaneseq
    %v1757 = vshrl.u32 %v1756, 7
    %v1758 = vsub.s32 0, %v1757
    %v1759 = vrot.slane %v56, %v1758
    %vm1760 = vcmask 523264
    %v1762 = vsel %vm1760, %v1754, 0
    %v1765 = vsel %vm1760, %v1755, 0
    %1767 = vmatprep.subr.mxu0 0.0
    %1768 = vmatpush1.msra.mxu0 0.0
    %1769 = vmatprep.subr.mxu0 0.0
    %1770 = vmatpush1.msra.mxu0 0.0
    %1771 = vmatprep.subr.mxu0 0.0
    %1772 = vmatpush1.msra.mxu0 0.0
    %1773 = vmatprep.subr.mxu0 0.0
    %1774 = vmatpush1.msra.mxu0 0.0
    %1775 = vmatprep.subr.mxu0 0.0
    %1776 = vmatpush1.msra.mxu0 0.0
    %1777 = vmatprep.subr.mxu0 0.0
    %1778 = vmatpush1.msra.mxu0 0.0
    %1779 = vmatprep.subr.mxu0 0.0
    %1780 = vmatpush1.msra.mxu0 0.0
    %1781 = vmatprep.subr.mxu0 0.0
    %1782 = vmatpush1.msra.mxu0 0.0
    %1783 = vmatprep.subr.mxu0 0.0
    %1784 = vmatpush1.msra.mxu0 %v50
    %1785 = vmatprep.subr.mxu0 0.0
    %1786 = vmatpush1.msra.mxu0 %v49
    %1787 = vmatprep.subr.mxu0 0.0
    %1788 = vmatpush1.msra.mxu0 %v48
    %1789 = vmatprep.subr.mxu0 0.0
    %1790 = vmatpush1.msra.mxu0 %v47
    %1791 = vmatprep.subr.mxu0 0.0
    %1792 = vmatpush1.msra.mxu0 %v46
    %1793 = vmatprep.subr.mxu0 0.0
    %1794 = vmatpush1.msra.mxu0 %v45
    %1795 = vmatprep.subr.mxu0 0.0
    %1796 = vmatpush1.msra.mxu0 %v44
    %1797 = vmatprep.subr.mxu0 0.0
    %1798 = vmatpush1.msra.mxu0 %v43
    %1799 = vmatprep.subr.mxu0 0.0
    %1800 = vmatpush2.msra.mxu0 0.0
    %1801 = vmatprep.subr.mxu0 0.0
    %1802 = vmatpush2.msra.mxu0 0.0
    %1803 = vmatprep.subr.mxu0 0.0
    %1804 = vmatpush2.msra.mxu0 0.0
    %1805 = vmatprep.subr.mxu0 0.0
    %1806 = vmatpush2.msra.mxu0 0.0
    %1807 = vmatprep.subr.mxu0 0.0
    %1808 = vmatpush2.msra.mxu0 0.0
    %1809 = vmatprep.subr.mxu0 0.0
    %1810 = vmatpush2.msra.mxu0 0.0
    %1811 = vmatprep.subr.mxu0 0.0
    %1812 = vmatpush2.msra.mxu0 0.0
    %1813 = vmatprep.subr.mxu0 0.0
    %1814 = vmatpush2.msra.mxu0 0.0
    %1815 = vmatprep.subr.mxu0 0.0
    %1816 = vmatpush2.msra.mxu0 0.0
    %1817 = vmatprep.subr.mxu0 0.0
    %1818 = vmatpush2.msra.mxu0 0.0
    %1819 = vmatprep.subr.mxu0 0.0
    %1820 = vmatpush2.msra.mxu0 0.0
    %1821 = vmatprep.subr.mxu0 0.0
    %1822 = vmatpush2.msra.mxu0 0.0
    %1823 = vmatprep.subr.mxu0 0.0
    %1824 = vmatpush2.msra.mxu0 0.0
    %1825 = vmatprep.subr.mxu0 0.0
    %1826 = vmatpush2.msra.mxu0 0.0
    %1827 = vmatprep.subr.mxu0 0.0
    %1828 = vmatpush2.msra.mxu0 0.0
    %1829 = vmatprep.subr.mxu0 0.0
    %1830 = vmatpush2.msra.mxu0 0.0
    %1831 = vmatprep.mubr.f32.mxu0 0.0
    %1832 = vmatmul.mubr.f32.gmra.mxu0 %v1762
    %v1833 = vpop.f32.mrf.mxu0
    %v1834 = vadd.f32 %v1759, %v1833
    %v1835 = vpop.f32.mrf.mxu0
    %1836 = vmatprep.mubr.f32.mxu0 0.0
    %1837 = vmatmul.mubr.f32.gmra.mxu0 %v1765
    %v1838 = vpop.f32.mrf.mxu0
    %v1839 = vadd.f32 %v1759, %v1838
    %v1840 = vpop.f32.mrf.mxu0
    %1841 = vdwg.mxu0
    %v1842 = vadd.f32 %v1667, %v1834
    %v1843 = vadd.f32 %v1668, %v1839
    %v1844 = vsel %vm20, %v1842, 0.0
    %1845 = vadd.xlane.f32.xlu0 %v1844
    %v1846 = vpop.xlane.xlu0 %1845
    %v1847 = vsel %vm20, %v1843, 0.0
    %1848 = vadd.xlane.f32.xlu0 %v1847
    %v1849 = vpop.xlane.xlu0 %1848
    %v1850 = vmul.f32 %v1846, %v1636
    %v1851 = vmul.f32 %v1849, %v1636
    %v1852 = vsub.f32 %v1842, %v1850
    %v1853 = vsub.f32 %v1843, %v1851
    %v1854 = vmul.f32 %v1852, %v1852
    %v1855 = vmul.f32 %v1853, %v1853
    %v1856 = vsel %vm20, %v1854, 0.0
    %1857 = vadd.xlane.f32.xlu0 %v1856
    %v1858 = vpop.xlane.xlu0 %1857
    %v1859 = vsel %vm20, %v1855, 0.0
    %1860 = vadd.xlane.f32.xlu0 %v1859
    %v1861 = vpop.xlane.xlu0 %1860
    %v1862 = vmul.f32 %v1858, %v1636
    %v1863 = vmul.f32 %v1861, %v1636
    %v1864 = vadd.f32 %v1862, 1e-05
    %v1865 = vadd.f32 %v1863, 1e-05
    %v1866 = vrsqrt.pop %v1864
    %v1867 = vrsqrt.pop %v1865
    %v1868 = vmul.f32 %v1852, %v1866
    %v1869 = vmul.f32 %v1853, %v1867
    %v1870 = vlaneseq
    %v1871 = vshrl.u32 %v1870, 7
    %v1872 = vsub.s32 0, %v1871
    %v1873 = vrot.slane %v57, %v1872
    %v1874 = vmul.f32 %v1868, %v1873
    %v1875 = vmul.f32 %v1869, %v1873
    %v1876 = vlaneseq
    %v1877 = vshrl.u32 %v1876, 7
    %v1878 = vsub.s32 0, %v1877
    %v1879 = vrot.slane %v58, %v1878
    %v1880 = vadd.f32 %v1874, %v1879
    %v1881 = vadd.f32 %v1875, %v1879
    %1882 = vst.msk [vmem:[#allocation2] sm:$0xff] %vm20, %v1880
    %1883 = vst.msk [vmem:[#allocation2 + $0x8] sm:$0xff] %vm20, %v1881
    %s1884 = scalar_lea.vmem %s1, 64
    %v1885 = vld [vmem:[%s1884] sm:$0xff]
    %v1886 = vld [vmem:[%s1884 + $0x10] sm:$0xff]
    %v1887 = vld [vmem:[%s1884 + $0x20] sm:$0xff]
    %v1888 = vld [vmem:[%s1884 + $0x30] sm:$0xff]
    %v1889 = vld [vmem:[%s1884 + $0x8] sm:$0xff]
    %v1890 = vld [vmem:[%s1884 + $0x18] sm:$0xff]
    %v1891 = vld [vmem:[%s1884 + $0x28] sm:$0xff]
    %v1892 = vld [vmem:[%s1884 + $0x38] sm:$0xff]
    %s1893 = scalar_lea.vmem %s2, 96
    %v1894 = vld [vmem:[%s1893] sm:$0xff]
    %v1895 = vld [vmem:[%s1893 + $0x8] sm:$0xff]
    %v1896 = vld [vmem:[%s1893 + $0x10] sm:$0xff]
    %v1897 = vld [vmem:[%s1893 + $0x18] sm:$0xff]
    %v1898 = vld [vmem:[%s1893 + $0x20] sm:$0xff]
    %v1899 = vld [vmem:[%s1893 + $0x28] sm:$0xff]
    %v1900 = vld [vmem:[%s1893 + $0x30] sm:$0xff]
    %v1901 = vld [vmem:[%s1893 + $0x38] sm:$0xff]
    %v1902 = vld [vmem:[%s1893 + $0x40] sm:$0xff]
    %v1903 = vld [vmem:[%s1893 + $0x48] sm:$0xff]
    %v1904 = vld [vmem:[%s1893 + $0x50] sm:$0xff]
    %v1905 = vld [vmem:[%s1893 + $0x58] sm:$0xff]
    %s1906 = scalar_lea.vmem %s3, 8
    %v1907 = vld [vmem:[%s1906] sm:$0x1]
    %v1908 = vld [vmem:[%s1906 + $0x1] sm:$0x1]
    %v1909 = vld [vmem:[%s1906 + $0x2] sm:$0x1]
    %v1910 = vld [vmem:[%s1906 + $0x3] sm:$0x1]
    %v1911 = vld [vmem:[%s1906 + $0x4] sm:$0x1]
    %v1912 = vld [vmem:[%s1906 + $0x5] sm:$0x1]
    %v1913 = vld [vmem:[%s1906 + $0x6] sm:$0x1]
    %v1914 = vld [vmem:[%s1906 + $0x7] sm:$0x1]
    %v1915 = vlaneseq
    %v1916 = vshrl.u32 %v1915, 7
    %v1917 = vsub.s32 0, %v1916
    %v1918 = vrot.slane %v1907, %v1917
    %v1920 = vsel %vm20, %v1880, 0
    %v1923 = vsel %vm20, %v1881, 0
    %1925 = vmatprep.subr.mxu0 0.0
    %1926 = vmatpush1.msra.mxu0 0.0
    %1927 = vmatprep.subr.mxu0 0.0
    %1928 = vmatpush1.msra.mxu0 0.0
    %1929 = vmatprep.subr.mxu0 0.0
    %1930 = vmatpush1.msra.mxu0 0.0
    %1931 = vmatprep.subr.mxu0 0.0
    %1932 = vmatpush1.msra.mxu0 0.0
    %1933 = vmatprep.subr.mxu0 0.0
    %1934 = vmatpush1.msra.mxu0 0.0
    %1935 = vmatprep.subr.mxu0 0.0
    %1936 = vmatpush1.msra.mxu0 0.0
    %1937 = vmatprep.subr.mxu0 0.0
    %1938 = vmatpush1.msra.mxu0 0.0
    %1939 = vmatprep.subr.mxu0 0.0
    %1940 = vmatpush1.msra.mxu0 0.0
    %1941 = vmatprep.subr.mxu0 0.0
    %1942 = vmatpush1.msra.mxu0 0.0
    %1943 = vmatprep.subr.mxu0 0.0
    %1944 = vmatpush1.msra.mxu0 0.0
    %1945 = vmatprep.subr.mxu0 0.0
    %1946 = vmatpush1.msra.mxu0 0.0
    %1947 = vmatprep.subr.mxu0 0.0
    %1948 = vmatpush1.msra.mxu0 0.0
    %1949 = vmatprep.subr.mxu0 0.0
    %1950 = vmatpush1.msra.mxu0 %v1888
    %1951 = vmatprep.subr.mxu0 0.0
    %1952 = vmatpush1.msra.mxu0 %v1887
    %1953 = vmatprep.subr.mxu0 0.0
    %1954 = vmatpush1.msra.mxu0 %v1886
    %1955 = vmatprep.subr.mxu0 0.0
    %1956 = vmatpush1.msra.mxu0 %v1885
    %1957 = vmatprep.subr.mxu0 0.0
    %1958 = vmatpush2.msra.mxu0 0.0
    %1959 = vmatprep.subr.mxu0 0.0
    %1960 = vmatpush2.msra.mxu0 0.0
    %1961 = vmatprep.subr.mxu0 0.0
    %1962 = vmatpush2.msra.mxu0 0.0
    %1963 = vmatprep.subr.mxu0 0.0
    %1964 = vmatpush2.msra.mxu0 0.0
    %1965 = vmatprep.subr.mxu0 0.0
    %1966 = vmatpush2.msra.mxu0 0.0
    %1967 = vmatprep.subr.mxu0 0.0
    %1968 = vmatpush2.msra.mxu0 0.0
    %1969 = vmatprep.subr.mxu0 0.0
    %1970 = vmatpush2.msra.mxu0 0.0
    %1971 = vmatprep.subr.mxu0 0.0
    %1972 = vmatpush2.msra.mxu0 0.0
    %1973 = vmatprep.subr.mxu0 0.0
    %1974 = vmatpush2.msra.mxu0 0.0
    %1975 = vmatprep.subr.mxu0 0.0
    %1976 = vmatpush2.msra.mxu0 0.0
    %1977 = vmatprep.subr.mxu0 0.0
    %1978 = vmatpush2.msra.mxu0 0.0
    %1979 = vmatprep.subr.mxu0 0.0
    %1980 = vmatpush2.msra.mxu0 0.0
    %1981 = vmatprep.subr.mxu0 0.0
    %1982 = vmatpush2.msra.mxu0 0.0
    %1983 = vmatprep.subr.mxu0 0.0
    %1984 = vmatpush2.msra.mxu0 0.0
    %1985 = vmatprep.subr.mxu0 0.0
    %1986 = vmatpush2.msra.mxu0 0.0
    %1987 = vmatprep.subr.mxu0 0.0
    %1988 = vmatpush2.msra.mxu0 0.0
    %1989 = vmatprep.mubr.f32.mxu0 0.0
    %1990 = vmatmul.mubr.f32.gmra.mxu0 %v1920
    %v1991 = vpop.f32.mrf.mxu0
    %v1992 = vadd.f32 %v1918, %v1991
    %v1993 = vpop.f32.mrf.mxu0
    %1994 = vmatprep.mubr.f32.mxu0 0.0
    %1995 = vmatmul.mubr.f32.gmra.mxu0 %v1923
    %v1996 = vpop.f32.mrf.mxu0
    %v1997 = vadd.f32 %v1918, %v1996
    %v1998 = vpop.f32.mrf.mxu0
    %1999 = vdwg.mxu0
    %2002 = vrot.lane.b32.xlu0 %v1992, 120
    %v2003 = vpop.permute.xlu0 %2002
    %2004 = vrot.lane.b32.xlu0 %v1997, 120
    %v2005 = vpop.permute.xlu0 %2004
    %2006 = vrot.lane.b32.xlu0 %v1992, 112
    %v2007 = vpop.permute.xlu0 %2006
    %2008 = vrot.lane.b32.xlu0 %v1997, 112
    %v2009 = vpop.permute.xlu0 %2008
    %2010 = vrot.lane.b32.xlu0 %v1992, 104
    %v2011 = vpop.permute.xlu0 %2010
    %2012 = vrot.lane.b32.xlu0 %v1997, 104
    %v2013 = vpop.permute.xlu0 %2012
    %2014 = vrot.lane.b32.xlu0 %v1992, 96
    %v2015 = vpop.permute.xlu0 %2014
    %v2016 = vsel %vm160, %v1992, 0
    %v2018 = vsel %vm160, %v2015, 0
    %2020 = vmatprep.subr.mxu0 0.0
    %2021 = vmatpush1.xpose.msra.mxu0 0.0
    %2022 = vmatprep.subr.mxu0 0.0
    %2023 = vmatpush1.xpose.msra.mxu0 0.0
    %2024 = vmatprep.subr.mxu0 0.0
    %2025 = vmatpush1.xpose.msra.mxu0 0.0
    %2026 = vmatprep.subr.mxu0 0.0
    %2027 = vmatpush1.xpose.msra.mxu0 0.0
    %2028 = vmatprep.subr.mxu0 0.0
    %2029 = vmatpush1.xpose.msra.mxu0 0.0
    %2030 = vmatprep.subr.mxu0 0.0
    %2031 = vmatpush1.xpose.msra.mxu0 0.0
    %2032 = vmatprep.subr.mxu0 0.0
    %2033 = vmatpush1.xpose.msra.mxu0 0.0
    %2034 = vmatprep.subr.mxu0 0.0
    %2035 = vmatpush1.xpose.msra.mxu0 0.0
    %2036 = vmatprep.subr.mxu0 0.0
    %2037 = vmatpush1.xpose.msra.mxu0 0.0
    %2038 = vmatprep.subr.mxu0 0.0
    %2039 = vmatpush1.xpose.msra.mxu0 0.0
    %2040 = vmatprep.subr.mxu0 0.0
    %2041 = vmatpush1.xpose.msra.mxu0 0.0
    %2042 = vmatprep.subr.mxu0 0.0
    %2043 = vmatpush1.xpose.msra.mxu0 0.0
    %2044 = vmatprep.subr.mxu0 0.0
    %2045 = vmatpush1.xpose.msra.mxu0 0.0
    %2046 = vmatprep.subr.mxu0 0.0
    %2047 = vmatpush1.xpose.msra.mxu0 0.0
    %2048 = vmatprep.subr.mxu0 0.0
    %2049 = vmatpush1.xpose.msra.mxu0 0.0
    %2050 = vmatprep.subr.mxu0 0.0
    %2051 = vmatpush1.xpose.msra.mxu0 %v2018
    %2052 = vmatprep.subr.mxu0 0.0
    %2053 = vmatpush2.xpose.msra.mxu0 0.0
    %2054 = vmatprep.subr.mxu0 0.0
    %2055 = vmatpush2.xpose.msra.mxu0 0.0
    %2056 = vmatprep.subr.mxu0 0.0
    %2057 = vmatpush2.xpose.msra.mxu0 0.0
    %2058 = vmatprep.subr.mxu0 0.0
    %2059 = vmatpush2.xpose.msra.mxu0 0.0
    %2060 = vmatprep.subr.mxu0 0.0
    %2061 = vmatpush2.xpose.msra.mxu0 0.0
    %2062 = vmatprep.subr.mxu0 0.0
    %2063 = vmatpush2.xpose.msra.mxu0 0.0
    %2064 = vmatprep.subr.mxu0 0.0
    %2065 = vmatpush2.xpose.msra.mxu0 0.0
    %2066 = vmatprep.subr.mxu0 0.0
    %2067 = vmatpush2.xpose.msra.mxu0 0.0
    %2068 = vmatprep.subr.mxu0 0.0
    %2069 = vmatpush2.xpose.msra.mxu0 0.0
    %2070 = vmatprep.subr.mxu0 0.0
    %2071 = vmatpush2.xpose.msra.mxu0 0.0
    %2072 = vmatprep.subr.mxu0 0.0
    %2073 = vmatpush2.xpose.msra.mxu0 0.0
    %2074 = vmatprep.subr.mxu0 0.0
    %2075 = vmatpush2.xpose.msra.mxu0 0.0
    %2076 = vmatprep.subr.mxu0 0.0
    %2077 = vmatpush2.xpose.msra.mxu0 0.0
    %2078 = vmatprep.subr.mxu0 0.0
    %2079 = vmatpush2.xpose.msra.mxu0 0.0
    %2080 = vmatprep.subr.mxu0 0.0
    %2081 = vmatpush2.xpose.msra.mxu0 0.0
    %2082 = vmatprep.subr.mxu0 0.0
    %2083 = vmatpush2.xpose.msra.mxu0 0.0
    %2084 = vmatprep.mubr.f32.mxu0 0.0
    %2085 = vmatmul.mubr.f32.gmra.mxu0 %v2016
    %v2086 = vpop.f32.mrf.mxu0
    %v2087 = vadd.f32 0.0, %v2086
    %v2088 = vpop.f32.mrf.mxu0
    %2089 = vdwg.mxu0
    %2090 = vrot.lane.b32.xlu0 %v1997, 96
    %v2091 = vpop.permute.xlu0 %2090
    %v2092 = vsel %vm160, %v1997, 0
    %v2094 = vsel %vm160, %v2091, 0
    %2096 = vmatprep.subr.mxu0 0.0
    %2097 = vmatpush1.xpose.msra.mxu0 0.0
    %2098 = vmatprep.subr.mxu0 0.0
    %2099 = vmatpush1.xpose.msra.mxu0 0.0
    %2100 = vmatprep.subr.mxu0 0.0
    %2101 = vmatpush1.xpose.msra.mxu0 0.0
    %2102 = vmatprep.subr.mxu0 0.0
    %2103 = vmatpush1.xpose.msra.mxu0 0.0
    %2104 = vmatprep.subr.mxu0 0.0
    %2105 = vmatpush1.xpose.msra.mxu0 0.0
    %2106 = vmatprep.subr.mxu0 0.0
    %2107 = vmatpush1.xpose.msra.mxu0 0.0
    %2108 = vmatprep.subr.mxu0 0.0
    %2109 = vmatpush1.xpose.msra.mxu0 0.0
    %2110 = vmatprep.subr.mxu0 0.0
    %2111 = vmatpush1.xpose.msra.mxu0 0.0
    %2112 = vmatprep.subr.mxu0 0.0
    %2113 = vmatpush1.xpose.msra.mxu0 0.0
    %2114 = vmatprep.subr.mxu0 0.0
    %2115 = vmatpush1.xpose.msra.mxu0 0.0
    %2116 = vmatprep.subr.mxu0 0.0
    %2117 = vmatpush1.xpose.msra.mxu0 0.0
    %2118 = vmatprep.subr.mxu0 0.0
    %2119 = vmatpush1.xpose.msra.mxu0 0.0
    %2120 = vmatprep.subr.mxu0 0.0
    %2121 = vmatpush1.xpose.msra.mxu0 0.0
    %2122 = vmatprep.subr.mxu0 0.0
    %2123 = vmatpush1.xpose.msra.mxu0 0.0
    %2124 = vmatprep.subr.mxu0 0.0
    %2125 = vmatpush1.xpose.msra.mxu0 0.0
    %2126 = vmatprep.subr.mxu0 0.0
    %2127 = vmatpush1.xpose.msra.mxu0 %v2094
    %2128 = vmatprep.subr.mxu0 0.0
    %2129 = vmatpush2.xpose.msra.mxu0 0.0
    %2130 = vmatprep.subr.mxu0 0.0
    %2131 = vmatpush2.xpose.msra.mxu0 0.0
    %2132 = vmatprep.subr.mxu0 0.0
    %2133 = vmatpush2.xpose.msra.mxu0 0.0
    %2134 = vmatprep.subr.mxu0 0.0
    %2135 = vmatpush2.xpose.msra.mxu0 0.0
    %2136 = vmatprep.subr.mxu0 0.0
    %2137 = vmatpush2.xpose.msra.mxu0 0.0
    %2138 = vmatprep.subr.mxu0 0.0
    %2139 = vmatpush2.xpose.msra.mxu0 0.0
    %2140 = vmatprep.subr.mxu0 0.0
    %2141 = vmatpush2.xpose.msra.mxu0 0.0
    %2142 = vmatprep.subr.mxu0 0.0
    %2143 = vmatpush2.xpose.msra.mxu0 0.0
    %2144 = vmatprep.subr.mxu0 0.0
    %2145 = vmatpush2.xpose.msra.mxu0 0.0
    %2146 = vmatprep.subr.mxu0 0.0
    %2147 = vmatpush2.xpose.msra.mxu0 0.0
    %2148 = vmatprep.subr.mxu0 0.0
    %2149 = vmatpush2.xpose.msra.mxu0 0.0
    %2150 = vmatprep.subr.mxu0 0.0
    %2151 = vmatpush2.xpose.msra.mxu0 0.0
    %2152 = vmatprep.subr.mxu0 0.0
    %2153 = vmatpush2.xpose.msra.mxu0 0.0
    %2154 = vmatprep.subr.mxu0 0.0
    %2155 = vmatpush2.xpose.msra.mxu0 0.0
    %2156 = vmatprep.subr.mxu0 0.0
    %2157 = vmatpush2.xpose.msra.mxu0 0.0
    %2158 = vmatprep.subr.mxu0 0.0
    %2159 = vmatpush2.xpose.msra.mxu0 0.0
    %2160 = vmatprep.mubr.f32.mxu0 0.0
    %2161 = vmatmul.mubr.f32.gmra.mxu0 %v2092
    %v2162 = vpop.f32.mrf.mxu0
    %v2163 = vadd.f32 0.0, %v2162
    %v2164 = vpop.f32.mrf.mxu0
    %2165 = vdwg.mxu0
    %2166 = vrot.lane.b32.xlu0 %v2003, 96
    %v2167 = vpop.permute.xlu0 %2166
    %v2168 = vsel %vm160, %v2003, 0
    %v2170 = vsel %vm160, %v2167, 0
    %2172 = vmatprep.subr.mxu0 0.0
    %2173 = vmatpush1.xpose.msra.mxu0 0.0
    %2174 = vmatprep.subr.mxu0 0.0
    %2175 = vmatpush1.xpose.msra.mxu0 0.0
    %2176 = vmatprep.subr.mxu0 0.0
    %2177 = vmatpush1.xpose.msra.mxu0 0.0
    %2178 = vmatprep.subr.mxu0 0.0
    %2179 = vmatpush1.xpose.msra.mxu0 0.0
    %2180 = vmatprep.subr.mxu0 0.0
    %2181 = vmatpush1.xpose.msra.mxu0 0.0
    %2182 = vmatprep.subr.mxu0 0.0
    %2183 = vmatpush1.xpose.msra.mxu0 0.0
    %2184 = vmatprep.subr.mxu0 0.0
    %2185 = vmatpush1.xpose.msra.mxu0 0.0
    %2186 = vmatprep.subr.mxu0 0.0
    %2187 = vmatpush1.xpose.msra.mxu0 0.0
    %2188 = vmatprep.subr.mxu0 0.0
    %2189 = vmatpush1.xpose.msra.mxu0 0.0
    %2190 = vmatprep.subr.mxu0 0.0
    %2191 = vmatpush1.xpose.msra.mxu0 0.0
    %2192 = vmatprep.subr.mxu0 0.0
    %2193 = vmatpush1.xpose.msra.mxu0 0.0
    %2194 = vmatprep.subr.mxu0 0.0
    %2195 = vmatpush1.xpose.msra.mxu0 0.0
    %2196 = vmatprep.subr.mxu0 0.0
    %2197 = vmatpush1.xpose.msra.mxu0 0.0
    %2198 = vmatprep.subr.mxu0 0.0
    %2199 = vmatpush1.xpose.msra.mxu0 0.0
    %2200 = vmatprep.subr.mxu0 0.0
    %2201 = vmatpush1.xpose.msra.mxu0 0.0
    %2202 = vmatprep.subr.mxu0 0.0
    %2203 = vmatpush1.xpose.msra.mxu0 %v2170
    %2204 = vmatprep.subr.mxu0 0.0
    %2205 = vmatpush2.xpose.msra.mxu0 0.0
    %2206 = vmatprep.subr.mxu0 0.0
    %2207 = vmatpush2.xpose.msra.mxu0 0.0
    %2208 = vmatprep.subr.mxu0 0.0
    %2209 = vmatpush2.xpose.msra.mxu0 0.0
    %2210 = vmatprep.subr.mxu0 0.0
    %2211 = vmatpush2.xpose.msra.mxu0 0.0
    %2212 = vmatprep.subr.mxu0 0.0
    %2213 = vmatpush2.xpose.msra.mxu0 0.0
    %2214 = vmatprep.subr.mxu0 0.0
    %2215 = vmatpush2.xpose.msra.mxu0 0.0
    %2216 = vmatprep.subr.mxu0 0.0
    %2217 = vmatpush2.xpose.msra.mxu0 0.0
    %2218 = vmatprep.subr.mxu0 0.0
    %2219 = vmatpush2.xpose.msra.mxu0 0.0
    %2220 = vmatprep.subr.mxu0 0.0
    %2221 = vmatpush2.xpose.msra.mxu0 0.0
    %2222 = vmatprep.subr.mxu0 0.0
    %2223 = vmatpush2.xpose.msra.mxu0 0.0
    %2224 = vmatprep.subr.mxu0 0.0
    %2225 = vmatpush2.xpose.msra.mxu0 0.0
    %2226 = vmatprep.subr.mxu0 0.0
    %2227 = vmatpush2.xpose.msra.mxu0 0.0
    %2228 = vmatprep.subr.mxu0 0.0
    %2229 = vmatpush2.xpose.msra.mxu0 0.0
    %2230 = vmatprep.subr.mxu0 0.0
    %2231 = vmatpush2.xpose.msra.mxu0 0.0
    %2232 = vmatprep.subr.mxu0 0.0
    %2233 = vmatpush2.xpose.msra.mxu0 0.0
    %2234 = vmatprep.subr.mxu0 0.0
    %2235 = vmatpush2.xpose.msra.mxu0 0.0
    %2236 = vmatprep.mubr.f32.mxu0 0.0
    %2237 = vmatmul.mubr.f32.gmra.mxu0 %v2168
    %v2238 = vpop.f32.mrf.mxu0
    %v2239 = vadd.f32 0.0, %v2238
    %v2240 = vpop.f32.mrf.mxu0
    %2241 = vdwg.mxu0
    %2242 = vrot.lane.b32.xlu0 %v2005, 96
    %v2243 = vpop.permute.xlu0 %2242
    %v2244 = vsel %vm160, %v2005, 0
    %v2246 = vsel %vm160, %v2243, 0
    %2248 = vmatprep.subr.mxu0 0.0
    %2249 = vmatpush1.xpose.msra.mxu0 0.0
    %2250 = vmatprep.subr.mxu0 0.0
    %2251 = vmatpush1.xpose.msra.mxu0 0.0
    %2252 = vmatprep.subr.mxu0 0.0
    %2253 = vmatpush1.xpose.msra.mxu0 0.0
    %2254 = vmatprep.subr.mxu0 0.0
    %2255 = vmatpush1.xpose.msra.mxu0 0.0
    %2256 = vmatprep.subr.mxu0 0.0
    %2257 = vmatpush1.xpose.msra.mxu0 0.0
    %2258 = vmatprep.subr.mxu0 0.0
    %2259 = vmatpush1.xpose.msra.mxu0 0.0
    %2260 = vmatprep.subr.mxu0 0.0
    %2261 = vmatpush1.xpose.msra.mxu0 0.0
    %2262 = vmatprep.subr.mxu0 0.0
    %2263 = vmatpush1.xpose.msra.mxu0 0.0
    %2264 = vmatprep.subr.mxu0 0.0
    %2265 = vmatpush1.xpose.msra.mxu0 0.0
    %2266 = vmatprep.subr.mxu0 0.0
    %2267 = vmatpush1.xpose.msra.mxu0 0.0
    %2268 = vmatprep.subr.mxu0 0.0
    %2269 = vmatpush1.xpose.msra.mxu0 0.0
    %2270 = vmatprep.subr.mxu0 0.0
    %2271 = vmatpush1.xpose.msra.mxu0 0.0
    %2272 = vmatprep.subr.mxu0 0.0
    %2273 = vmatpush1.xpose.msra.mxu0 0.0
    %2274 = vmatprep.subr.mxu0 0.0
    %2275 = vmatpush1.xpose.msra.mxu0 0.0
    %2276 = vmatprep.subr.mxu0 0.0
    %2277 = vmatpush1.xpose.msra.mxu0 0.0
    %2278 = vmatprep.subr.mxu0 0.0
    %2279 = vmatpush1.xpose.msra.mxu0 %v2246
    %2280 = vmatprep.subr.mxu0 0.0
    %2281 = vmatpush2.xpose.msra.mxu0 0.0
    %2282 = vmatprep.subr.mxu0 0.0
    %2283 = vmatpush2.xpose.msra.mxu0 0.0
    %2284 = vmatprep.subr.mxu0 0.0
    %2285 = vmatpush2.xpose.msra.mxu0 0.0
    %2286 = vmatprep.subr.mxu0 0.0
    %2287 = vmatpush2.xpose.msra.mxu0 0.0
    %2288 = vmatprep.subr.mxu0 0.0
    %2289 = vmatpush2.xpose.msra.mxu0 0.0
    %2290 = vmatprep.subr.mxu0 0.0
    %2291 = vmatpush2.xpose.msra.mxu0 0.0
    %2292 = vmatprep.subr.mxu0 0.0
    %2293 = vmatpush2.xpose.msra.mxu0 0.0
    %2294 = vmatprep.subr.mxu0 0.0
    %2295 = vmatpush2.xpose.msra.mxu0 0.0
    %2296 = vmatprep.subr.mxu0 0.0
    %2297 = vmatpush2.xpose.msra.mxu0 0.0
    %2298 = vmatprep.subr.mxu0 0.0
    %2299 = vmatpush2.xpose.msra.mxu0 0.0
    %2300 = vmatprep.subr.mxu0 0.0
    %2301 = vmatpush2.xpose.msra.mxu0 0.0
    %2302 = vmatprep.subr.mxu0 0.0
    %2303 = vmatpush2.xpose.msra.mxu0 0.0
    %2304 = vmatprep.subr.mxu0 0.0
    %2305 = vmatpush2.xpose.msra.mxu0 0.0
    %2306 = vmatprep.subr.mxu0 0.0
    %2307 = vmatpush2.xpose.msra.mxu0 0.0
    %2308 = vmatprep.subr.mxu0 0.0
    %2309 = vmatpush2.xpose.msra.mxu0 0.0
    %2310 = vmatprep.subr.mxu0 0.0
    %2311 = vmatpush2.xpose.msra.mxu0 0.0
    %2312 = vmatprep.mubr.f32.mxu0 0.0
    %2313 = vmatmul.mubr.f32.gmra.mxu0 %v2244
    %v2314 = vpop.f32.mrf.mxu0
    %v2315 = vadd.f32 0.0, %v2314
    %v2316 = vpop.f32.mrf.mxu0
    %2317 = vdwg.mxu0
    %2318 = vrot.lane.b32.xlu0 %v2007, 96
    %v2319 = vpop.permute.xlu0 %2318
    %v2320 = vsel %vm160, %v2007, 0
    %v2322 = vsel %vm160, %v2319, 0
    %2324 = vmatprep.subr.mxu0 0.0
    %2325 = vmatpush1.xpose.msra.mxu0 0.0
    %2326 = vmatprep.subr.mxu0 0.0
    %2327 = vmatpush1.xpose.msra.mxu0 0.0
    %2328 = vmatprep.subr.mxu0 0.0
    %2329 = vmatpush1.xpose.msra.mxu0 0.0
    %2330 = vmatprep.subr.mxu0 0.0
    %2331 = vmatpush1.xpose.msra.mxu0 0.0
    %2332 = vmatprep.subr.mxu0 0.0
    %2333 = vmatpush1.xpose.msra.mxu0 0.0
    %2334 = vmatprep.subr.mxu0 0.0
    %2335 = vmatpush1.xpose.msra.mxu0 0.0
    %2336 = vmatprep.subr.mxu0 0.0
    %2337 = vmatpush1.xpose.msra.mxu0 0.0
    %2338 = vmatprep.subr.mxu0 0.0
    %2339 = vmatpush1.xpose.msra.mxu0 0.0
    %2340 = vmatprep.subr.mxu0 0.0
    %2341 = vmatpush1.xpose.msra.mxu0 0.0
    %2342 = vmatprep.subr.mxu0 0.0
    %2343 = vmatpush1.xpose.msra.mxu0 0.0
    %2344 = vmatprep.subr.mxu0 0.0
    %2345 = vmatpush1.xpose.msra.mxu0 0.0
    %2346 = vmatprep.subr.mxu0 0.0
    %2347 = vmatpush1.xpose.msra.mxu0 0.0
    %2348 = vmatprep.subr.mxu0 0.0
    %2349 = vmatpush1.xpose.msra.mxu0 0.0
    %2350 = vmatprep.subr.mxu0 0.0
    %2351 = vmatpush1.xpose.msra.mxu0 0.0
    %2352 = vmatprep.subr.mxu0 0.0
    %2353 = vmatpush1.xpose.msra.mxu0 0.0
    %2354 = vmatprep.subr.mxu0 0.0
    %2355 = vmatpush1.xpose.msra.mxu0 %v2322
    %2356 = vmatprep.subr.mxu0 0.0
    %2357 = vmatpush2.xpose.msra.mxu0 0.0
    %2358 = vmatprep.subr.mxu0 0.0
    %2359 = vmatpush2.xpose.msra.mxu0 0.0
    %2360 = vmatprep.subr.mxu0 0.0
    %2361 = vmatpush2.xpose.msra.mxu0 0.0
    %2362 = vmatprep.subr.mxu0 0.0
    %2363 = vmatpush2.xpose.msra.mxu0 0.0
    %2364 = vmatprep.subr.mxu0 0.0
    %2365 = vmatpush2.xpose.msra.mxu0 0.0
    %2366 = vmatprep.subr.mxu0 0.0
    %2367 = vmatpush2.xpose.msra.mxu0 0.0
    %2368 = vmatprep.subr.mxu0 0.0
    %2369 = vmatpush2.xpose.msra.mxu0 0.0
    %2370 = vmatprep.subr.mxu0 0.0
    %2371 = vmatpush2.xpose.msra.mxu0 0.0
    %2372 = vmatprep.subr.mxu0 0.0
    %2373 = vmatpush2.xpose.msra.mxu0 0.0
    %2374 = vmatprep.subr.mxu0 0.0
    %2375 = vmatpush2.xpose.msra.mxu0 0.0
    %2376 = vmatprep.subr.mxu0 0.0
    %2377 = vmatpush2.xpose.msra.mxu0 0.0
    %2378 = vmatprep.subr.mxu0 0.0
    %2379 = vmatpush2.xpose.msra.mxu0 0.0
    %2380 = vmatprep.subr.mxu0 0.0
    %2381 = vmatpush2.xpose.msra.mxu0 0.0
    %2382 = vmatprep.subr.mxu0 0.0
    %2383 = vmatpush2.xpose.msra.mxu0 0.0
    %2384 = vmatprep.subr.mxu0 0.0
    %2385 = vmatpush2.xpose.msra.mxu0 0.0
    %2386 = vmatprep.subr.mxu0 0.0
    %2387 = vmatpush2.xpose.msra.mxu0 0.0
    %2388 = vmatprep.mubr.f32.mxu0 0.0
    %2389 = vmatmul.mubr.f32.gmra.mxu0 %v2320
    %v2390 = vpop.f32.mrf.mxu0
    %v2391 = vadd.f32 0.0, %v2390
    %v2392 = vpop.f32.mrf.mxu0
    %2393 = vdwg.mxu0
    %2394 = vrot.lane.b32.xlu0 %v2009, 96
    %v2395 = vpop.permute.xlu0 %2394
    %v2396 = vsel %vm160, %v2009, 0
    %v2398 = vsel %vm160, %v2395, 0
    %2400 = vmatprep.subr.mxu0 0.0
    %2401 = vmatpush1.xpose.msra.mxu0 0.0
    %2402 = vmatprep.subr.mxu0 0.0
    %2403 = vmatpush1.xpose.msra.mxu0 0.0
    %2404 = vmatprep.subr.mxu0 0.0
    %2405 = vmatpush1.xpose.msra.mxu0 0.0
    %2406 = vmatprep.subr.mxu0 0.0
    %2407 = vmatpush1.xpose.msra.mxu0 0.0
    %2408 = vmatprep.subr.mxu0 0.0
    %2409 = vmatpush1.xpose.msra.mxu0 0.0
    %2410 = vmatprep.subr.mxu0 0.0
    %2411 = vmatpush1.xpose.msra.mxu0 0.0
    %2412 = vmatprep.subr.mxu0 0.0
    %2413 = vmatpush1.xpose.msra.mxu0 0.0
    %2414 = vmatprep.subr.mxu0 0.0
    %2415 = vmatpush1.xpose.msra.mxu0 0.0
    %2416 = vmatprep.subr.mxu0 0.0
    %2417 = vmatpush1.xpose.msra.mxu0 0.0
    %2418 = vmatprep.subr.mxu0 0.0
    %2419 = vmatpush1.xpose.msra.mxu0 0.0
    %2420 = vmatprep.subr.mxu0 0.0
    %2421 = vmatpush1.xpose.msra.mxu0 0.0
    %2422 = vmatprep.subr.mxu0 0.0
    %2423 = vmatpush1.xpose.msra.mxu0 0.0
    %2424 = vmatprep.subr.mxu0 0.0
    %2425 = vmatpush1.xpose.msra.mxu0 0.0
    %2426 = vmatprep.subr.mxu0 0.0
    %2427 = vmatpush1.xpose.msra.mxu0 0.0
    %2428 = vmatprep.subr.mxu0 0.0
    %2429 = vmatpush1.xpose.msra.mxu0 0.0
    %2430 = vmatprep.subr.mxu0 0.0
    %2431 = vmatpush1.xpose.msra.mxu0 %v2398
    %2432 = vmatprep.subr.mxu0 0.0
    %2433 = vmatpush2.xpose.msra.mxu0 0.0
    %2434 = vmatprep.subr.mxu0 0.0
    %2435 = vmatpush2.xpose.msra.mxu0 0.0
    %2436 = vmatprep.subr.mxu0 0.0
    %2437 = vmatpush2.xpose.msra.mxu0 0.0
    %2438 = vmatprep.subr.mxu0 0.0
    %2439 = vmatpush2.xpose.msra.mxu0 0.0
    %2440 = vmatprep.subr.mxu0 0.0
    %2441 = vmatpush2.xpose.msra.mxu0 0.0
    %2442 = vmatprep.subr.mxu0 0.0
    %2443 = vmatpush2.xpose.msra.mxu0 0.0
    %2444 = vmatprep.subr.mxu0 0.0
    %2445 = vmatpush2.xpose.msra.mxu0 0.0
    %2446 = vmatprep.subr.mxu0 0.0
    %2447 = vmatpush2.xpose.msra.mxu0 0.0
    %2448 = vmatprep.subr.mxu0 0.0
    %2449 = vmatpush2.xpose.msra.mxu0 0.0
    %2450 = vmatprep.subr.mxu0 0.0
    %2451 = vmatpush2.xpose.msra.mxu0 0.0
    %2452 = vmatprep.subr.mxu0 0.0
    %2453 = vmatpush2.xpose.msra.mxu0 0.0
    %2454 = vmatprep.subr.mxu0 0.0
    %2455 = vmatpush2.xpose.msra.mxu0 0.0
    %2456 = vmatprep.subr.mxu0 0.0
    %2457 = vmatpush2.xpose.msra.mxu0 0.0
    %2458 = vmatprep.subr.mxu0 0.0
    %2459 = vmatpush2.xpose.msra.mxu0 0.0
    %2460 = vmatprep.subr.mxu0 0.0
    %2461 = vmatpush2.xpose.msra.mxu0 0.0
    %2462 = vmatprep.subr.mxu0 0.0
    %2463 = vmatpush2.xpose.msra.mxu0 0.0
    %2464 = vmatprep.mubr.f32.mxu0 0.0
    %2465 = vmatmul.mubr.f32.gmra.mxu0 %v2396
    %v2466 = vpop.f32.mrf.mxu0
    %v2467 = vadd.f32 0.0, %v2466
    %v2468 = vpop.f32.mrf.mxu0
    %2469 = vdwg.mxu0
    %2470 = vrot.lane.b32.xlu0 %v2011, 96
    %v2471 = vpop.permute.xlu0 %2470
    %v2472 = vsel %vm160, %v2011, 0
    %v2474 = vsel %vm160, %v2471, 0
    %2476 = vmatprep.subr.mxu0 0.0
    %2477 = vmatpush1.xpose.msra.mxu0 0.0
    %2478 = vmatprep.subr.mxu0 0.0
    %2479 = vmatpush1.xpose.msra.mxu0 0.0
    %2480 = vmatprep.subr.mxu0 0.0
    %2481 = vmatpush1.xpose.msra.mxu0 0.0
    %2482 = vmatprep.subr.mxu0 0.0
    %2483 = vmatpush1.xpose.msra.mxu0 0.0
    %2484 = vmatprep.subr.mxu0 0.0
    %2485 = vmatpush1.xpose.msra.mxu0 0.0
    %2486 = vmatprep.subr.mxu0 0.0
    %2487 = vmatpush1.xpose.msra.mxu0 0.0
    %2488 = vmatprep.subr.mxu0 0.0
    %2489 = vmatpush1.xpose.msra.mxu0 0.0
    %2490 = vmatprep.subr.mxu0 0.0
    %2491 = vmatpush1.xpose.msra.mxu0 0.0
    %2492 = vmatprep.subr.mxu0 0.0
    %2493 = vmatpush1.xpose.msra.mxu0 0.0
    %2494 = vmatprep.subr.mxu0 0.0
    %2495 = vmatpush1.xpose.msra.mxu0 0.0
    %2496 = vmatprep.subr.mxu0 0.0
    %2497 = vmatpush1.xpose.msra.mxu0 0.0
    %2498 = vmatprep.subr.mxu0 0.0
    %2499 = vmatpush1.xpose.msra.mxu0 0.0
    %2500 = vmatprep.subr.mxu0 0.0
    %2501 = vmatpush1.xpose.msra.mxu0 0.0
    %2502 = vmatprep.subr.mxu0 0.0
    %2503 = vmatpush1.xpose.msra.mxu0 0.0
    %2504 = vmatprep.subr.mxu0 0.0
    %2505 = vmatpush1.xpose.msra.mxu0 0.0
    %2506 = vmatprep.subr.mxu0 0.0
    %2507 = vmatpush1.xpose.msra.mxu0 %v2474
    %2508 = vmatprep.subr.mxu0 0.0
    %2509 = vmatpush2.xpose.msra.mxu0 0.0
    %2510 = vmatprep.subr.mxu0 0.0
    %2511 = vmatpush2.xpose.msra.mxu0 0.0
    %2512 = vmatprep.subr.mxu0 0.0
    %2513 = vmatpush2.xpose.msra.mxu0 0.0
    %2514 = vmatprep.subr.mxu0 0.0
    %2515 = vmatpush2.xpose.msra.mxu0 0.0
    %2516 = vmatprep.subr.mxu0 0.0
    %2517 = vmatpush2.xpose.msra.mxu0 0.0
    %2518 = vmatprep.subr.mxu0 0.0
    %2519 = vmatpush2.xpose.msra.mxu0 0.0
    %2520 = vmatprep.subr.mxu0 0.0
    %2521 = vmatpush2.xpose.msra.mxu0 0.0
    %2522 = vmatprep.subr.mxu0 0.0
    %2523 = vmatpush2.xpose.msra.mxu0 0.0
    %2524 = vmatprep.subr.mxu0 0.0
    %2525 = vmatpush2.xpose.msra.mxu0 0.0
    %2526 = vmatprep.subr.mxu0 0.0
    %2527 = vmatpush2.xpose.msra.mxu0 0.0
    %2528 = vmatprep.subr.mxu0 0.0
    %2529 = vmatpush2.xpose.msra.mxu0 0.0
    %2530 = vmatprep.subr.mxu0 0.0
    %2531 = vmatpush2.xpose.msra.mxu0 0.0
    %2532 = vmatprep.subr.mxu0 0.0
    %2533 = vmatpush2.xpose.msra.mxu0 0.0
    %2534 = vmatprep.subr.mxu0 0.0
    %2535 = vmatpush2.xpose.msra.mxu0 0.0
    %2536 = vmatprep.subr.mxu0 0.0
    %2537 = vmatpush2.xpose.msra.mxu0 0.0
    %2538 = vmatprep.subr.mxu0 0.0
    %2539 = vmatpush2.xpose.msra.mxu0 0.0
    %2540 = vmatprep.mubr.f32.mxu0 0.0
    %2541 = vmatmul.mubr.f32.gmra.mxu0 %v2472
    %v2542 = vpop.f32.mrf.mxu0
    %v2543 = vadd.f32 0.0, %v2542
    %v2544 = vpop.f32.mrf.mxu0
    %2545 = vdwg.mxu0
    %2546 = vrot.lane.b32.xlu0 %v2013, 96
    %v2547 = vpop.permute.xlu0 %2546
    %v2548 = vsel %vm160, %v2013, 0
    %v2550 = vsel %vm160, %v2547, 0
    %2552 = vmatprep.subr.mxu0 0.0
    %2553 = vmatpush1.xpose.msra.mxu0 0.0
    %2554 = vmatprep.subr.mxu0 0.0
    %2555 = vmatpush1.xpose.msra.mxu0 0.0
    %2556 = vmatprep.subr.mxu0 0.0
    %2557 = vmatpush1.xpose.msra.mxu0 0.0
    %2558 = vmatprep.subr.mxu0 0.0
    %2559 = vmatpush1.xpose.msra.mxu0 0.0
    %2560 = vmatprep.subr.mxu0 0.0
    %2561 = vmatpush1.xpose.msra.mxu0 0.0
    %2562 = vmatprep.subr.mxu0 0.0
    %2563 = vmatpush1.xpose.msra.mxu0 0.0
    %2564 = vmatprep.subr.mxu0 0.0
    %2565 = vmatpush1.xpose.msra.mxu0 0.0
    %2566 = vmatprep.subr.mxu0 0.0
    %2567 = vmatpush1.xpose.msra.mxu0 0.0
    %2568 = vmatprep.subr.mxu0 0.0
    %2569 = vmatpush1.xpose.msra.mxu0 0.0
    %2570 = vmatprep.subr.mxu0 0.0
    %2571 = vmatpush1.xpose.msra.mxu0 0.0
    %2572 = vmatprep.subr.mxu0 0.0
    %2573 = vmatpush1.xpose.msra.mxu0 0.0
    %2574 = vmatprep.subr.mxu0 0.0
    %2575 = vmatpush1.xpose.msra.mxu0 0.0
    %2576 = vmatprep.subr.mxu0 0.0
    %2577 = vmatpush1.xpose.msra.mxu0 0.0
    %2578 = vmatprep.subr.mxu0 0.0
    %2579 = vmatpush1.xpose.msra.mxu0 0.0
    %2580 = vmatprep.subr.mxu0 0.0
    %2581 = vmatpush1.xpose.msra.mxu0 0.0
    %2582 = vmatprep.subr.mxu0 0.0
    %2583 = vmatpush1.xpose.msra.mxu0 %v2550
    %2584 = vmatprep.subr.mxu0 0.0
    %2585 = vmatpush2.xpose.msra.mxu0 0.0
    %2586 = vmatprep.subr.mxu0 0.0
    %2587 = vmatpush2.xpose.msra.mxu0 0.0
    %2588 = vmatprep.subr.mxu0 0.0
    %2589 = vmatpush2.xpose.msra.mxu0 0.0
    %2590 = vmatprep.subr.mxu0 0.0
    %2591 = vmatpush2.xpose.msra.mxu0 0.0
    %2592 = vmatprep.subr.mxu0 0.0
    %2593 = vmatpush2.xpose.msra.mxu0 0.0
    %2594 = vmatprep.subr.mxu0 0.0
    %2595 = vmatpush2.xpose.msra.mxu0 0.0
    %2596 = vmatprep.subr.mxu0 0.0
    %2597 = vmatpush2.xpose.msra.mxu0 0.0
    %2598 = vmatprep.subr.mxu0 0.0
    %2599 = vmatpush2.xpose.msra.mxu0 0.0
    %2600 = vmatprep.subr.mxu0 0.0
    %2601 = vmatpush2.xpose.msra.mxu0 0.0
    %2602 = vmatprep.subr.mxu0 0.0
    %2603 = vmatpush2.xpose.msra.mxu0 0.0
    %2604 = vmatprep.subr.mxu0 0.0
    %2605 = vmatpush2.xpose.msra.mxu0 0.0
    %2606 = vmatprep.subr.mxu0 0.0
    %2607 = vmatpush2.xpose.msra.mxu0 0.0
    %2608 = vmatprep.subr.mxu0 0.0
    %2609 = vmatpush2.xpose.msra.mxu0 0.0
    %2610 = vmatprep.subr.mxu0 0.0
    %2611 = vmatpush2.xpose.msra.mxu0 0.0
    %2612 = vmatprep.subr.mxu0 0.0
    %2613 = vmatpush2.xpose.msra.mxu0 0.0
    %2614 = vmatprep.subr.mxu0 0.0
    %2615 = vmatpush2.xpose.msra.mxu0 0.0
    %2616 = vmatprep.mubr.f32.mxu0 0.0
    %2617 = vmatmul.mubr.f32.gmra.mxu0 %v2548
    %v2618 = vpop.f32.mrf.mxu0
    %v2619 = vadd.f32 0.0, %v2618
    %v2620 = vpop.f32.mrf.mxu0
    %2621 = vdwg.mxu0
    %v2622 = vmul.f32 %v2087, 0.35355338
    %v2623 = vmul.f32 %v2163, 0.35355338
    %v2624 = vmul.f32 %v2239, 0.35355338
    %v2625 = vmul.f32 %v2315, 0.35355338
    %v2626 = vmul.f32 %v2391, 0.35355338
    %v2627 = vmul.f32 %v2467, 0.35355338
    %v2628 = vmul.f32 %v2543, 0.35355338
    %v2629 = vmul.f32 %v2619, 0.35355338
    %v2630 = vadd.f32 %v2622, %v798
    %v2631 = vadd.f32 %v2623, %v804
    %v2632 = vadd.f32 %v2624, %v798
    %v2633 = vadd.f32 %v2625, %v804
    %v2634 = vadd.f32 %v2626, %v798
    %v2635 = vadd.f32 %v2627, %v804
    %v2636 = vadd.f32 %v2628, %v798
    %v2637 = vadd.f32 %v2629, %v804
    %v2638 = vsel %vm160, %v2630, -inf
    %2639 = vmax.xlane.f32.xlu0 %v2638
    %v2640 = vpop.xlane.xlu0 %2639
    %v2641 = vsel %vm160, %v2631, -inf
    %2642 = vmax.xlane.f32.xlu0 %v2641
    %v2643 = vpop.xlane.xlu0 %2642
    %v2644 = vsel %vm160, %v2632, -inf
    %2645 = vmax.xlane.f32.xlu0 %v2644
    %v2646 = vpop.xlane.xlu0 %2645
    %v2647 = vsel %vm160, %v2633, -inf
    %2648 = vmax.xlane.f32.xlu0 %v2647
    %v2649 = vpop.xlane.xlu0 %2648
    %v2650 = vsel %vm160, %v2634, -inf
    %2651 = vmax.xlane.f32.xlu0 %v2650
    %v2652 = vpop.xlane.xlu0 %2651
    %v2653 = vsel %vm160, %v2635, -inf
    %2654 = vmax.xlane.f32.xlu0 %v2653
    %v2655 = vpop.xlane.xlu0 %2654
    %v2656 = vsel %vm160, %v2636, -inf
    %2657 = vmax.xlane.f32.xlu0 %v2656
    %v2658 = vpop.xlane.xlu0 %2657
    %v2659 = vsel %vm160, %v2637, -inf
    %2660 = vmax.xlane.f32.xlu0 %v2659
    %v2661 = vpop.xlane.xlu0 %2660
    %v2662 = vsub.f32 %v2630, %v2640
    %v2663 = vsub.f32 %v2631, %v2643
    %v2664 = vsub.f32 %v2632, %v2646
    %v2665 = vsub.f32 %v2633, %v2649
    %v2666 = vsub.f32 %v2634, %v2652
    %v2667 = vsub.f32 %v2635, %v2655
    %v2668 = vsub.f32 %v2636, %v2658
    %v2669 = vsub.f32 %v2637, %v2661
    %v2670 = vmul.f32 %v2662, 1.442695
    %v2671 = vpow.pop %v2670
    %v2672 = vmul.f32 %v2663, 1.442695
    %v2673 = vpow.pop %v2672
    %v2674 = vmul.f32 %v2664, 1.442695
    %v2675 = vpow.pop %v2674
    %v2676 = vmul.f32 %v2665, 1.442695
    %v2677 = vpow.pop %v2676
    %v2678 = vmul.f32 %v2666, 1.442695
    %v2679 = vpow.pop %v2678
    %v2680 = vmul.f32 %v2667, 1.442695
    %v2681 = vpow.pop %v2680
    %v2682 = vmul.f32 %v2668, 1.442695
    %v2683 = vpow.pop %v2682
    %v2684 = vmul.f32 %v2669, 1.442695
    %v2685 = vpow.pop %v2684
    %v2686 = vsel %vm160, %v2671, 0.0
    %2687 = vadd.xlane.f32.xlu0 %v2686
    %v2688 = vpop.xlane.xlu0 %2687
    %v2689 = vsel %vm160, %v2673, 0.0
    %2690 = vadd.xlane.f32.xlu0 %v2689
    %v2691 = vpop.xlane.xlu0 %2690
    %v2692 = vsel %vm160, %v2675, 0.0
    %2693 = vadd.xlane.f32.xlu0 %v2692
    %v2694 = vpop.xlane.xlu0 %2693
    %v2695 = vsel %vm160, %v2677, 0.0
    %2696 = vadd.xlane.f32.xlu0 %v2695
    %v2697 = vpop.xlane.xlu0 %2696
    %v2698 = vsel %vm160, %v2679, 0.0
    %2699 = vadd.xlane.f32.xlu0 %v2698
    %v2700 = vpop.xlane.xlu0 %2699
    %v2701 = vsel %vm160, %v2681, 0.0
    %2702 = vadd.xlane.f32.xlu0 %v2701
    %v2703 = vpop.xlane.xlu0 %2702
    %v2704 = vsel %vm160, %v2683, 0.0
    %2705 = vadd.xlane.f32.xlu0 %v2704
    %v2706 = vpop.xlane.xlu0 %2705
    %v2707 = vsel %vm160, %v2685, 0.0
    %2708 = vadd.xlane.f32.xlu0 %v2707
    %v2709 = vpop.xlane.xlu0 %2708
    %v2710 = vrcp.pop %v2688
    %v2711 = vrcp.pop %v2691
    %v2712 = vrcp.pop %v2694
    %v2713 = vrcp.pop %v2697
    %v2714 = vrcp.pop %v2700
    %v2715 = vrcp.pop %v2703
    %v2716 = vrcp.pop %v2706
    %v2717 = vrcp.pop %v2709
    %v2718 = vmul.f32 %v2671, %v2710
    %v2719 = vmul.f32 %v2673, %v2711
    %v2720 = vmul.f32 %v2675, %v2712
    %v2721 = vmul.f32 %v2677, %v2713
    %v2722 = vmul.f32 %v2679, %v2714
    %v2723 = vmul.f32 %v2681, %v2715
    %v2724 = vmul.f32 %v2683, %v2716
    %v2725 = vmul.f32 %v2685, %v2717
    %2726 = vrot.lane.b32.xlu0 %v1992, 64
    %v2727 = vpop.permute.xlu0 %2726
    %v2730 = vsel %vm160, %v2718, 0
    %2732 = vmatprep.subr.mxu0 0.0
    %2733 = vmatpush1.msra.mxu0 0.0
    %2734 = vmatprep.subr.mxu0 0.0
    %2735 = vmatpush1.msra.mxu0 0.0
    %2736 = vmatprep.subr.mxu0 0.0
    %2737 = vmatpush1.msra.mxu0 0.0
    %2738 = vmatprep.subr.mxu0 0.0
    %2739 = vmatpush1.msra.mxu0 0.0
    %2740 = vmatprep.subr.mxu0 0.0
    %2741 = vmatpush1.msra.mxu0 0.0
    %2742 = vmatprep.subr.mxu0 0.0
    %2743 = vmatpush1.msra.mxu0 0.0
    %2744 = vmatprep.subr.mxu0 0.0
    %2745 = vmatpush1.msra.mxu0 0.0
    %2746 = vmatprep.subr.mxu0 0.0
    %2747 = vmatpush1.msra.mxu0 0.0
    %2748 = vmatprep.subr.mxu0 0.0
    %2749 = vmatpush1.msra.mxu0 0.0
    %2750 = vmatprep.subr.mxu0 0.0
    %2751 = vmatpush1.msra.mxu0 0.0
    %2752 = vmatprep.subr.mxu0 0.0
    %2753 = vmatpush1.msra.mxu0 0.0
    %2754 = vmatprep.subr.mxu0 0.0
    %2755 = vmatpush1.msra.mxu0 0.0
    %2756 = vmatprep.subr.mxu0 0.0
    %2757 = vmatpush1.msra.mxu0 0.0
    %2758 = vmatprep.subr.mxu0 0.0
    %2759 = vmatpush1.msra.mxu0 0.0
    %2760 = vmatprep.subr.mxu0 0.0
    %2761 = vmatpush1.msra.mxu0 0.0
    %2762 = vmatprep.subr.mxu0 0.0
    %2763 = vmatpush1.msra.mxu0 %v2727
    %2764 = vmatprep.subr.mxu0 0.0
    %2765 = vmatpush2.msra.mxu0 0.0
    %2766 = vmatprep.subr.mxu0 0.0
    %2767 = vmatpush2.msra.mxu0 0.0
    %2768 = vmatprep.subr.mxu0 0.0
    %2769 = vmatpush2.msra.mxu0 0.0
    %2770 = vmatprep.subr.mxu0 0.0
    %2771 = vmatpush2.msra.mxu0 0.0
    %2772 = vmatprep.subr.mxu0 0.0
    %2773 = vmatpush2.msra.mxu0 0.0
    %2774 = vmatprep.subr.mxu0 0.0
    %2775 = vmatpush2.msra.mxu0 0.0
    %2776 = vmatprep.subr.mxu0 0.0
    %2777 = vmatpush2.msra.mxu0 0.0
    %2778 = vmatprep.subr.mxu0 0.0
    %2779 = vmatpush2.msra.mxu0 0.0
    %2780 = vmatprep.subr.mxu0 0.0
    %2781 = vmatpush2.msra.mxu0 0.0
    %2782 = vmatprep.subr.mxu0 0.0
    %2783 = vmatpush2.msra.mxu0 0.0
    %2784 = vmatprep.subr.mxu0 0.0
    %2785 = vmatpush2.msra.mxu0 0.0
    %2786 = vmatprep.subr.mxu0 0.0
    %2787 = vmatpush2.msra.mxu0 0.0
    %2788 = vmatprep.subr.mxu0 0.0
    %2789 = vmatpush2.msra.mxu0 0.0
    %2790 = vmatprep.subr.mxu0 0.0
    %2791 = vmatpush2.msra.mxu0 0.0
    %2792 = vmatprep.subr.mxu0 0.0
    %2793 = vmatpush2.msra.mxu0 0.0
    %2794 = vmatprep.subr.mxu0 0.0
    %2795 = vmatpush2.msra.mxu0 0.0
    %2796 = vmatprep.mubr.f32.mxu0 0.0
    %2797 = vmatmul.mubr.f32.gmra.mxu0 %v2730
    %v2798 = vpop.f32.mrf.mxu0
    %v2799 = vadd.f32 0.0, %v2798
    %v2800 = vpop.f32.mrf.mxu0
    %2801 = vdwg.mxu0
    %2802 = vrot.lane.b32.xlu0 %v1997, 64
    %v2803 = vpop.permute.xlu0 %2802
    %v2806 = vsel %vm160, %v2719, 0
    %2808 = vmatprep.subr.mxu0 0.0
    %2809 = vmatpush1.msra.mxu0 0.0
    %2810 = vmatprep.subr.mxu0 0.0
    %2811 = vmatpush1.msra.mxu0 0.0
    %2812 = vmatprep.subr.mxu0 0.0
    %2813 = vmatpush1.msra.mxu0 0.0
    %2814 = vmatprep.subr.mxu0 0.0
    %2815 = vmatpush1.msra.mxu0 0.0
    %2816 = vmatprep.subr.mxu0 0.0
    %2817 = vmatpush1.msra.mxu0 0.0
    %2818 = vmatprep.subr.mxu0 0.0
    %2819 = vmatpush1.msra.mxu0 0.0
    %2820 = vmatprep.subr.mxu0 0.0
    %2821 = vmatpush1.msra.mxu0 0.0
    %2822 = vmatprep.subr.mxu0 0.0
    %2823 = vmatpush1.msra.mxu0 0.0
    %2824 = vmatprep.subr.mxu0 0.0
    %2825 = vmatpush1.msra.mxu0 0.0
    %2826 = vmatprep.subr.mxu0 0.0
    %2827 = vmatpush1.msra.mxu0 0.0
    %2828 = vmatprep.subr.mxu0 0.0
    %2829 = vmatpush1.msra.mxu0 0.0
    %2830 = vmatprep.subr.mxu0 0.0
    %2831 = vmatpush1.msra.mxu0 0.0
    %2832 = vmatprep.subr.mxu0 0.0
    %2833 = vmatpush1.msra.mxu0 0.0
    %2834 = vmatprep.subr.mxu0 0.0
    %2835 = vmatpush1.msra.mxu0 0.0
    %2836 = vmatprep.subr.mxu0 0.0
    %2837 = vmatpush1.msra.mxu0 0.0
    %2838 = vmatprep.subr.mxu0 0.0
    %2839 = vmatpush1.msra.mxu0 %v2803
    %2840 = vmatprep.subr.mxu0 0.0
    %2841 = vmatpush2.msra.mxu0 0.0
    %2842 = vmatprep.subr.mxu0 0.0
    %2843 = vmatpush2.msra.mxu0 0.0
    %2844 = vmatprep.subr.mxu0 0.0
    %2845 = vmatpush2.msra.mxu0 0.0
    %2846 = vmatprep.subr.mxu0 0.0
    %2847 = vmatpush2.msra.mxu0 0.0
    %2848 = vmatprep.subr.mxu0 0.0
    %2849 = vmatpush2.msra.mxu0 0.0
    %2850 = vmatprep.subr.mxu0 0.0
    %2851 = vmatpush2.msra.mxu0 0.0
    %2852 = vmatprep.subr.mxu0 0.0
    %2853 = vmatpush2.msra.mxu0 0.0
    %2854 = vmatprep.subr.mxu0 0.0
    %2855 = vmatpush2.msra.mxu0 0.0
    %2856 = vmatprep.subr.mxu0 0.0
    %2857 = vmatpush2.msra.mxu0 0.0
    %2858 = vmatprep.subr.mxu0 0.0
    %2859 = vmatpush2.msra.mxu0 0.0
    %2860 = vmatprep.subr.mxu0 0.0
    %2861 = vmatpush2.msra.mxu0 0.0
    %2862 = vmatprep.subr.mxu0 0.0
    %2863 = vmatpush2.msra.mxu0 0.0
    %2864 = vmatprep.subr.mxu0 0.0
    %2865 = vmatpush2.msra.mxu0 0.0
    %2866 = vmatprep.subr.mxu0 0.0
    %2867 = vmatpush2.msra.mxu0 0.0
    %2868 = vmatprep.subr.mxu0 0.0
    %2869 = vmatpush2.msra.mxu0 0.0
    %2870 = vmatprep.subr.mxu0 0.0
    %2871 = vmatpush2.msra.mxu0 0.0
    %2872 = vmatprep.mubr.f32.mxu0 0.0
    %2873 = vmatmul.mubr.f32.gmra.mxu0 %v2806
    %v2874 = vpop.f32.mrf.mxu0
    %v2875 = vadd.f32 0.0, %v2874
    %v2876 = vpop.f32.mrf.mxu0
    %2877 = vdwg.mxu0
    %2878 = vrot.lane.b32.xlu0 %v2003, 64
    %v2879 = vpop.permute.xlu0 %2878
    %v2882 = vsel %vm160, %v2720, 0
    %2884 = vmatprep.subr.mxu0 0.0
    %2885 = vmatpush1.msra.mxu0 0.0
    %2886 = vmatprep.subr.mxu0 0.0
    %2887 = vmatpush1.msra.mxu0 0.0
    %2888 = vmatprep.subr.mxu0 0.0
    %2889 = vmatpush1.msra.mxu0 0.0
    %2890 = vmatprep.subr.mxu0 0.0
    %2891 = vmatpush1.msra.mxu0 0.0
    %2892 = vmatprep.subr.mxu0 0.0
    %2893 = vmatpush1.msra.mxu0 0.0
    %2894 = vmatprep.subr.mxu0 0.0
    %2895 = vmatpush1.msra.mxu0 0.0
    %2896 = vmatprep.subr.mxu0 0.0
    %2897 = vmatpush1.msra.mxu0 0.0
    %2898 = vmatprep.subr.mxu0 0.0
    %2899 = vmatpush1.msra.mxu0 0.0
    %2900 = vmatprep.subr.mxu0 0.0
    %2901 = vmatpush1.msra.mxu0 0.0
    %2902 = vmatprep.subr.mxu0 0.0
    %2903 = vmatpush1.msra.mxu0 0.0
    %2904 = vmatprep.subr.mxu0 0.0
    %2905 = vmatpush1.msra.mxu0 0.0
    %2906 = vmatprep.subr.mxu0 0.0
    %2907 = vmatpush1.msra.mxu0 0.0
    %2908 = vmatprep.subr.mxu0 0.0
    %2909 = vmatpush1.msra.mxu0 0.0
    %2910 = vmatprep.subr.mxu0 0.0
    %2911 = vmatpush1.msra.mxu0 0.0
    %2912 = vmatprep.subr.mxu0 0.0
    %2913 = vmatpush1.msra.mxu0 0.0
    %2914 = vmatprep.subr.mxu0 0.0
    %2915 = vmatpush1.msra.mxu0 %v2879
    %2916 = vmatprep.subr.mxu0 0.0
    %2917 = vmatpush2.msra.mxu0 0.0
    %2918 = vmatprep.subr.mxu0 0.0
    %2919 = vmatpush2.msra.mxu0 0.0
    %2920 = vmatprep.subr.mxu0 0.0
    %2921 = vmatpush2.msra.mxu0 0.0
    %2922 = vmatprep.subr.mxu0 0.0
    %2923 = vmatpush2.msra.mxu0 0.0
    %2924 = vmatprep.subr.mxu0 0.0
    %2925 = vmatpush2.msra.mxu0 0.0
    %2926 = vmatprep.subr.mxu0 0.0
    %2927 = vmatpush2.msra.mxu0 0.0
    %2928 = vmatprep.subr.mxu0 0.0
    %2929 = vmatpush2.msra.mxu0 0.0
    %2930 = vmatprep.subr.mxu0 0.0
    %2931 = vmatpush2.msra.mxu0 0.0
    %2932 = vmatprep.subr.mxu0 0.0
    %2933 = vmatpush2.msra.mxu0 0.0
    %2934 = vmatprep.subr.mxu0 0.0
    %2935 = vmatpush2.msra.mxu0 0.0
    %2936 = vmatprep.subr.mxu0 0.0
    %2937 = vmatpush2.msra.mxu0 0.0
    %2938 = vmatprep.subr.mxu0 0.0
    %2939 = vmatpush2.msra.mxu0 0.0
    %2940 = vmatprep.subr.mxu0 0.0
    %2941 = vmatpush2.msra.mxu0 0.0
    %2942 = vmatprep.subr.mxu0 0.0
    %2943 = vmatpush2.msra.mxu0 0.0
    %2944 = vmatprep.subr.mxu0 0.0
    %2945 = vmatpush2.msra.mxu0 0.0
    %2946 = vmatprep.subr.mxu0 0.0
    %2947 = vmatpush2.msra.mxu0 0.0
    %2948 = vmatprep.mubr.f32.mxu0 0.0
    %2949 = vmatmul.mubr.f32.gmra.mxu0 %v2882
    %v2950 = vpop.f32.mrf.mxu0
    %v2951 = vadd.f32 0.0, %v2950
    %v2952 = vpop.f32.mrf.mxu0
    %2953 = vdwg.mxu0
    %2954 = vrot.lane.b32.xlu0 %v2005, 64
    %v2955 = vpop.permute.xlu0 %2954
    %v2958 = vsel %vm160, %v2721, 0
    %2960 = vmatprep.subr.mxu0 0.0
    %2961 = vmatpush1.msra.mxu0 0.0
    %2962 = vmatprep.subr.mxu0 0.0
    %2963 = vmatpush1.msra.mxu0 0.0
    %2964 = vmatprep.subr.mxu0 0.0
    %2965 = vmatpush1.msra.mxu0 0.0
    %2966 = vmatprep.subr.mxu0 0.0
    %2967 = vmatpush1.msra.mxu0 0.0
    %2968 = vmatprep.subr.mxu0 0.0
    %2969 = vmatpush1.msra.mxu0 0.0
    %2970 = vmatprep.subr.mxu0 0.0
    %2971 = vmatpush1.msra.mxu0 0.0
    %2972 = vmatprep.subr.mxu0 0.0
    %2973 = vmatpush1.msra.mxu0 0.0
    %2974 = vmatprep.subr.mxu0 0.0
    %2975 = vmatpush1.msra.mxu0 0.0
    %2976 = vmatprep.subr.mxu0 0.0
    %2977 = vmatpush1.msra.mxu0 0.0
    %2978 = vmatprep.subr.mxu0 0.0
    %2979 = vmatpush1.msra.mxu0 0.0
    %2980 = vmatprep.subr.mxu0 0.0
    %2981 = vmatpush1.msra.mxu0 0.0
    %2982 = vmatprep.subr.mxu0 0.0
    %2983 = vmatpush1.msra.mxu0 0.0
    %2984 = vmatprep.subr.mxu0 0.0
    %2985 = vmatpush1.msra.mxu0 0.0
    %2986 = vmatprep.subr.mxu0 0.0
    %2987 = vmatpush1.msra.mxu0 0.0
    %2988 = vmatprep.subr.mxu0 0.0
    %2989 = vmatpush1.msra.mxu0 0.0
    %2990 = vmatprep.subr.mxu0 0.0
    %2991 = vmatpush1.msra.mxu0 %v2955
    %2992 = vmatprep.subr.mxu0 0.0
    %2993 = vmatpush2.msra.mxu0 0.0
    %2994 = vmatprep.subr.mxu0 0.0
    %2995 = vmatpush2.msra.mxu0 0.0
    %2996 = vmatprep.subr.mxu0 0.0
    %2997 = vmatpush2.msra.mxu0 0.0
    %2998 = vmatprep.subr.mxu0 0.0
    %2999 = vmatpush2.msra.mxu0 0.0
    %3000 = vmatprep.subr.mxu0 0.0
    %3001 = vmatpush2.msra.mxu0 0.0
    %3002 = vmatprep.subr.mxu0 0.0
    %3003 = vmatpush2.msra.mxu0 0.0
    %3004 = vmatprep.subr.mxu0 0.0
    %3005 = vmatpush2.msra.mxu0 0.0
    %3006 = vmatprep.subr.mxu0 0.0
    %3007 = vmatpush2.msra.mxu0 0.0
    %3008 = vmatprep.subr.mxu0 0.0
    %3009 = vmatpush2.msra.mxu0 0.0
    %3010 = vmatprep.subr.mxu0 0.0
    %3011 = vmatpush2.msra.mxu0 0.0
    %3012 = vmatprep.subr.mxu0 0.0
    %3013 = vmatpush2.msra.mxu0 0.0
    %3014 = vmatprep.subr.mxu0 0.0
    %3015 = vmatpush2.msra.mxu0 0.0
    %3016 = vmatprep.subr.mxu0 0.0
    %3017 = vmatpush2.msra.mxu0 0.0
    %3018 = vmatprep.subr.mxu0 0.0
    %3019 = vmatpush2.msra.mxu0 0.0
    %3020 = vmatprep.subr.mxu0 0.0
    %3021 = vmatpush2.msra.mxu0 0.0
    %3022 = vmatprep.subr.mxu0 0.0
    %3023 = vmatpush2.msra.mxu0 0.0
    %3024 = vmatprep.mubr.f32.mxu0 0.0
    %3025 = vmatmul.mubr.f32.gmra.mxu0 %v2958
    %v3026 = vpop.f32.mrf.mxu0
    %v3027 = vadd.f32 0.0, %v3026
    %v3028 = vpop.f32.mrf.mxu0
    %3029 = vdwg.mxu0
    %3030 = vrot.lane.b32.xlu0 %v2007, 64
    %v3031 = vpop.permute.xlu0 %3030
    %v3034 = vsel %vm160, %v2722, 0
    %3036 = vmatprep.subr.mxu0 0.0
    %3037 = vmatpush1.msra.mxu0 0.0
    %3038 = vmatprep.subr.mxu0 0.0
    %3039 = vmatpush1.msra.mxu0 0.0
    %3040 = vmatprep.subr.mxu0 0.0
    %3041 = vmatpush1.msra.mxu0 0.0
    %3042 = vmatprep.subr.mxu0 0.0
    %3043 = vmatpush1.msra.mxu0 0.0
    %3044 = vmatprep.subr.mxu0 0.0
    %3045 = vmatpush1.msra.mxu0 0.0
    %3046 = vmatprep.subr.mxu0 0.0
    %3047 = vmatpush1.msra.mxu0 0.0
    %3048 = vmatprep.subr.mxu0 0.0
    %3049 = vmatpush1.msra.mxu0 0.0
    %3050 = vmatprep.subr.mxu0 0.0
    %3051 = vmatpush1.msra.mxu0 0.0
    %3052 = vmatprep.subr.mxu0 0.0
    %3053 = vmatpush1.msra.mxu0 0.0
    %3054 = vmatprep.subr.mxu0 0.0
    %3055 = vmatpush1.msra.mxu0 0.0
    %3056 = vmatprep.subr.mxu0 0.0
    %3057 = vmatpush1.msra.mxu0 0.0
    %3058 = vmatprep.subr.mxu0 0.0
    %3059 = vmatpush1.msra.mxu0 0.0
    %3060 = vmatprep.subr.mxu0 0.0
    %3061 = vmatpush1.msra.mxu0 0.0
    %3062 = vmatprep.subr.mxu0 0.0
    %3063 = vmatpush1.msra.mxu0 0.0
    %3064 = vmatprep.subr.mxu0 0.0
    %3065 = vmatpush1.msra.mxu0 0.0
    %3066 = vmatprep.subr.mxu0 0.0
    %3067 = vmatpush1.msra.mxu0 %v3031
    %3068 = vmatprep.subr.mxu0 0.0
    %3069 = vmatpush2.msra.mxu0 0.0
    %3070 = vmatprep.subr.mxu0 0.0
    %3071 = vmatpush2.msra.mxu0 0.0
    %3072 = vmatprep.subr.mxu0 0.0
    %3073 = vmatpush2.msra.mxu0 0.0
    %3074 = vmatprep.subr.mxu0 0.0
    %3075 = vmatpush2.msra.mxu0 0.0
    %3076 = vmatprep.subr.mxu0 0.0
    %3077 = vmatpush2.msra.mxu0 0.0
    %3078 = vmatprep.subr.mxu0 0.0
    %3079 = vmatpush2.msra.mxu0 0.0
    %3080 = vmatprep.subr.mxu0 0.0
    %3081 = vmatpush2.msra.mxu0 0.0
    %3082 = vmatprep.subr.mxu0 0.0
    %3083 = vmatpush2.msra.mxu0 0.0
    %3084 = vmatprep.subr.mxu0 0.0
    %3085 = vmatpush2.msra.mxu0 0.0
    %3086 = vmatprep.subr.mxu0 0.0
    %3087 = vmatpush2.msra.mxu0 0.0
    %3088 = vmatprep.subr.mxu0 0.0
    %3089 = vmatpush2.msra.mxu0 0.0
    %3090 = vmatprep.subr.mxu0 0.0
    %3091 = vmatpush2.msra.mxu0 0.0
    %3092 = vmatprep.subr.mxu0 0.0
    %3093 = vmatpush2.msra.mxu0 0.0
    %3094 = vmatprep.subr.mxu0 0.0
    %3095 = vmatpush2.msra.mxu0 0.0
    %3096 = vmatprep.subr.mxu0 0.0
    %3097 = vmatpush2.msra.mxu0 0.0
    %3098 = vmatprep.subr.mxu0 0.0
    %3099 = vmatpush2.msra.mxu0 0.0
    %3100 = vmatprep.mubr.f32.mxu0 0.0
    %3101 = vmatmul.mubr.f32.gmra.mxu0 %v3034
    %v3102 = vpop.f32.mrf.mxu0
    %v3103 = vadd.f32 0.0, %v3102
    %v3104 = vpop.f32.mrf.mxu0
    %3105 = vdwg.mxu0
    %3106 = vrot.lane.b32.xlu0 %v2009, 64
    %v3107 = vpop.permute.xlu0 %3106
    %v3110 = vsel %vm160, %v2723, 0
    %3112 = vmatprep.subr.mxu0 0.0
    %3113 = vmatpush1.msra.mxu0 0.0
    %3114 = vmatprep.subr.mxu0 0.0
    %3115 = vmatpush1.msra.mxu0 0.0
    %3116 = vmatprep.subr.mxu0 0.0
    %3117 = vmatpush1.msra.mxu0 0.0
    %3118 = vmatprep.subr.mxu0 0.0
    %3119 = vmatpush1.msra.mxu0 0.0
    %3120 = vmatprep.subr.mxu0 0.0
    %3121 = vmatpush1.msra.mxu0 0.0
    %3122 = vmatprep.subr.mxu0 0.0
    %3123 = vmatpush1.msra.mxu0 0.0
    %3124 = vmatprep.subr.mxu0 0.0
    %3125 = vmatpush1.msra.mxu0 0.0
    %3126 = vmatprep.subr.mxu0 0.0
    %3127 = vmatpush1.msra.mxu0 0.0
    %3128 = vmatprep.subr.mxu0 0.0
    %3129 = vmatpush1.msra.mxu0 0.0
    %3130 = vmatprep.subr.mxu0 0.0
    %3131 = vmatpush1.msra.mxu0 0.0
    %3132 = vmatprep.subr.mxu0 0.0
    %3133 = vmatpush1.msra.mxu0 0.0
    %3134 = vmatprep.subr.mxu0 0.0
    %3135 = vmatpush1.msra.mxu0 0.0
    %3136 = vmatprep.subr.mxu0 0.0
    %3137 = vmatpush1.msra.mxu0 0.0
    %3138 = vmatprep.subr.mxu0 0.0
    %3139 = vmatpush1.msra.mxu0 0.0
    %3140 = vmatprep.subr.mxu0 0.0
    %3141 = vmatpush1.msra.mxu0 0.0
    %3142 = vmatprep.subr.mxu0 0.0
    %3143 = vmatpush1.msra.mxu0 %v3107
    %3144 = vmatprep.subr.mxu0 0.0
    %3145 = vmatpush2.msra.mxu0 0.0
    %3146 = vmatprep.subr.mxu0 0.0
    %3147 = vmatpush2.msra.mxu0 0.0
    %3148 = vmatprep.subr.mxu0 0.0
    %3149 = vmatpush2.msra.mxu0 0.0
    %3150 = vmatprep.subr.mxu0 0.0
    %3151 = vmatpush2.msra.mxu0 0.0
    %3152 = vmatprep.subr.mxu0 0.0
    %3153 = vmatpush2.msra.mxu0 0.0
    %3154 = vmatprep.subr.mxu0 0.0
    %3155 = vmatpush2.msra.mxu0 0.0
    %3156 = vmatprep.subr.mxu0 0.0
    %3157 = vmatpush2.msra.mxu0 0.0
    %3158 = vmatprep.subr.mxu0 0.0
    %3159 = vmatpush2.msra.mxu0 0.0
    %3160 = vmatprep.subr.mxu0 0.0
    %3161 = vmatpush2.msra.mxu0 0.0
    %3162 = vmatprep.subr.mxu0 0.0
    %3163 = vmatpush2.msra.mxu0 0.0
    %3164 = vmatprep.subr.mxu0 0.0
    %3165 = vmatpush2.msra.mxu0 0.0
    %3166 = vmatprep.subr.mxu0 0.0
    %3167 = vmatpush2.msra.mxu0 0.0
    %3168 = vmatprep.subr.mxu0 0.0
    %3169 = vmatpush2.msra.mxu0 0.0
    %3170 = vmatprep.subr.mxu0 0.0
    %3171 = vmatpush2.msra.mxu0 0.0
    %3172 = vmatprep.subr.mxu0 0.0
    %3173 = vmatpush2.msra.mxu0 0.0
    %3174 = vmatprep.subr.mxu0 0.0
    %3175 = vmatpush2.msra.mxu0 0.0
    %3176 = vmatprep.mubr.f32.mxu0 0.0
    %3177 = vmatmul.mubr.f32.gmra.mxu0 %v3110
    %v3178 = vpop.f32.mrf.mxu0
    %v3179 = vadd.f32 0.0, %v3178
    %v3180 = vpop.f32.mrf.mxu0
    %3181 = vdwg.mxu0
    %3182 = vrot.lane.b32.xlu0 %v2011, 64
    %v3183 = vpop.permute.xlu0 %3182
    %v3186 = vsel %vm160, %v2724, 0
    %3188 = vmatprep.subr.mxu0 0.0
    %3189 = vmatpush1.msra.mxu0 0.0
    %3190 = vmatprep.subr.mxu0 0.0
    %3191 = vmatpush1.msra.mxu0 0.0
    %3192 = vmatprep.subr.mxu0 0.0
    %3193 = vmatpush1.msra.mxu0 0.0
    %3194 = vmatprep.subr.mxu0 0.0
    %3195 = vmatpush1.msra.mxu0 0.0
    %3196 = vmatprep.subr.mxu0 0.0
    %3197 = vmatpush1.msra.mxu0 0.0
    %3198 = vmatprep.subr.mxu0 0.0
    %3199 = vmatpush1.msra.mxu0 0.0
    %3200 = vmatprep.subr.mxu0 0.0
    %3201 = vmatpush1.msra.mxu0 0.0
    %3202 = vmatprep.subr.mxu0 0.0
    %3203 = vmatpush1.msra.mxu0 0.0
    %3204 = vmatprep.subr.mxu0 0.0
    %3205 = vmatpush1.msra.mxu0 0.0
    %3206 = vmatprep.subr.mxu0 0.0
    %3207 = vmatpush1.msra.mxu0 0.0
    %3208 = vmatprep.subr.mxu0 0.0
    %3209 = vmatpush1.msra.mxu0 0.0
    %3210 = vmatprep.subr.mxu0 0.0
    %3211 = vmatpush1.msra.mxu0 0.0
    %3212 = vmatprep.subr.mxu0 0.0
    %3213 = vmatpush1.msra.mxu0 0.0
    %3214 = vmatprep.subr.mxu0 0.0
    %3215 = vmatpush1.msra.mxu0 0.0
    %3216 = vmatprep.subr.mxu0 0.0
    %3217 = vmatpush1.msra.mxu0 0.0
    %3218 = vmatprep.subr.mxu0 0.0
    %3219 = vmatpush1.msra.mxu0 %v3183
    %3220 = vmatprep.subr.mxu0 0.0
    %3221 = vmatpush2.msra.mxu0 0.0
    %3222 = vmatprep.subr.mxu0 0.0
    %3223 = vmatpush2.msra.mxu0 0.0
    %3224 = vmatprep.subr.mxu0 0.0
    %3225 = vmatpush2.msra.mxu0 0.0
    %3226 = vmatprep.subr.mxu0 0.0
    %3227 = vmatpush2.msra.mxu0 0.0
    %3228 = vmatprep.subr.mxu0 0.0
    %3229 = vmatpush2.msra.mxu0 0.0
    %3230 = vmatprep.subr.mxu0 0.0
    %3231 = vmatpush2.msra.mxu0 0.0
    %3232 = vmatprep.subr.mxu0 0.0
    %3233 = vmatpush2.msra.mxu0 0.0
    %3234 = vmatprep.subr.mxu0 0.0
    %3235 = vmatpush2.msra.mxu0 0.0
    %3236 = vmatprep.subr.mxu0 0.0
    %3237 = vmatpush2.msra.mxu0 0.0
    %3238 = vmatprep.subr.mxu0 0.0
    %3239 = vmatpush2.msra.mxu0 0.0
    %3240 = vmatprep.subr.mxu0 0.0
    %3241 = vmatpush2.msra.mxu0 0.0
    %3242 = vmatprep.subr.mxu0 0.0
    %3243 = vmatpush2.msra.mxu0 0.0
    %3244 = vmatprep.subr.mxu0 0.0
    %3245 = vmatpush2.msra.mxu0 0.0
    %3246 = vmatprep.subr.mxu0 0.0
    %3247 = vmatpush2.msra.mxu0 0.0
    %3248 = vmatprep.subr.mxu0 0.0
    %3249 = vmatpush2.msra.mxu0 0.0
    %3250 = vmatprep.subr.mxu0 0.0
    %3251 = vmatpush2.msra.mxu0 0.0
    %3252 = vmatprep.mubr.f32.mxu0 0.0
    %3253 = vmatmul.mubr.f32.gmra.mxu0 %v3186
    %v3254 = vpop.f32.mrf.mxu0
    %v3255 = vadd.f32 0.0, %v3254
    %v3256 = vpop.f32.mrf.mxu0
    %3257 = vdwg.mxu0
    %3258 = vrot.lane.b32.xlu0 %v2013, 64
    %v3259 = vpop.permute.xlu0 %3258
    %v3262 = vsel %vm160, %v2725, 0
    %3264 = vmatprep.subr.mxu0 0.0
    %3265 = vmatpush1.msra.mxu0 0.0
    %3266 = vmatprep.subr.mxu0 0.0
    %3267 = vmatpush1.msra.mxu0 0.0
    %3268 = vmatprep.subr.mxu0 0.0
    %3269 = vmatpush1.msra.mxu0 0.0
    %3270 = vmatprep.subr.mxu0 0.0
    %3271 = vmatpush1.msra.mxu0 0.0
    %3272 = vmatprep.subr.mxu0 0.0
    %3273 = vmatpush1.msra.mxu0 0.0
    %3274 = vmatprep.subr.mxu0 0.0
    %3275 = vmatpush1.msra.mxu0 0.0
    %3276 = vmatprep.subr.mxu0 0.0
    %3277 = vmatpush1.msra.mxu0 0.0
    %3278 = vmatprep.subr.mxu0 0.0
    %3279 = vmatpush1.msra.mxu0 0.0
    %3280 = vmatprep.subr.mxu0 0.0
    %3281 = vmatpush1.msra.mxu0 0.0
    %3282 = vmatprep.subr.mxu0 0.0
    %3283 = vmatpush1.msra.mxu0 0.0
    %3284 = vmatprep.subr.mxu0 0.0
    %3285 = vmatpush1.msra.mxu0 0.0
    %3286 = vmatprep.subr.mxu0 0.0
    %3287 = vmatpush1.msra.mxu0 0.0
    %3288 = vmatprep.subr.mxu0 0.0
    %3289 = vmatpush1.msra.mxu0 0.0
    %3290 = vmatprep.subr.mxu0 0.0
    %3291 = vmatpush1.msra.mxu0 0.0
    %3292 = vmatprep.subr.mxu0 0.0
    %3293 = vmatpush1.msra.mxu0 0.0
    %3294 = vmatprep.subr.mxu0 0.0
    %3295 = vmatpush1.msra.mxu0 %v3259
    %3296 = vmatprep.subr.mxu0 0.0
    %3297 = vmatpush2.msra.mxu0 0.0
    %3298 = vmatprep.subr.mxu0 0.0
    %3299 = vmatpush2.msra.mxu0 0.0
    %3300 = vmatprep.subr.mxu0 0.0
    %3301 = vmatpush2.msra.mxu0 0.0
    %3302 = vmatprep.subr.mxu0 0.0
    %3303 = vmatpush2.msra.mxu0 0.0
    %3304 = vmatprep.subr.mxu0 0.0
    %3305 = vmatpush2.msra.mxu0 0.0
    %3306 = vmatprep.subr.mxu0 0.0
    %3307 = vmatpush2.msra.mxu0 0.0
    %3308 = vmatprep.subr.mxu0 0.0
    %3309 = vmatpush2.msra.mxu0 0.0
    %3310 = vmatprep.subr.mxu0 0.0
    %3311 = vmatpush2.msra.mxu0 0.0
    %3312 = vmatprep.subr.mxu0 0.0
    %3313 = vmatpush2.msra.mxu0 0.0
    %3314 = vmatprep.subr.mxu0 0.0
    %3315 = vmatpush2.msra.mxu0 0.0
    %3316 = vmatprep.subr.mxu0 0.0
    %3317 = vmatpush2.msra.mxu0 0.0
    %3318 = vmatprep.subr.mxu0 0.0
    %3319 = vmatpush2.msra.mxu0 0.0
    %3320 = vmatprep.subr.mxu0 0.0
    %3321 = vmatpush2.msra.mxu0 0.0
    %3322 = vmatprep.subr.mxu0 0.0
    %3323 = vmatpush2.msra.mxu0 0.0
    %3324 = vmatprep.subr.mxu0 0.0
    %3325 = vmatpush2.msra.mxu0 0.0
    %3326 = vmatprep.subr.mxu0 0.0
    %3327 = vmatpush2.msra.mxu0 0.0
    %3328 = vmatprep.mubr.f32.mxu0 0.0
    %3329 = vmatmul.mubr.f32.gmra.mxu0 %v3262
    %v3330 = vpop.f32.mrf.mxu0
    %v3331 = vadd.f32 0.0, %v3330
    %v3332 = vpop.f32.mrf.mxu0
    %3333 = vdwg.mxu0
    %3336 = vrot.lane.b32.xlu0 %v2951, 8
    %v3337 = vpop.permute.xlu0 %3336
    %3338 = vrot.lane.b32.xlu0 %v3027, 8
    %v3339 = vpop.permute.xlu0 %3338
    %3344 = vrot.lane.b32.xlu0 %v3103, 16
    %v3345 = vpop.permute.xlu0 %3344
    %3346 = vrot.lane.b32.xlu0 %v3179, 16
    %v3347 = vpop.permute.xlu0 %3346
    %3352 = vrot.lane.b32.xlu0 %v3255, 24
    %v3353 = vpop.permute.xlu0 %3352
    %3354 = vrot.lane.b32.xlu0 %v3331, 24
    %v3355 = vpop.permute.xlu0 %3354
    %v3358 = vsel %vm160, %v2799, %v3337
    %v3359 = vsel %vm160, %v2875, %v3339
    %v3360 = vsel %vm1537, %v3358, %v3345
    %v3361 = vsel %vm1537, %v3359, %v3347
    %v3362 = vsel %vm1540, %v3360, %v3353
    %v3363 = vsel %vm1540, %v3361, %v3355
    %v3364 = vlaneseq
    %v3365 = vshrl.u32 %v3364, 7
    %v3366 = vsub.s32 0, %v3365
    %v3367 = vrot.slane %v1909, %v3366
    %v3369 = vsel %vm20, %v3362, 0
    %v3372 = vsel %vm20, %v3363, 0
    %3374 = vmatprep.subr.mxu0 0.0
    %3375 = vmatpush1.msra.mxu0 0.0
    %3376 = vmatprep.subr.mxu0 0.0
    %3377 = vmatpush1.msra.mxu0 0.0
    %3378 = vmatprep.subr.mxu0 0.0
    %3379 = vmatpush1.msra.mxu0 0.0
    %3380 = vmatprep.subr.mxu0 0.0
    %3381 = vmatpush1.msra.mxu0 0.0
    %3382 = vmatprep.subr.mxu0 0.0
    %3383 = vmatpush1.msra.mxu0 0.0
    %3384 = vmatprep.subr.mxu0 0.0
    %3385 = vmatpush1.msra.mxu0 0.0
    %3386 = vmatprep.subr.mxu0 0.0
    %3387 = vmatpush1.msra.mxu0 0.0
    %3388 = vmatprep.subr.mxu0 0.0
    %3389 = vmatpush1.msra.mxu0 0.0
    %3390 = vmatprep.subr.mxu0 0.0
    %3391 = vmatpush1.msra.mxu0 0.0
    %3392 = vmatprep.subr.mxu0 0.0
    %3393 = vmatpush1.msra.mxu0 0.0
    %3394 = vmatprep.subr.mxu0 0.0
    %3395 = vmatpush1.msra.mxu0 0.0
    %3396 = vmatprep.subr.mxu0 0.0
    %3397 = vmatpush1.msra.mxu0 0.0
    %3398 = vmatprep.subr.mxu0 0.0
    %3399 = vmatpush1.msra.mxu0 %v1897
    %3400 = vmatprep.subr.mxu0 0.0
    %3401 = vmatpush1.msra.mxu0 %v1896
    %3402 = vmatprep.subr.mxu0 0.0
    %3403 = vmatpush1.msra.mxu0 %v1895
    %3404 = vmatprep.subr.mxu0 0.0
    %3405 = vmatpush1.msra.mxu0 %v1894
    %3406 = vmatprep.subr.mxu0 0.0
    %3407 = vmatpush2.msra.mxu0 0.0
    %3408 = vmatprep.subr.mxu0 0.0
    %3409 = vmatpush2.msra.mxu0 0.0
    %3410 = vmatprep.subr.mxu0 0.0
    %3411 = vmatpush2.msra.mxu0 0.0
    %3412 = vmatprep.subr.mxu0 0.0
    %3413 = vmatpush2.msra.mxu0 0.0
    %3414 = vmatprep.subr.mxu0 0.0
    %3415 = vmatpush2.msra.mxu0 0.0
    %3416 = vmatprep.subr.mxu0 0.0
    %3417 = vmatpush2.msra.mxu0 0.0
    %3418 = vmatprep.subr.mxu0 0.0
    %3419 = vmatpush2.msra.mxu0 0.0
    %3420 = vmatprep.subr.mxu0 0.0
    %3421 = vmatpush2.msra.mxu0 0.0
    %3422 = vmatprep.subr.mxu0 0.0
    %3423 = vmatpush2.msra.mxu0 0.0
    %3424 = vmatprep.subr.mxu0 0.0
    %3425 = vmatpush2.msra.mxu0 0.0
    %3426 = vmatprep.subr.mxu0 0.0
    %3427 = vmatpush2.msra.mxu0 0.0
    %3428 = vmatprep.subr.mxu0 0.0
    %3429 = vmatpush2.msra.mxu0 0.0
    %3430 = vmatprep.subr.mxu0 0.0
    %3431 = vmatpush2.msra.mxu0 0.0
    %3432 = vmatprep.subr.mxu0 0.0
    %3433 = vmatpush2.msra.mxu0 0.0
    %3434 = vmatprep.subr.mxu0 0.0
    %3435 = vmatpush2.msra.mxu0 0.0
    %3436 = vmatprep.subr.mxu0 0.0
    %3437 = vmatpush2.msra.mxu0 0.0
    %3438 = vmatprep.mubr.f32.mxu0 0.0
    %3439 = vmatmul.mubr.f32.gmra.mxu0 %v3369
    %v3440 = vpop.f32.mrf.mxu0
    %v3441 = vadd.f32 %v3367, %v3440
    %v3442 = vpop.f32.mrf.mxu0
    %3443 = vmatprep.mubr.f32.mxu0 0.0
    %3444 = vmatmul.mubr.f32.gmra.mxu0 %v3372
    %v3445 = vpop.f32.mrf.mxu0
    %v3446 = vadd.f32 %v3367, %v3445
    %v3447 = vpop.f32.mrf.mxu0
    %3448 = vdwg.mxu0
    %v3449 = vadd.f32 %v1880, %v3441
    %v3450 = vadd.f32 %v1881, %v3446
    %v3451 = vsel %vm20, %v3449, 0.0
    %3452 = vadd.xlane.f32.xlu0 %v3451
    %v3453 = vpop.xlane.xlu0 %3452
    %v3454 = vsel %vm20, %v3450, 0.0
    %3455 = vadd.xlane.f32.xlu0 %v3454
    %v3456 = vpop.xlane.xlu0 %3455
    %v3457 = vmul.f32 %v3453, %v1636
    %v3458 = vmul.f32 %v3456, %v1636
    %v3459 = vsub.f32 %v3449, %v3457
    %v3460 = vsub.f32 %v3450, %v3458
    %v3461 = vmul.f32 %v3459, %v3459
    %v3462 = vmul.f32 %v3460, %v3460
    %v3463 = vsel %vm20, %v3461, 0.0
    %3464 = vadd.xlane.f32.xlu0 %v3463
    %v3465 = vpop.xlane.xlu0 %3464
    %v3466 = vsel %vm20, %v3462, 0.0
    %3467 = vadd.xlane.f32.xlu0 %v3466
    %v3468 = vpop.xlane.xlu0 %3467
    %v3469 = vmul.f32 %v3465, %v1636
    %v3470 = vmul.f32 %v3468, %v1636
    %v3471 = vadd.f32 %v3469, 1e-05
    %v3472 = vadd.f32 %v3470, 1e-05
    %v3473 = vrsqrt.pop %v3471
    %v3474 = vrsqrt.pop %v3472
    %v3475 = vmul.f32 %v3459, %v3473
    %v3476 = vmul.f32 %v3460, %v3474
    %v3477 = vlaneseq
    %v3478 = vshrl.u32 %v3477, 7
    %v3479 = vsub.s32 0, %v3478
    %v3480 = vrot.slane %v1910, %v3479
    %v3481 = vmul.f32 %v3475, %v3480
    %v3482 = vmul.f32 %v3476, %v3480
    %v3483 = vlaneseq
    %v3484 = vshrl.u32 %v3483, 7
    %v3485 = vsub.s32 0, %v3484
    %v3486 = vrot.slane %v1911, %v3485
    %v3487 = vadd.f32 %v3481, %v3486
    %v3488 = vadd.f32 %v3482, %v3486
    %v3489 = vlaneseq
    %v3490 = vshrl.u32 %v3489, 7
    %v3491 = vsub.s32 0, %v3490
    %v3492 = vrot.slane %v1908, %v3491
    %v3494 = vsel %vm20, %v3487, 0
    %v3497 = vsel %vm20, %v3488, 0
    %3499 = vmatprep.subr.mxu0 0.0
    %3500 = vmatpush1.msra.mxu0 0.0
    %3501 = vmatprep.subr.mxu0 0.0
    %3502 = vmatpush1.msra.mxu0 0.0
    %3503 = vmatprep.subr.mxu0 0.0
    %3504 = vmatpush1.msra.mxu0 0.0
    %3505 = vmatprep.subr.mxu0 0.0
    %3506 = vmatpush1.msra.mxu0 0.0
    %3507 = vmatprep.subr.mxu0 0.0
    %3508 = vmatpush1.msra.mxu0 0.0
    %3509 = vmatprep.subr.mxu0 0.0
    %3510 = vmatpush1.msra.mxu0 0.0
    %3511 = vmatprep.subr.mxu0 0.0
    %3512 = vmatpush1.msra.mxu0 0.0
    %3513 = vmatprep.subr.mxu0 0.0
    %3514 = vmatpush1.msra.mxu0 0.0
    %3515 = vmatprep.subr.mxu0 0.0
    %3516 = vmatpush1.msra.mxu0 0.0
    %3517 = vmatprep.subr.mxu0 0.0
    %3518 = vmatpush1.msra.mxu0 0.0
    %3519 = vmatprep.subr.mxu0 0.0
    %3520 = vmatpush1.msra.mxu0 0.0
    %3521 = vmatprep.subr.mxu0 0.0
    %3522 = vmatpush1.msra.mxu0 0.0
    %3523 = vmatprep.subr.mxu0 0.0
    %3524 = vmatpush1.msra.mxu0 %v1892
    %3525 = vmatprep.subr.mxu0 0.0
    %3526 = vmatpush1.msra.mxu0 %v1891
    %3527 = vmatprep.subr.mxu0 0.0
    %3528 = vmatpush1.msra.mxu0 %v1890
    %3529 = vmatprep.subr.mxu0 0.0
    %3530 = vmatpush1.msra.mxu0 %v1889
    %3531 = vmatprep.subr.mxu0 0.0
    %3532 = vmatpush2.msra.mxu0 0.0
    %3533 = vmatprep.subr.mxu0 0.0
    %3534 = vmatpush2.msra.mxu0 0.0
    %3535 = vmatprep.subr.mxu0 0.0
    %3536 = vmatpush2.msra.mxu0 0.0
    %3537 = vmatprep.subr.mxu0 0.0
    %3538 = vmatpush2.msra.mxu0 0.0
    %3539 = vmatprep.subr.mxu0 0.0
    %3540 = vmatpush2.msra.mxu0 0.0
    %3541 = vmatprep.subr.mxu0 0.0
    %3542 = vmatpush2.msra.mxu0 0.0
    %3543 = vmatprep.subr.mxu0 0.0
    %3544 = vmatpush2.msra.mxu0 0.0
    %3545 = vmatprep.subr.mxu0 0.0
    %3546 = vmatpush2.msra.mxu0 0.0
    %3547 = vmatprep.subr.mxu0 0.0
    %3548 = vmatpush2.msra.mxu0 0.0
    %3549 = vmatprep.subr.mxu0 0.0
    %3550 = vmatpush2.msra.mxu0 0.0
    %3551 = vmatprep.subr.mxu0 0.0
    %3552 = vmatpush2.msra.mxu0 0.0
    %3553 = vmatprep.subr.mxu0 0.0
    %3554 = vmatpush2.msra.mxu0 0.0
    %3555 = vmatprep.subr.mxu0 0.0
    %3556 = vmatpush2.msra.mxu0 0.0
    %3557 = vmatprep.subr.mxu0 0.0
    %3558 = vmatpush2.msra.mxu0 0.0
    %3559 = vmatprep.subr.mxu0 0.0
    %3560 = vmatpush2.msra.mxu0 0.0
    %3561 = vmatprep.subr.mxu0 0.0
    %3562 = vmatpush2.msra.mxu0 0.0
    %3563 = vmatprep.mubr.f32.mxu0 0.0
    %3564 = vmatmul.mubr.f32.gmra.mxu0 %v3494
    %v3565 = vpop.f32.mrf.mxu0
    %v3566 = vadd.f32 %v3492, %v3565
    %v3567 = vpop.f32.mrf.mxu0
    %3568 = vmatprep.mubr.f32.mxu0 0.0
    %3569 = vmatmul.mubr.f32.gmra.mxu0 %v3497
    %v3570 = vpop.f32.mrf.mxu0
    %v3571 = vadd.f32 %v3492, %v3570
    %v3572 = vpop.f32.mrf.mxu0
    %3573 = vdwg.mxu0
    %v3574 = vmax.f32 %v3566, 0.0
    %v3575 = vmax.f32 %v3571, 0.0
    %v3576 = vlaneseq
    %v3577 = vshrl.u32 %v3576, 7
    %v3578 = vsub.s32 0, %v3577
    %v3579 = vrot.slane %v1912, %v3578
    %v3581 = vsel %vm1760, %v3574, 0
    %v3584 = vsel %vm1760, %v3575, 0
    %3586 = vmatprep.subr.mxu0 0.0
    %3587 = vmatpush1.msra.mxu0 0.0
    %3588 = vmatprep.subr.mxu0 0.0
    %3589 = vmatpush1.msra.mxu0 0.0
    %3590 = vmatprep.subr.mxu0 0.0
    %3591 = vmatpush1.msra.mxu0 0.0
    %3592 = vmatprep.subr.mxu0 0.0
    %3593 = vmatpush1.msra.mxu0 0.0
    %3594 = vmatprep.subr.mxu0 0.0
    %3595 = vmatpush1.msra.mxu0 0.0
    %3596 = vmatprep.subr.mxu0 0.0
    %3597 = vmatpush1.msra.mxu0 0.0
    %3598 = vmatprep.subr.mxu0 0.0
    %3599 = vmatpush1.msra.mxu0 0.0
    %3600 = vmatprep.subr.mxu0 0.0
    %3601 = vmatpush1.msra.mxu0 0.0
    %3602 = vmatprep.subr.mxu0 0.0
    %3603 = vmatpush1.msra.mxu0 %v1905
    %3604 = vmatprep.subr.mxu0 0.0
    %3605 = vmatpush1.msra.mxu0 %v1904
    %3606 = vmatprep.subr.mxu0 0.0
    %3607 = vmatpush1.msra.mxu0 %v1903
    %3608 = vmatprep.subr.mxu0 0.0
    %3609 = vmatpush1.msra.mxu0 %v1902
    %3610 = vmatprep.subr.mxu0 0.0
    %3611 = vmatpush1.msra.mxu0 %v1901
    %3612 = vmatprep.subr.mxu0 0.0
    %3613 = vmatpush1.msra.mxu0 %v1900
    %3614 = vmatprep.subr.mxu0 0.0
    %3615 = vmatpush1.msra.mxu0 %v1899
    %3616 = vmatprep.subr.mxu0 0.0
    %3617 = vmatpush1.msra.mxu0 %v1898
    %3618 = vmatprep.subr.mxu0 0.0
    %3619 = vmatpush2.msra.mxu0 0.0
    %3620 = vmatprep.subr.mxu0 0.0
    %3621 = vmatpush2.msra.mxu0 0.0
    %3622 = vmatprep.subr.mxu0 0.0
    %3623 = vmatpush2.msra.mxu0 0.0
    %3624 = vmatprep.subr.mxu0 0.0
    %3625 = vmatpush2.msra.mxu0 0.0
    %3626 = vmatprep.subr.mxu0 0.0
    %3627 = vmatpush2.msra.mxu0 0.0
    %3628 = vmatprep.subr.mxu0 0.0
    %3629 = vmatpush2.msra.mxu0 0.0
    %3630 = vmatprep.subr.mxu0 0.0
    %3631 = vmatpush2.msra.mxu0 0.0
    %3632 = vmatprep.subr.mxu0 0.0
    %3633 = vmatpush2.msra.mxu0 0.0
    %3634 = vmatprep.subr.mxu0 0.0
    %3635 = vmatpush2.msra.mxu0 0.0
    %3636 = vmatprep.subr.mxu0 0.0
    %3637 = vmatpush2.msra.mxu0 0.0
    %3638 = vmatprep.subr.mxu0 0.0
    %3639 = vmatpush2.msra.mxu0 0.0
    %3640 = vmatprep.subr.mxu0 0.0
    %3641 = vmatpush2.msra.mxu0 0.0
    %3642 = vmatprep.subr.mxu0 0.0
    %3643 = vmatpush2.msra.mxu0 0.0
    %3644 = vmatprep.subr.mxu0 0.0
    %3645 = vmatpush2.msra.mxu0 0.0
    %3646 = vmatprep.subr.mxu0 0.0
    %3647 = vmatpush2.msra.mxu0 0.0
    %3648 = vmatprep.subr.mxu0 0.0
    %3649 = vmatpush2.msra.mxu0 0.0
    %3650 = vmatprep.mubr.f32.mxu0 0.0
    %3651 = vmatmul.mubr.f32.gmra.mxu0 %v3581
    %v3652 = vpop.f32.mrf.mxu0
    %v3653 = vadd.f32 %v3579, %v3652
    %v3654 = vpop.f32.mrf.mxu0
    %3655 = vmatprep.mubr.f32.mxu0 0.0
    %3656 = vmatmul.mubr.f32.gmra.mxu0 %v3584
    %v3657 = vpop.f32.mrf.mxu0
    %v3658 = vadd.f32 %v3579, %v3657
    %v3659 = vpop.f32.mrf.mxu0
    %3660 = vdwg.mxu0
    %v3661 = vadd.f32 %v3487, %v3653
    %v3662 = vadd.f32 %v3488, %v3658
    %v3663 = vsel %vm20, %v3661, 0.0
    %3664 = vadd.xlane.f32.xlu0 %v3663
    %v3665 = vpop.xlane.xlu0 %3664
    %v3666 = vsel %vm20, %v3662, 0.0
    %3667 = vadd.xlane.f32.xlu0 %v3666
    %v3668 = vpop.xlane.xlu0 %3667
    %v3669 = vmul.f32 %v3665, %v1636
    %v3670 = vmul.f32 %v3668, %v1636
    %v3671 = vsub.f32 %v3661, %v3669
    %v3672 = vsub.f32 %v3662, %v3670
    %v3673 = vmul.f32 %v3671, %v3671
    %v3674 = vmul.f32 %v3672, %v3672
    %v3675 = vsel %vm20, %v3673, 0.0
    %3676 = vadd.xlane.f32.xlu0 %v3675
    %v3677 = vpop.xlane.xlu0 %3676
    %v3678 = vsel %vm20, %v3674, 0.0
    %3679 = vadd.xlane.f32.xlu0 %v3678
    %v3680 = vpop.xlane.xlu0 %3679
    %v3681 = vmul.f32 %v3677, %v1636
    %v3682 = vmul.f32 %v3680, %v1636
    %v3683 = vadd.f32 %v3681, 1e-05
    %v3684 = vadd.f32 %v3682, 1e-05
    %v3685 = vrsqrt.pop %v3683
    %v3686 = vrsqrt.pop %v3684
    %v3687 = vmul.f32 %v3671, %v3685
    %v3688 = vmul.f32 %v3672, %v3686
    %v3689 = vlaneseq
    %v3690 = vshrl.u32 %v3689, 7
    %v3691 = vsub.s32 0, %v3690
    %v3692 = vrot.slane %v1913, %v3691
    %v3693 = vmul.f32 %v3687, %v3692
    %v3694 = vmul.f32 %v3688, %v3692
    %v3695 = vlaneseq
    %v3696 = vshrl.u32 %v3695, 7
    %v3697 = vsub.s32 0, %v3696
    %v3698 = vrot.slane %v1914, %v3697
    %v3699 = vadd.f32 %v3693, %v3698
    %v3700 = vadd.f32 %v3694, %v3698
    %s3701 = scalar_lea.vmem [#allocation2], 16
    %3702 = vst.msk [vmem:[%s3701] sm:$0xff] %vm20, %v3699
    %3703 = vst.msk [vmem:[%s3701 + $0x8] sm:$0xff] %vm20, %v3700
    // Predicated region
    $region18: #{tpu_custom_call.1} parent=1 // pred_check
      _
    $region19: #{tpu_custom_call.1} parent=1 // pred_check_branch
      %3705 = sbr.rel (0) target = $region21
    $region20: #{tpu_custom_call.1} parent=1 // pred_region
      %s3707 = ssub.s32 512, 512
      %3708 = vsyncadd [#allocation3], %s3707
      %s3709 = sshll.u32 [#allocation2], 4
      %s3710 = int_to_ptr.vmem [resolvable:$true] %s3709
      %3715 = dma.vmem_to_hbm [thread:$0]  %s3710, 512, %s4, [#allocation3], 128, 128, 8
    $region21: #{tpu_custom_call.1} parent=1 // pred_fallthru
      _
    // Predicated region
    $region22: #{tpu_custom_call.1} parent=1 // pred_check
      _
    $region23: #{tpu_custom_call.1} parent=1 // pred_check_branch
      %3717 = sbr.rel (0) target = $region25
    $region24: #{tpu_custom_call.1} parent=1 // pred_region
      %3718 = dma.done [#allocation3], 512
    $region25: #{tpu_custom_call.1} parent=1 // pred_fallthru
      _
    %3719 = vsyncpa [#allocation3], 1

</llo_original>
